<compile_context>
chip_gen: v7x
topology: tpu7x:2x2x1
jax: 0.10.0
libtpu: 0.0.40
codegen_flags: <defaults>
</compile_context>

<pallas_src>
import math

import jax
import jax.numpy as jnp
from jax.experimental import pallas as pl
from jax.experimental.pallas import tpu as pltpu


# ----------------------------------------------------------------------------
# Model dimensions (logical) and lane-dense padded dimensions
# ----------------------------------------------------------------------------
B, T, C = 2, 16, 16            # batch, frames, input feature dim
D, H, FFN, K = 32, 4, 64, 32   # embed_dim, heads, ffn dim, num_pretraining_targets
DH = D // H                    # head dim
N_LAYERS = 2
MASK_PROB, MASK_LEN = 0.65, 4

BT = B * T                     # rows of the flattened activation
LANE = 128
C_P, D_P, F_P, K_P = LANE, LANE, LANE, LANE   # padded (lane-dense) widths
SCALE = 1.0 / math.sqrt(DH)


# ----------------------------------------------------------------------------
# The single fused forward kernel
# ----------------------------------------------------------------------------
def _hubert_fwd_kernel(
    # resident inputs (constant block index across the layer grid)
    feats_ref,      # (BT, C_P)  f32   flattened, lane-padded features
    fmask_ref,      # (BT, 1)    f32   1.0 where frame is masked-for-modeling
    bias_ref,       # (BT, BT)   f32   additive attn bias (batch-block + key pad)
    w_in_ref,       # (C_P, D_P) bf16
    b_in_ref,       # (1, D_P)   f32
    # per-layer (layer-blocked, auto-pipelined) inputs
    wqkv_ref,       # (D_P, 3*D_P) bf16
    bqkv_ref,       # (1, 3*D_P)   f32
    wo_ref,         # (D_P, D_P)   bf16
    bo_ref,         # (1, D_P)     f32
    w1_ref,         # (D_P, F_P)   bf16
    b1_ref,         # (1, F_P)     f32
    w2_ref,         # (F_P, D_P)   bf16
    b2_ref,         # (1, D_P)     f32
    ln_ref,         # (4, D_P)     f32   rows: ln1_g, ln1_b, ln2_g, ln2_b
    # resident epilogue inputs
    w_proj_ref,     # (D_P, K_P)   bf16
    b_proj_ref,     # (1, K_P)     f32
    labels_ref,     # (BT, 1)      int32
    lmask_ref,      # (BT, 1)      f32   loss mask = ~padding & masked
    # output
    loss_ref,       # (1, 1)       f32   SMEM
    # scratch
    x_ref,          # (BT, D_P)    f32   activation, resident across layers
):
    layer = pl.program_id(0)
    last = pl.num_programs(0) - 1

    col = jax.lax.broadcasted_iota(jnp.int32, (1, D_P), 1)
    real_cols = (col < D).astype(jnp.float32)            # 1.0 on the real embed dims

    # ---- prologue (layer 0): zero masked frames, project input, init loss ----
    @pl.when(layer == 0)
    def _():
        f = feats_ref[...] * (1.0 - fmask_ref[...])       # fused frame masking
        x0 = jnp.dot(f.astype(jnp.bfloat16), w_in_ref[...],
                     preferred_element_type=jnp.float32) + b_in_ref[...]
        x_ref[...] = x0
        loss_ref[0, 0] = 0.0

    x = x_ref[...]                                        # (BT, D_P) f32

    def layer_norm(v, g, b):
        # Normalize over the REAL D features only (padded cols stay exactly zero
        # since gamma/beta are zero there and v's padded cols are zero).
        mu = jnp.sum(v * real_cols, axis=-1, keepdims=True) * (1.0 / D)
        cen = (v - mu) * real_cols
        var = jnp.sum(cen * cen, axis=-1, keepdims=True) * (1.0 / D)
        return cen * jax.lax.rsqrt(var + 1e-5) * g + b

    lnp = ln_ref[...]                                     # (4, D_P)
    g1, be1 = lnp[0:1], lnp[1:2]
    g2, be2 = lnp[2:3], lnp[3:4]

    # ---- fused QKV projection (one MXU op, contraction = 128) ----------------
    qkv = jnp.dot(x.astype(jnp.bfloat16), wqkv_ref[...],
                  preferred_element_type=jnp.float32) + bqkv_ref[...]
    q = qkv[:, 0:D_P]
    k = qkv[:, D_P:2 * D_P]
    v = qkv[:, 2 * D_P:3 * D_P]

    # ---- multi-head attention: heads via 128-wide column masks ---------------
    # No reshape/transpose/concat: per-head contraction stays lane-dense and the
    # per-head context lands directly in its column block of ctx.
    # Only Q and V are masked: masking Q already zeroes the cross-head terms of
    # the Q·Kᵀ contraction, so masking K would be redundant VPU work.
    bias = bias_ref[...]                                  # (BT, BT)
    q_bf = q.astype(jnp.bfloat16)
    k_bf = k.astype(jnp.bfloat16)
    v_bf = v.astype(jnp.bfloat16)
    ctx = jnp.zeros((BT, D_P), jnp.float32)
    for h in range(H):                                    # static unroll, H=4
        hm = ((col >= h * DH) & (col < (h + 1) * DH)).astype(jnp.bfloat16)
        qh = q_bf * hm
        vh = v_bf * hm
        s = jax.lax.dot_general(qh, k_bf, (((1,), (1,)), ((), ())),
                                preferred_element_type=jnp.float32)
        s = s * SCALE + bias
        m = jnp.max(s, axis=-1, keepdims=True)
        p = jnp.exp(s - m)
        denom = jnp.sum(p, axis=-1, keepdims=True)
        p = p * pl.reciprocal(denom, approx=True)
        ctx = ctx + jnp.dot(p.astype(jnp.bfloat16), vh,
                            preferred_element_type=jnp.float32)

    a = jnp.dot(ctx.astype(jnp.bfloat16), wo_ref[...],
                preferred_element_type=jnp.float32) + bo_ref[...]
    x = layer_norm(x + a, g1, be1)

    # ---- feed-forward (bias + ReLU fused) -------------------------------------
    h1 = jnp.dot(x.astype(jnp.bfloat16), w1_ref[...],
                 preferred_element_type=jnp.float32) + b1_ref[...]
    h1 = jnp.maximum(h1, 0.0)
    h2 = jnp.dot(h1.astype(jnp.bfloat16), w2_ref[...],
                 preferred_element_type=jnp.float32) + b2_ref[...]
    x = layer_norm(x + h2, g2, be2)

    x_ref[...] = x                                        # stays in VMEM for next layer

    # ---- epilogue (last layer): final_proj + masked cross-entropy ------------
    @pl.when(layer == last)
    def _():
        logits = jnp.dot(x.astype(jnp.bfloat16), w_proj_ref[...],
                         preferred_element_type=jnp.float32) + b_proj_ref[...]
        kcol = jax.lax.broadcasted_iota(jnp.int32, (BT, K_P), 1)
        logits = jnp.where(kcol < K, logits, -1e30)       # mask padded classes
        mx = jnp.max(logits, axis=-1, keepdims=True)
        lse = jnp.log(jnp.sum(jnp.exp(logits - mx), axis=-1, keepdims=True)) + mx
        onehot = (kcol == labels_ref[...]).astype(jnp.float32)
        picked = jnp.sum(logits * onehot, axis=-1, keepdims=True)
        nll = lse - picked                                # (BT, 1)
        lm = lmask_ref[...]                               # (BT, 1)
        total = jnp.sum(nll * lm)
        cnt = jnp.sum(lm)
        loss_ref[0, 0] = total / jnp.maximum(cnt, 1.0)


def _resident(shape):
    zeros = (0,) * len(shape)
    return pl.BlockSpec(tuple(shape), lambda l: zeros)


def _per_layer(shape):
    zeros = (0,) * len(shape)
    return pl.BlockSpec((None,) + tuple(shape), lambda l: (l,) + zeros)


# ----------------------------------------------------------------------------
# Parameters: stored already zero-padded to lane-dense widths, stacked per layer,
# matmul weights in bf16 (halves weight DMA traffic; f32 accumulate in-kernel).
# ----------------------------------------------------------------------------
def _pad2(w, rows, cols):
    out = jnp.zeros((rows, cols), jnp.float32)
    return out.at[:w.shape[0], :w.shape[1]].set(w)


def init_params(key):
    def lin(k, din, dout, rp, cp):
        w = 0.02 * jax.random.normal(k, (din, dout), jnp.float32)
        return _pad2(w, rp, cp).astype(jnp.bfloat16), jnp.zeros((1, cp), jnp.float32)

    keys = jax.random.split(key, 2 + N_LAYERS)
    in_w, in_b = lin(keys[0], C, D, C_P, D_P)
    proj_w, proj_b = lin(keys[1], D, K, D_P, K_P)        # final_proj

    ln_gamma = _pad2(jnp.ones((1, D), jnp.float32), 1, D_P)   # padded gamma -> 0
    ln_zero = jnp.zeros((1, D_P), jnp.float32)

    wqkv, bqkv, wo, bo, w1, b1, w2, b2, ln = ([] for _ in range(9))
    for i in range(N_LAYERS):
        lk = jax.random.split(keys[2 + i], 6)
        wq, _ = lin(lk[0], D, D, D_P, D_P)
        wk, _ = lin(lk[1], D, D, D_P, D_P)
        wv, _ = lin(lk[2], D, D, D_P, D_P)
        wqkv.append(jnp.concatenate([wq, wk, wv], axis=1))       # fused (D_P, 3*D_P)
        bqkv.append(jnp.zeros((1, 3 * D_P), jnp.float32))
        w, b = lin(lk[3], D, D, D_P, D_P);   wo.append(w); bo.append(b)
        w, b = lin(lk[4], D, FFN, D_P, F_P); w1.append(w); b1.append(b)
        w, b = lin(lk[5], FFN, D, F_P, D_P); w2.append(w); b2.append(b)
        ln.append(jnp.concatenate([ln_gamma, ln_zero, ln_gamma, ln_zero], axis=0))

    stack = lambda xs: jnp.stack(xs, axis=0)
    return dict(in_w=in_w, in_b=in_b, proj_w=proj_w, proj_b=proj_b,
                wqkv=stack(wqkv), bqkv=stack(bqkv), wo=stack(wo), bo=stack(bo),
                w1=stack(w1), b1=stack(b1), w2=stack(w2), b2=stack(b2),
                ln=stack(ln))


def compute_mask_indices(key, padding_mask):
    # TODO(synk): fairseq's _compute_mask_indices uses a numpy span sampler with
    # per-example normalization; replicated here as a deterministic JAX span mask.
    starts = jax.random.bernoulli(key, MASK_PROB / MASK_LEN, (B, T))
    mask = jnp.zeros((B, T), dtype=bool)
    for off in range(MASK_LEN):
        shifted = jnp.pad(starts, ((0, 0), (off, 0)))[:, :T]
        mask = jnp.logical_or(mask, shifted)
    return jnp.logical_and(mask, ~padding_mask)


# ----------------------------------------------------------------------------
# Forward: tiny JAX-side prep (masks, padding, bias), then ONE pallas_call.
# ----------------------------------------------------------------------------
@jax.jit
def hubert_forward(params, feats_padded, feat_lens, ptlabels_padded, mask_key):
    t_idx = jnp.arange(T, dtype=jnp.int32)[None, :]
    padding_mask = t_idx >= feat_lens[:, None]                  # (B,T) True = padded
    masks_for_modeling = compute_mask_indices(mask_key, padding_mask)

    feats_flat = feats_padded.reshape(BT, C).astype(jnp.float32)
    feats_p = jnp.zeros((BT, C_P), jnp.float32).at[:, :C].set(feats_flat)
    fmask = masks_for_modeling.reshape(BT, 1).astype(jnp.float32)

    # additive attention bias: 0 where (same batch AND key not padded), else -1e9
    batch_ids = jnp.arange(BT, dtype=jnp.int32) // T
    same_batch = batch_ids[:, None] == batch_ids[None, :]
    key_valid = jnp.logical_not(padding_mask.reshape(BT))
    attn_bias = jnp.where(jnp.logical_and(same_batch, key_valid[None, :]),
                          0.0, -1e9).astype(jnp.float32)        # (BT, BT)

    labels = ptlabels_padded.reshape(BT, 1).astype(jnp.int32)
    lmask = jnp.logical_and(jnp.logical_not(padding_mask),
                            masks_for_modeling).reshape(BT, 1).astype(jnp.float32)

    grid_spec = pltpu.PrefetchScalarGridSpec(
        num_scalar_prefetch=0,
        grid=(N_LAYERS,),
        in_specs=[
            _resident((BT, C_P)),        # feats
            _resident((BT, 1)),          # frame mask
            _resident((BT, BT)),         # attention bias
            _resident((C_P, D_P)),       # in_w
            _resident((1, D_P)),         # in_b
            _per_layer((D_P, 3 * D_P)),  # wqkv
            _per_layer((1, 3 * D_P)),    # bqkv
            _per_layer((D_P, D_P)),      # wo
            _per_layer((1, D_P)),        # bo
            _per_layer((D_P, F_P)),      # w1
            _per_layer((1, F_P)),        # b1
            _per_layer((F_P, D_P)),      # w2
            _per_layer((1, D_P)),        # b2
            _per_layer((4, D_P)),        # ln params (g1,b1,g2,b2)
            _resident((D_P, K_P)),       # proj_w
            _resident((1, K_P)),         # proj_b
            _resident((BT, 1)),          # labels
            _resident((BT, 1)),          # loss mask
        ],
        out_specs=pl.BlockSpec((1, 1), lambda l: (0, 0),
                               memory_space=pltpu.MemorySpace.SMEM),
        scratch_shapes=[pltpu.VMEM((BT, D_P), jnp.float32)],     # resident activation
    )

    loss = pl.pallas_call(
        _hubert_fwd_kernel,
        out_shape=jax.ShapeDtypeStruct((1, 1), jnp.float32),
        grid_spec=grid_spec,
        compiler_params=pltpu.CompilerParams(
            dimension_semantics=("arbitrary",)),                 # layers are sequential
    )(feats_p, fmask, attn_bias,
      params["in_w"], params["in_b"],
      params["wqkv"], params["bqkv"], params["wo"], params["bo"],
      params["w1"], params["b1"], params["w2"], params["b2"], params["ln"],
      params["proj_w"], params["proj_b"], labels, lmask)

    return {"n_samples": jnp.int32(B), "loss": loss[0, 0]}


# ----------------------------------------------------------------------------
if __name__ == "__main__":
    root = jax.random.PRNGKey(0)
    k_param, k_feat, k_label, k_mask = jax.random.split(root, 4)

    params = init_params(k_param)
    feats_padded = jax.random.normal(k_feat, (B, T, C), jnp.float32)
    feat_lens = jnp.array([16, 12], dtype=jnp.int32)
    ptlabels_padded = jax.random.randint(k_label, (B, T), 0, K, jnp.int32)

    out = hubert_forward(params, feats_padded, feat_lens, ptlabels_padded, k_mask)
    out = jax.block_until_ready(out)
    assert int(out["n_samples"]) == B
    assert bool(jnp.isfinite(out["loss"]))
    print("KERNEL_OK")
</pallas_src>

<mosaic_0001>
module attributes {stable_mosaic.version = 11 : i64} {
  func.func @_hubert_fwd_kernel(%arg0: i32, %arg1: memref<32x128xf32, #tpu.memory_space<vmem>>, %arg2: memref<32x1xf32, #tpu.memory_space<vmem>>, %arg3: memref<32x32xf32, #tpu.memory_space<vmem>>, %arg4: memref<128x128xbf16, #tpu.memory_space<vmem>>, %arg5: memref<1x128xf32, #tpu.memory_space<vmem>>, %arg6: memref<1x128x384xbf16, #tpu.memory_space<vmem>>, %arg7: memref<1x1x384xf32, #tpu.memory_space<vmem>>, %arg8: memref<1x128x128xbf16, #tpu.memory_space<vmem>>, %arg9: memref<1x1x128xf32, #tpu.memory_space<vmem>>, %arg10: memref<1x128x128xbf16, #tpu.memory_space<vmem>>, %arg11: memref<1x1x128xf32, #tpu.memory_space<vmem>>, %arg12: memref<1x128x128xbf16, #tpu.memory_space<vmem>>, %arg13: memref<1x1x128xf32, #tpu.memory_space<vmem>>, %arg14: memref<1x4x128xf32, #tpu.memory_space<vmem>>, %arg15: memref<128x128xbf16, #tpu.memory_space<vmem>>, %arg16: memref<1x128xf32, #tpu.memory_space<vmem>>, %arg17: memref<32x1xi32, #tpu.memory_space<vmem>>, %arg18: memref<32x1xf32, #tpu.memory_space<vmem>>, %arg19: memref<1x1xf32, #tpu.memory_space<smem>>, %arg20: memref<32x128xf32, #tpu.memory_space<vmem>>) attributes {dimension_semantics = [#tpu.dimension_semantics<arbitrary>], iteration_bounds = array<i64: 2>, scalar_prefetch = 0 : i64, scratch_operands = 1 : i64, tpu.core_type = #tpu.core_type<tc>, window_params = [{pipeline_mode = #tpu.pipeline_mode<synchronous>, transform_indices = @transform_0, window_bounds = array<i64: 32, 128>}, {pipeline_mode = #tpu.pipeline_mode<synchronous>, transform_indices = @transform_1, window_bounds = array<i64: 32, 1>}, {pipeline_mode = #tpu.pipeline_mode<synchronous>, transform_indices = @transform_2, window_bounds = array<i64: 32, 32>}, {pipeline_mode = #tpu.pipeline_mode<synchronous>, transform_indices = @transform_3, window_bounds = array<i64: 128, 128>}, {pipeline_mode = #tpu.pipeline_mode<synchronous>, transform_indices = @transform_4, window_bounds = array<i64: 1, 128>}, {transform_indices = @transform_5, window_bounds = array<i64: 1, 128, 384>}, {transform_indices = @transform_6, window_bounds = array<i64: 1, 1, 384>}, {transform_indices = @transform_7, window_bounds = array<i64: 1, 128, 128>}, {transform_indices = @transform_8, window_bounds = array<i64: 1, 1, 128>}, {transform_indices = @transform_9, window_bounds = array<i64: 1, 128, 128>}, {transform_indices = @transform_10, window_bounds = array<i64: 1, 1, 128>}, {transform_indices = @transform_11, window_bounds = array<i64: 1, 128, 128>}, {transform_indices = @transform_12, window_bounds = array<i64: 1, 1, 128>}, {transform_indices = @transform_13, window_bounds = array<i64: 1, 4, 128>}, {pipeline_mode = #tpu.pipeline_mode<synchronous>, transform_indices = @transform_14, window_bounds = array<i64: 128, 128>}, {pipeline_mode = #tpu.pipeline_mode<synchronous>, transform_indices = @transform_15, window_bounds = array<i64: 1, 128>}, {pipeline_mode = #tpu.pipeline_mode<synchronous>, transform_indices = @transform_16, window_bounds = array<i64: 32, 1>}, {pipeline_mode = #tpu.pipeline_mode<synchronous>, transform_indices = @transform_17, window_bounds = array<i64: 32, 1>}, {transform_indices = @transform_18, window_bounds = array<i64: 1, 1>}]} {
    %0 = tpu.iota {dimensions = array<i32: 1>} : vector<1x128xi32>
    %c32_i32 = arith.constant 32 : i32
    %1 = vector.broadcast %c32_i32 : i32 to vector<1x128xi32>
    %2 = arith.cmpi slt, %0, %1 : vector<1x128xi32>
    %3 = arith.extui %2 : vector<1x128xi1> to vector<1x128xi32>
    %4 = arith.sitofp %3 : vector<1x128xi32> to vector<1x128xf32>
    %c0_i32 = arith.constant 0 : i32
    %5 = arith.cmpi eq, %arg0, %c0_i32 : i32
    %6 = arith.extui %5 : i1 to i32
    %c0_i32_0 = arith.constant 0 : i32
    %7 = arith.cmpi ne, %6, %c0_i32_0 : i32
    scf.if %7 {
      %c0_74 = arith.constant 0 : index
      %c0_75 = arith.constant 0 : index
      %227 = vector.load %arg1[%c0_74, %c0_75] : memref<32x128xf32, #tpu.memory_space<vmem>>, vector<32x128xf32>
      %c0_76 = arith.constant 0 : index
      %c0_77 = arith.constant 0 : index
      %228 = vector.load %arg2[%c0_76, %c0_77] : memref<32x1xf32, #tpu.memory_space<vmem>>, vector<32x1xf32>
      %cst_78 = arith.constant 1.000000e+00 : f32
      %229 = vector.broadcast %cst_78 : f32 to vector<32x1xf32>
      %230 = arith.subf %229, %228 : vector<32x1xf32>
      %231 = vector.broadcast %230 : vector<32x1xf32> to vector<32x128xf32>
      %232 = arith.mulf %227, %231 : vector<32x128xf32>
      %233 = arith.truncf %232 : vector<32x128xf32> to vector<32x128xbf16>
      %c0_79 = arith.constant 0 : index
      %c0_80 = arith.constant 0 : index
      %234 = vector.load %arg4[%c0_79, %c0_80] : memref<128x128xbf16, #tpu.memory_space<vmem>>, vector<128x128xbf16>
      %cst_81 = arith.constant dense<0.000000e+00> : vector<32x128xf32>
      %235 = tpu.matmul %233, %234, %cst_81 {dimension_numbers = #tpu.dot_dimension_numbers<[1], [0], [0], [1], [0, 0, 1, 1], [], []>} : vector<32x128xbf16>, vector<128x128xbf16>, vector<32x128xf32> -> vector<32x128xf32>
      %c0_82 = arith.constant 0 : index
      %c0_83 = arith.constant 0 : index
      %236 = vector.load %arg5[%c0_82, %c0_83] : memref<1x128xf32, #tpu.memory_space<vmem>>, vector<1x128xf32>
      %237 = vector.broadcast %236 : vector<1x128xf32> to vector<32x128xf32>
      %238 = arith.addf %235, %237 : vector<32x128xf32>
      %c0_84 = arith.constant 0 : index
      %c0_85 = arith.constant 0 : index
      %239 = vector.load %arg20[%c0_84, %c0_85] : memref<32x128xf32, #tpu.memory_space<vmem>>, vector<32x128xf32>
      tpu.vector_store %arg20[%c0_84, %c0_85], %238 {strides = array<i32>} : memref<32x128xf32, #tpu.memory_space<vmem>>, vector<32x128xf32>,
      %cst_86 = arith.constant 0.000000e+00 : f32
      %c0_87 = arith.constant 0 : index
      %c0_88 = arith.constant 0 : index
      %240 = memref.load %arg19[%c0_87, %c0_88] : memref<1x1xf32, #tpu.memory_space<smem>>
      memref.store %cst_86, %arg19[%c0_87, %c0_88] : memref<1x1xf32, #tpu.memory_space<smem>>
    } else {
    }
    %c0 = arith.constant 0 : index
    %c0_1 = arith.constant 0 : index
    %8 = vector.load %arg20[%c0, %c0_1] : memref<32x128xf32, #tpu.memory_space<vmem>>, vector<32x128xf32>
    %c0_2 = arith.constant 0 : index
    %c0_3 = arith.constant 0 : index
    %c0_4 = arith.constant 0 : index
    %9 = vector.load %arg14[%c0_2, %c0_3, %c0_4] : memref<1x4x128xf32, #tpu.memory_space<vmem>>, vector<1x4x128xf32>
    %10 = vector.shape_cast %9 : vector<1x4x128xf32> to vector<4x128xf32>
    %11 = vector.extract_strided_slice %10 {offsets = [0, 0], sizes = [1, 128], strides = [1, 1]} : vector<4x128xf32> to vector<1x128xf32>
    %12 = vector.extract_strided_slice %10 {offsets = [1, 0], sizes = [1, 128], strides = [1, 1]} : vector<4x128xf32> to vector<1x128xf32>
    %13 = vector.extract_strided_slice %10 {offsets = [2, 0], sizes = [1, 128], strides = [1, 1]} : vector<4x128xf32> to vector<1x128xf32>
    %14 = vector.extract_strided_slice %10 {offsets = [3, 0], sizes = [1, 128], strides = [1, 1]} : vector<4x128xf32> to vector<1x128xf32>
    %15 = arith.truncf %8 : vector<32x128xf32> to vector<32x128xbf16>
    %c0_5 = arith.constant 0 : index
    %c0_6 = arith.constant 0 : index
    %c0_7 = arith.constant 0 : index
    %16 = vector.load %arg6[%c0_5, %c0_6, %c0_7] : memref<1x128x384xbf16, #tpu.memory_space<vmem>>, vector<1x128x384xbf16>
    %17 = vector.shape_cast %16 : vector<1x128x384xbf16> to vector<128x384xbf16>
    %cst = arith.constant dense<0.000000e+00> : vector<32x384xf32>
    %18 = tpu.matmul %15, %17, %cst {dimension_numbers = #tpu.dot_dimension_numbers<[1], [0], [0], [1], [0, 0, 1, 1], [], []>} : vector<32x128xbf16>, vector<128x384xbf16>, vector<32x384xf32> -> vector<32x384xf32>
    %c0_8 = arith.constant 0 : index
    %c0_9 = arith.constant 0 : index
    %c0_10 = arith.constant 0 : index
    %19 = vector.load %arg7[%c0_8, %c0_9, %c0_10] : memref<1x1x384xf32, #tpu.memory_space<vmem>>, vector<1x1x384xf32>
    %20 = vector.shape_cast %19 : vector<1x1x384xf32> to vector<1x384xf32>
    %21 = vector.broadcast %20 : vector<1x384xf32> to vector<32x384xf32>
    %22 = arith.addf %18, %21 : vector<32x384xf32>
    %23 = vector.extract_strided_slice %22 {offsets = [0, 0], sizes = [32, 128], strides = [1, 1]} : vector<32x384xf32> to vector<32x128xf32>
    %24 = vector.extract_strided_slice %22 {offsets = [0, 128], sizes = [32, 128], strides = [1, 1]} : vector<32x384xf32> to vector<32x128xf32>
    %25 = vector.extract_strided_slice %22 {offsets = [0, 256], sizes = [32, 128], strides = [1, 1]} : vector<32x384xf32> to vector<32x128xf32>
    %c0_11 = arith.constant 0 : index
    %c0_12 = arith.constant 0 : index
    %26 = vector.load %arg3[%c0_11, %c0_12] : memref<32x32xf32, #tpu.memory_space<vmem>>, vector<32x32xf32>
    %27 = arith.truncf %23 : vector<32x128xf32> to vector<32x128xbf16>
    %28 = arith.truncf %24 : vector<32x128xf32> to vector<32x128xbf16>
    %29 = arith.truncf %25 : vector<32x128xf32> to vector<32x128xbf16>
    %cst_13 = arith.constant 0.000000e+00 : f32
    %30 = vector.broadcast %cst_13 : f32 to vector<32x128xf32>
    %c0_i32_14 = arith.constant 0 : i32
    %31 = vector.broadcast %c0_i32_14 : i32 to vector<1x128xi32>
    %32 = arith.cmpi sge, %0, %31 : vector<1x128xi32>
    %c8_i32 = arith.constant 8 : i32
    %33 = vector.broadcast %c8_i32 : i32 to vector<1x128xi32>
    %34 = arith.cmpi slt, %0, %33 : vector<1x128xi32>
    %35 = arith.andi %32, %34 : vector<1x128xi1>
    %36 = arith.extui %35 : vector<1x128xi1> to vector<1x128xi32>
    %37 = arith.sitofp %36 : vector<1x128xi32> to vector<1x128xf32>
    %38 = arith.truncf %37 : vector<1x128xf32> to vector<1x128xbf16>
    %39 = vector.broadcast %38 : vector<1x128xbf16> to vector<32x128xbf16>
    %40 = arith.mulf %27, %39 : vector<32x128xbf16>
    %41 = vector.broadcast %38 : vector<1x128xbf16> to vector<32x128xbf16>
    %42 = arith.mulf %29, %41 : vector<32x128xbf16>
    %cst_15 = arith.constant dense<0.000000e+00> : vector<32x32xf32>
    %43 = tpu.matmul %40, %28, %cst_15 {dimension_numbers = #tpu.dot_dimension_numbers<[1], [1], [0], [0], [0, 0, 1, 0], [], []>} : vector<32x128xbf16>, vector<32x128xbf16>, vector<32x32xf32> -> vector<32x32xf32>
    %cst_16 = arith.constant 0.353553385 : f32
    %44 = vector.broadcast %cst_16 : f32 to vector<32x32xf32>
    %45 = arith.mulf %43, %44 : vector<32x32xf32>
    %46 = arith.addf %45, %26 : vector<32x32xf32>
    %cst_17 = arith.constant dense<0xFF800000> : vector<32xf32>
    %47 = vector.multi_reduction <maximumf>, %46, %cst_17 [1] : vector<32x32xf32> to vector<32xf32>
    %48 = vector.shape_cast %47 : vector<32xf32> to vector<32x1xf32>
    %49 = vector.broadcast %48 : vector<32x1xf32> to vector<32x32xf32>
    %50 = arith.subf %46, %49 : vector<32x32xf32>
    %51 = math.exp %50 : vector<32x32xf32>
    %cst_18 = arith.constant dense<0.000000e+00> : vector<32xf32>
    %52 = vector.multi_reduction <add>, %51, %cst_18 [1] : vector<32x32xf32> to vector<32xf32>
    %53 = vector.shape_cast %52 : vector<32xf32> to vector<32x1xf32>
    %54 = tpu.reciprocal %53 {approx = true} : vector<32x1xf32> -> vector<32x1xf32>
    %55 = vector.broadcast %54 : vector<32x1xf32> to vector<32x32xf32>
    %56 = arith.mulf %51, %55 : vector<32x32xf32>
    %57 = arith.truncf %56 : vector<32x32xf32> to vector<32x32xbf16>
    %cst_19 = arith.constant dense<0.000000e+00> : vector<32x128xf32>
    %58 = tpu.matmul %57, %42, %cst_19 {dimension_numbers = #tpu.dot_dimension_numbers<[1], [0], [0], [1], [0, 0, 1, 1], [], []>} : vector<32x32xbf16>, vector<32x128xbf16>, vector<32x128xf32> -> vector<32x128xf32>
    %59 = arith.addf %30, %58 : vector<32x128xf32>
    %c8_i32_20 = arith.constant 8 : i32
    %60 = vector.broadcast %c8_i32_20 : i32 to vector<1x128xi32>
    %61 = arith.cmpi sge, %0, %60 : vector<1x128xi32>
    %c16_i32 = arith.constant 16 : i32
    %62 = vector.broadcast %c16_i32 : i32 to vector<1x128xi32>
    %63 = arith.cmpi slt, %0, %62 : vector<1x128xi32>
    %64 = arith.andi %61, %63 : vector<1x128xi1>
    %65 = arith.extui %64 : vector<1x128xi1> to vector<1x128xi32>
    %66 = arith.sitofp %65 : vector<1x128xi32> to vector<1x128xf32>
    %67 = arith.truncf %66 : vector<1x128xf32> to vector<1x128xbf16>
    %68 = vector.broadcast %67 : vector<1x128xbf16> to vector<32x128xbf16>
    %69 = arith.mulf %27, %68 : vector<32x128xbf16>
    %70 = vector.broadcast %67 : vector<1x128xbf16> to vector<32x128xbf16>
    %71 = arith.mulf %29, %70 : vector<32x128xbf16>
    %cst_21 = arith.constant dense<0.000000e+00> : vector<32x32xf32>
    %72 = tpu.matmul %69, %28, %cst_21 {dimension_numbers = #tpu.dot_dimension_numbers<[1], [1], [0], [0], [0, 0, 1, 0], [], []>} : vector<32x128xbf16>, vector<32x128xbf16>, vector<32x32xf32> -> vector<32x32xf32>
    %cst_22 = arith.constant 0.353553385 : f32
    %73 = vector.broadcast %cst_22 : f32 to vector<32x32xf32>
    %74 = arith.mulf %72, %73 : vector<32x32xf32>
    %75 = arith.addf %74, %26 : vector<32x32xf32>
    %cst_23 = arith.constant dense<0xFF800000> : vector<32xf32>
    %76 = vector.multi_reduction <maximumf>, %75, %cst_23 [1] : vector<32x32xf32> to vector<32xf32>
    %77 = vector.shape_cast %76 : vector<32xf32> to vector<32x1xf32>
    %78 = vector.broadcast %77 : vector<32x1xf32> to vector<32x32xf32>
    %79 = arith.subf %75, %78 : vector<32x32xf32>
    %80 = math.exp %79 : vector<32x32xf32>
    %cst_24 = arith.constant dense<0.000000e+00> : vector<32xf32>
    %81 = vector.multi_reduction <add>, %80, %cst_24 [1] : vector<32x32xf32> to vector<32xf32>
    %82 = vector.shape_cast %81 : vector<32xf32> to vector<32x1xf32>
    %83 = tpu.reciprocal %82 {approx = true} : vector<32x1xf32> -> vector<32x1xf32>
    %84 = vector.broadcast %83 : vector<32x1xf32> to vector<32x32xf32>
    %85 = arith.mulf %80, %84 : vector<32x32xf32>
    %86 = arith.truncf %85 : vector<32x32xf32> to vector<32x32xbf16>
    %cst_25 = arith.constant dense<0.000000e+00> : vector<32x128xf32>
    %87 = tpu.matmul %86, %71, %cst_25 {dimension_numbers = #tpu.dot_dimension_numbers<[1], [0], [0], [1], [0, 0, 1, 1], [], []>} : vector<32x32xbf16>, vector<32x128xbf16>, vector<32x128xf32> -> vector<32x128xf32>
    %88 = arith.addf %59, %87 : vector<32x128xf32>
    %c16_i32_26 = arith.constant 16 : i32
    %89 = vector.broadcast %c16_i32_26 : i32 to vector<1x128xi32>
    %90 = arith.cmpi sge, %0, %89 : vector<1x128xi32>
    %c24_i32 = arith.constant 24 : i32
    %91 = vector.broadcast %c24_i32 : i32 to vector<1x128xi32>
    %92 = arith.cmpi slt, %0, %91 : vector<1x128xi32>
    %93 = arith.andi %90, %92 : vector<1x128xi1>
    %94 = arith.extui %93 : vector<1x128xi1> to vector<1x128xi32>
    %95 = arith.sitofp %94 : vector<1x128xi32> to vector<1x128xf32>
    %96 = arith.truncf %95 : vector<1x128xf32> to vector<1x128xbf16>
    %97 = vector.broadcast %96 : vector<1x128xbf16> to vector<32x128xbf16>
    %98 = arith.mulf %27, %97 : vector<32x128xbf16>
    %99 = vector.broadcast %96 : vector<1x128xbf16> to vector<32x128xbf16>
    %100 = arith.mulf %29, %99 : vector<32x128xbf16>
    %cst_27 = arith.constant dense<0.000000e+00> : vector<32x32xf32>
    %101 = tpu.matmul %98, %28, %cst_27 {dimension_numbers = #tpu.dot_dimension_numbers<[1], [1], [0], [0], [0, 0, 1, 0], [], []>} : vector<32x128xbf16>, vector<32x128xbf16>, vector<32x32xf32> -> vector<32x32xf32>
    %cst_28 = arith.constant 0.353553385 : f32
    %102 = vector.broadcast %cst_28 : f32 to vector<32x32xf32>
    %103 = arith.mulf %101, %102 : vector<32x32xf32>
    %104 = arith.addf %103, %26 : vector<32x32xf32>
    %cst_29 = arith.constant dense<0xFF800000> : vector<32xf32>
    %105 = vector.multi_reduction <maximumf>, %104, %cst_29 [1] : vector<32x32xf32> to vector<32xf32>
    %106 = vector.shape_cast %105 : vector<32xf32> to vector<32x1xf32>
    %107 = vector.broadcast %106 : vector<32x1xf32> to vector<32x32xf32>
    %108 = arith.subf %104, %107 : vector<32x32xf32>
    %109 = math.exp %108 : vector<32x32xf32>
    %cst_30 = arith.constant dense<0.000000e+00> : vector<32xf32>
    %110 = vector.multi_reduction <add>, %109, %cst_30 [1] : vector<32x32xf32> to vector<32xf32>
    %111 = vector.shape_cast %110 : vector<32xf32> to vector<32x1xf32>
    %112 = tpu.reciprocal %111 {approx = true} : vector<32x1xf32> -> vector<32x1xf32>
    %113 = vector.broadcast %112 : vector<32x1xf32> to vector<32x32xf32>
    %114 = arith.mulf %109, %113 : vector<32x32xf32>
    %115 = arith.truncf %114 : vector<32x32xf32> to vector<32x32xbf16>
    %cst_31 = arith.constant dense<0.000000e+00> : vector<32x128xf32>
    %116 = tpu.matmul %115, %100, %cst_31 {dimension_numbers = #tpu.dot_dimension_numbers<[1], [0], [0], [1], [0, 0, 1, 1], [], []>} : vector<32x32xbf16>, vector<32x128xbf16>, vector<32x128xf32> -> vector<32x128xf32>
    %117 = arith.addf %88, %116 : vector<32x128xf32>
    %c24_i32_32 = arith.constant 24 : i32
    %118 = vector.broadcast %c24_i32_32 : i32 to vector<1x128xi32>
    %119 = arith.cmpi sge, %0, %118 : vector<1x128xi32>
    %c32_i32_33 = arith.constant 32 : i32
    %120 = vector.broadcast %c32_i32_33 : i32 to vector<1x128xi32>
    %121 = arith.cmpi slt, %0, %120 : vector<1x128xi32>
    %122 = arith.andi %119, %121 : vector<1x128xi1>
    %123 = arith.extui %122 : vector<1x128xi1> to vector<1x128xi32>
    %124 = arith.sitofp %123 : vector<1x128xi32> to vector<1x128xf32>
    %125 = arith.truncf %124 : vector<1x128xf32> to vector<1x128xbf16>
    %126 = vector.broadcast %125 : vector<1x128xbf16> to vector<32x128xbf16>
    %127 = arith.mulf %27, %126 : vector<32x128xbf16>
    %128 = vector.broadcast %125 : vector<1x128xbf16> to vector<32x128xbf16>
    %129 = arith.mulf %29, %128 : vector<32x128xbf16>
    %cst_34 = arith.constant dense<0.000000e+00> : vector<32x32xf32>
    %130 = tpu.matmul %127, %28, %cst_34 {dimension_numbers = #tpu.dot_dimension_numbers<[1], [1], [0], [0], [0, 0, 1, 0], [], []>} : vector<32x128xbf16>, vector<32x128xbf16>, vector<32x32xf32> -> vector<32x32xf32>
    %cst_35 = arith.constant 0.353553385 : f32
    %131 = vector.broadcast %cst_35 : f32 to vector<32x32xf32>
    %132 = arith.mulf %130, %131 : vector<32x32xf32>
    %133 = arith.addf %132, %26 : vector<32x32xf32>
    %cst_36 = arith.constant dense<0xFF800000> : vector<32xf32>
    %134 = vector.multi_reduction <maximumf>, %133, %cst_36 [1] : vector<32x32xf32> to vector<32xf32>
    %135 = vector.shape_cast %134 : vector<32xf32> to vector<32x1xf32>
    %136 = vector.broadcast %135 : vector<32x1xf32> to vector<32x32xf32>
    %137 = arith.subf %133, %136 : vector<32x32xf32>
    %138 = math.exp %137 : vector<32x32xf32>
    %cst_37 = arith.constant dense<0.000000e+00> : vector<32xf32>
    %139 = vector.multi_reduction <add>, %138, %cst_37 [1] : vector<32x32xf32> to vector<32xf32>
    %140 = vector.shape_cast %139 : vector<32xf32> to vector<32x1xf32>
    %141 = tpu.reciprocal %140 {approx = true} : vector<32x1xf32> -> vector<32x1xf32>
    %142 = vector.broadcast %141 : vector<32x1xf32> to vector<32x32xf32>
    %143 = arith.mulf %138, %142 : vector<32x32xf32>
    %144 = arith.truncf %143 : vector<32x32xf32> to vector<32x32xbf16>
    %cst_38 = arith.constant dense<0.000000e+00> : vector<32x128xf32>
    %145 = tpu.matmul %144, %129, %cst_38 {dimension_numbers = #tpu.dot_dimension_numbers<[1], [0], [0], [1], [0, 0, 1, 1], [], []>} : vector<32x32xbf16>, vector<32x128xbf16>, vector<32x128xf32> -> vector<32x128xf32>
    %146 = arith.addf %117, %145 : vector<32x128xf32>
    %147 = arith.truncf %146 : vector<32x128xf32> to vector<32x128xbf16>
    %c0_39 = arith.constant 0 : index
    %c0_40 = arith.constant 0 : index
    %c0_41 = arith.constant 0 : index
    %148 = vector.load %arg8[%c0_39, %c0_40, %c0_41] : memref<1x128x128xbf16, #tpu.memory_space<vmem>>, vector<1x128x128xbf16>
    %149 = vector.shape_cast %148 : vector<1x128x128xbf16> to vector<128x128xbf16>
    %cst_42 = arith.constant dense<0.000000e+00> : vector<32x128xf32>
    %150 = tpu.matmul %147, %149, %cst_42 {dimension_numbers = #tpu.dot_dimension_numbers<[1], [0], [0], [1], [0, 0, 1, 1], [], []>} : vector<32x128xbf16>, vector<128x128xbf16>, vector<32x128xf32> -> vector<32x128xf32>
    %c0_43 = arith.constant 0 : index
    %c0_44 = arith.constant 0 : index
    %c0_45 = arith.constant 0 : index
    %151 = vector.load %arg9[%c0_43, %c0_44, %c0_45] : memref<1x1x128xf32, #tpu.memory_space<vmem>>, vector<1x1x128xf32>
    %152 = vector.shape_cast %151 : vector<1x1x128xf32> to vector<1x128xf32>
    %153 = vector.broadcast %152 : vector<1x128xf32> to vector<32x128xf32>
    %154 = arith.addf %150, %153 : vector<32x128xf32>
    %155 = arith.addf %8, %154 : vector<32x128xf32>
    %156 = vector.broadcast %4 : vector<1x128xf32> to vector<32x128xf32>
    %157 = arith.mulf %155, %156 : vector<32x128xf32>
    %cst_46 = arith.constant dense<0.000000e+00> : vector<32xf32>
    %158 = vector.multi_reduction <add>, %157, %cst_46 [1] : vector<32x128xf32> to vector<32xf32>
    %159 = vector.shape_cast %158 : vector<32xf32> to vector<32x1xf32>
    %cst_47 = arith.constant 3.125000e-02 : f32
    %160 = vector.broadcast %cst_47 : f32 to vector<32x1xf32>
    %161 = arith.mulf %159, %160 : vector<32x1xf32>
    %162 = vector.broadcast %161 : vector<32x1xf32> to vector<32x128xf32>
    %163 = arith.subf %155, %162 : vector<32x128xf32>
    %164 = vector.broadcast %4 : vector<1x128xf32> to vector<32x128xf32>
    %165 = arith.mulf %163, %164 : vector<32x128xf32>
    %166 = arith.mulf %165, %165 : vector<32x128xf32>
    %cst_48 = arith.constant dense<0.000000e+00> : vector<32xf32>
    %167 = vector.multi_reduction <add>, %166, %cst_48 [1] : vector<32x128xf32> to vector<32xf32>
    %168 = vector.shape_cast %167 : vector<32xf32> to vector<32x1xf32>
    %cst_49 = arith.constant 3.125000e-02 : f32
    %169 = vector.broadcast %cst_49 : f32 to vector<32x1xf32>
    %170 = arith.mulf %168, %169 : vector<32x1xf32>
    %cst_50 = arith.constant 9.99999974E-6 : f32
    %171 = vector.broadcast %cst_50 : f32 to vector<32x1xf32>
    %172 = arith.addf %170, %171 : vector<32x1xf32>
    %173 = math.rsqrt %172 : vector<32x1xf32>
    %174 = vector.broadcast %173 : vector<32x1xf32> to vector<32x128xf32>
    %175 = arith.mulf %165, %174 : vector<32x128xf32>
    %176 = vector.broadcast %11 : vector<1x128xf32> to vector<32x128xf32>
    %177 = arith.mulf %175, %176 : vector<32x128xf32>
    %178 = vector.broadcast %12 : vector<1x128xf32> to vector<32x128xf32>
    %179 = arith.addf %177, %178 : vector<32x128xf32>
    %180 = arith.truncf %179 : vector<32x128xf32> to vector<32x128xbf16>
    %c0_51 = arith.constant 0 : index
    %c0_52 = arith.constant 0 : index
    %c0_53 = arith.constant 0 : index
    %181 = vector.load %arg10[%c0_51, %c0_52, %c0_53] : memref<1x128x128xbf16, #tpu.memory_space<vmem>>, vector<1x128x128xbf16>
    %182 = vector.shape_cast %181 : vector<1x128x128xbf16> to vector<128x128xbf16>
    %cst_54 = arith.constant dense<0.000000e+00> : vector<32x128xf32>
    %183 = tpu.matmul %180, %182, %cst_54 {dimension_numbers = #tpu.dot_dimension_numbers<[1], [0], [0], [1], [0, 0, 1, 1], [], []>} : vector<32x128xbf16>, vector<128x128xbf16>, vector<32x128xf32> -> vector<32x128xf32>
    %c0_55 = arith.constant 0 : index
    %c0_56 = arith.constant 0 : index
    %c0_57 = arith.constant 0 : index
    %184 = vector.load %arg11[%c0_55, %c0_56, %c0_57] : memref<1x1x128xf32, #tpu.memory_space<vmem>>, vector<1x1x128xf32>
    %185 = vector.shape_cast %184 : vector<1x1x128xf32> to vector<1x128xf32>
    %186 = vector.broadcast %185 : vector<1x128xf32> to vector<32x128xf32>
    %187 = arith.addf %183, %186 : vector<32x128xf32>
    %cst_58 = arith.constant 0.000000e+00 : f32
    %188 = vector.broadcast %cst_58 : f32 to vector<32x128xf32>
    %189 = arith.maximumf %187, %188 : vector<32x128xf32>
    %190 = arith.truncf %189 : vector<32x128xf32> to vector<32x128xbf16>
    %c0_59 = arith.constant 0 : index
    %c0_60 = arith.constant 0 : index
    %c0_61 = arith.constant 0 : index
    %191 = vector.load %arg12[%c0_59, %c0_60, %c0_61] : memref<1x128x128xbf16, #tpu.memory_space<vmem>>, vector<1x128x128xbf16>
    %192 = vector.shape_cast %191 : vector<1x128x128xbf16> to vector<128x128xbf16>
    %cst_62 = arith.constant dense<0.000000e+00> : vector<32x128xf32>
    %193 = tpu.matmul %190, %192, %cst_62 {dimension_numbers = #tpu.dot_dimension_numbers<[1], [0], [0], [1], [0, 0, 1, 1], [], []>} : vector<32x128xbf16>, vector<128x128xbf16>, vector<32x128xf32> -> vector<32x128xf32>
    %c0_63 = arith.constant 0 : index
    %c0_64 = arith.constant 0 : index
    %c0_65 = arith.constant 0 : index
    %194 = vector.load %arg13[%c0_63, %c0_64, %c0_65] : memref<1x1x128xf32, #tpu.memory_space<vmem>>, vector<1x1x128xf32>
    %195 = vector.shape_cast %194 : vector<1x1x128xf32> to vector<1x128xf32>
    %196 = vector.broadcast %195 : vector<1x128xf32> to vector<32x128xf32>
    %197 = arith.addf %193, %196 : vector<32x128xf32>
    %198 = arith.addf %179, %197 : vector<32x128xf32>
    %199 = vector.broadcast %4 : vector<1x128xf32> to vector<32x128xf32>
    %200 = arith.mulf %198, %199 : vector<32x128xf32>
    %cst_66 = arith.constant dense<0.000000e+00> : vector<32xf32>
    %201 = vector.multi_reduction <add>, %200, %cst_66 [1] : vector<32x128xf32> to vector<32xf32>
    %202 = vector.shape_cast %201 : vector<32xf32> to vector<32x1xf32>
    %cst_67 = arith.constant 3.125000e-02 : f32
    %203 = vector.broadcast %cst_67 : f32 to vector<32x1xf32>
    %204 = arith.mulf %202, %203 : vector<32x1xf32>
    %205 = vector.broadcast %204 : vector<32x1xf32> to vector<32x128xf32>
    %206 = arith.subf %198, %205 : vector<32x128xf32>
    %207 = vector.broadcast %4 : vector<1x128xf32> to vector<32x128xf32>
    %208 = arith.mulf %206, %207 : vector<32x128xf32>
    %209 = arith.mulf %208, %208 : vector<32x128xf32>
    %cst_68 = arith.constant dense<0.000000e+00> : vector<32xf32>
    %210 = vector.multi_reduction <add>, %209, %cst_68 [1] : vector<32x128xf32> to vector<32xf32>
    %211 = vector.shape_cast %210 : vector<32xf32> to vector<32x1xf32>
    %cst_69 = arith.constant 3.125000e-02 : f32
    %212 = vector.broadcast %cst_69 : f32 to vector<32x1xf32>
    %213 = arith.mulf %211, %212 : vector<32x1xf32>
    %cst_70 = arith.constant 9.99999974E-6 : f32
    %214 = vector.broadcast %cst_70 : f32 to vector<32x1xf32>
    %215 = arith.addf %213, %214 : vector<32x1xf32>
    %216 = math.rsqrt %215 : vector<32x1xf32>
    %217 = vector.broadcast %216 : vector<32x1xf32> to vector<32x128xf32>
    %218 = arith.mulf %208, %217 : vector<32x128xf32>
    %219 = vector.broadcast %13 : vector<1x128xf32> to vector<32x128xf32>
    %220 = arith.mulf %218, %219 : vector<32x128xf32>
    %221 = vector.broadcast %14 : vector<1x128xf32> to vector<32x128xf32>
    %222 = arith.addf %220, %221 : vector<32x128xf32>
    %c0_71 = arith.constant 0 : index
    %c0_72 = arith.constant 0 : index
    %223 = vector.load %arg20[%c0_71, %c0_72] : memref<32x128xf32, #tpu.memory_space<vmem>>, vector<32x128xf32>
    tpu.vector_store %arg20[%c0_71, %c0_72], %222 {strides = array<i32>} : memref<32x128xf32, #tpu.memory_space<vmem>>, vector<32x128xf32>,
    %c1_i32 = arith.constant 1 : i32
    %224 = arith.cmpi eq, %arg0, %c1_i32 : i32
    %225 = arith.extui %224 : i1 to i32
    %c0_i32_73 = arith.constant 0 : i32
    %226 = arith.cmpi ne, %225, %c0_i32_73 : i32
    scf.if %226 {
      %227 = arith.truncf %222 : vector<32x128xf32> to vector<32x128xbf16>
      %c0_74 = arith.constant 0 : index
      %c0_75 = arith.constant 0 : index
      %228 = vector.load %arg15[%c0_74, %c0_75] : memref<128x128xbf16, #tpu.memory_space<vmem>>, vector<128x128xbf16>
      %cst_76 = arith.constant dense<0.000000e+00> : vector<32x128xf32>
      %229 = tpu.matmul %227, %228, %cst_76 {dimension_numbers = #tpu.dot_dimension_numbers<[1], [0], [0], [1], [0, 0, 1, 1], [], []>} : vector<32x128xbf16>, vector<128x128xbf16>, vector<32x128xf32> -> vector<32x128xf32>
      %c0_77 = arith.constant 0 : index
      %c0_78 = arith.constant 0 : index
      %230 = vector.load %arg16[%c0_77, %c0_78] : memref<1x128xf32, #tpu.memory_space<vmem>>, vector<1x128xf32>
      %231 = vector.broadcast %230 : vector<1x128xf32> to vector<32x128xf32>
      %232 = arith.addf %229, %231 : vector<32x128xf32>
      %233 = tpu.iota {dimensions = array<i32: 1>} : vector<32x128xi32>
      %c32_i32_79 = arith.constant 32 : i32
      %234 = vector.broadcast %c32_i32_79 : i32 to vector<32x128xi32>
      %235 = arith.cmpi slt, %233, %234 : vector<32x128xi32>
      %cst_80 = arith.constant -1.000000e+30 : f32
      %236 = vector.broadcast %cst_80 : f32 to vector<32x128xf32>
      %237 = arith.select %235, %232, %236 : vector<32x128xi1>, vector<32x128xf32>
      %cst_81 = arith.constant dense<0xFF800000> : vector<32xf32>
      %238 = vector.multi_reduction <maximumf>, %237, %cst_81 [1] : vector<32x128xf32> to vector<32xf32>
      %239 = vector.shape_cast %238 : vector<32xf32> to vector<32x1xf32>
      %240 = vector.broadcast %239 : vector<32x1xf32> to vector<32x128xf32>
      %241 = arith.subf %237, %240 : vector<32x128xf32>
      %242 = math.exp %241 : vector<32x128xf32>
      %cst_82 = arith.constant dense<0.000000e+00> : vector<32xf32>
      %243 = vector.multi_reduction <add>, %242, %cst_82 [1] : vector<32x128xf32> to vector<32xf32>
      %244 = vector.shape_cast %243 : vector<32xf32> to vector<32x1xf32>
      %245 = math.log %244 : vector<32x1xf32>
      %246 = arith.addf %245, %239 : vector<32x1xf32>
      %c0_83 = arith.constant 0 : index
      %c0_84 = arith.constant 0 : index
      %247 = vector.load %arg17[%c0_83, %c0_84] : memref<32x1xi32, #tpu.memory_space<vmem>>, vector<32x1xi32>
      %248 = vector.broadcast %247 : vector<32x1xi32> to vector<32x128xi32>
      %249 = arith.cmpi eq, %233, %248 : vector<32x128xi32>
      %250 = arith.extui %249 : vector<32x128xi1> to vector<32x128xi32>
      %251 = arith.sitofp %250 : vector<32x128xi32> to vector<32x128xf32>
      %252 = arith.mulf %237, %251 : vector<32x128xf32>
      %cst_85 = arith.constant dense<0.000000e+00> : vector<32xf32>
      %253 = vector.multi_reduction <add>, %252, %cst_85 [1] : vector<32x128xf32> to vector<32xf32>
      %254 = vector.shape_cast %253 : vector<32xf32> to vector<32x1xf32>
      %255 = arith.subf %246, %254 : vector<32x1xf32>
      %c0_86 = arith.constant 0 : index
      %c0_87 = arith.constant 0 : index
      %256 = vector.load %arg18[%c0_86, %c0_87] : memref<32x1xf32, #tpu.memory_space<vmem>>, vector<32x1xf32>
      %257 = arith.mulf %255, %256 : vector<32x1xf32>
      %258 = vector.shape_cast %257 : vector<32x1xf32> to vector<1x32x1xf32>
      %cst_88 = arith.constant dense<0.000000e+00> : vector<1xf32>
      %259 = vector.multi_reduction <add>, %258, %cst_88 [1, 2] : vector<1x32x1xf32> to vector<1xf32>
      %260 = vector.shape_cast %259 : vector<1xf32> to vector<1x1x1xf32>
      %261 = vector.extract %260[0, 0, 0] : f32 from vector<1x1x1xf32>
      %262 = vector.shape_cast %256 : vector<32x1xf32> to vector<1x32x1xf32>
      %cst_89 = arith.constant dense<0.000000e+00> : vector<1xf32>
      %263 = vector.multi_reduction <add>, %262, %cst_89 [1, 2] : vector<1x32x1xf32> to vector<1xf32>
      %264 = vector.shape_cast %263 : vector<1xf32> to vector<1x1x1xf32>
      %265 = vector.extract %264[0, 0, 0] : f32 from vector<1x1x1xf32>
      %cst_90 = arith.constant 1.000000e+00 : f32
      %266 = arith.maximumf %265, %cst_90 : f32
      %267 = arith.divf %261, %266 : f32
      %c0_91 = arith.constant 0 : index
      %c0_92 = arith.constant 0 : index
      %268 = memref.load %arg19[%c0_91, %c0_92] : memref<1x1xf32, #tpu.memory_space<smem>>
      memref.store %267, %arg19[%c0_91, %c0_92] : memref<1x1xf32, #tpu.memory_space<smem>>
    } else {
    }
    return
  }
  func.func @transform_0(%arg0: i32) -> (i32, i32) {
    %c0_i32 = arith.constant 0 : i32
    %c0_i32_0 = arith.constant 0 : i32
    %c0_i32_1 = arith.constant 0 : i32
    return %c0_i32, %c0_i32_0 : i32, i32
  }
  func.func @transform_1(%arg0: i32) -> (i32, i32) {
    %c0_i32 = arith.constant 0 : i32
    %c0_i32_0 = arith.constant 0 : i32
    %c0_i32_1 = arith.constant 0 : i32
    return %c0_i32, %c0_i32_0 : i32, i32
  }
  func.func @transform_2(%arg0: i32) -> (i32, i32) {
    %c0_i32 = arith.constant 0 : i32
    %c0_i32_0 = arith.constant 0 : i32
    %c0_i32_1 = arith.constant 0 : i32
    return %c0_i32, %c0_i32_0 : i32, i32
  }
  func.func @transform_3(%arg0: i32) -> (i32, i32) {
    %c0_i32 = arith.constant 0 : i32
    %c0_i32_0 = arith.constant 0 : i32
    %c0_i32_1 = arith.constant 0 : i32
    return %c0_i32, %c0_i32_0 : i32, i32
  }
  func.func @transform_4(%arg0: i32) -> (i32, i32) {
    %c0_i32 = arith.constant 0 : i32
    %c0_i32_0 = arith.constant 0 : i32
    %c0_i32_1 = arith.constant 0 : i32
    return %c0_i32, %c0_i32_0 : i32, i32
  }
  func.func @transform_5(%arg0: i32) -> (i32, i32, i32) {
    %c0_i32 = arith.constant 0 : i32
    %c0_i32_0 = arith.constant 0 : i32
    %c0_i32_1 = arith.constant 0 : i32
    return %arg0, %c0_i32, %c0_i32_0 : i32, i32, i32
  }
  func.func @transform_6(%arg0: i32) -> (i32, i32, i32) {
    %c0_i32 = arith.constant 0 : i32
    %c0_i32_0 = arith.constant 0 : i32
    %c0_i32_1 = arith.constant 0 : i32
    return %arg0, %c0_i32, %c0_i32_0 : i32, i32, i32
  }
  func.func @transform_7(%arg0: i32) -> (i32, i32, i32) {
    %c0_i32 = arith.constant 0 : i32
    %c0_i32_0 = arith.constant 0 : i32
    %c0_i32_1 = arith.constant 0 : i32
    return %arg0, %c0_i32, %c0_i32_0 : i32, i32, i32
  }
  func.func @transform_8(%arg0: i32) -> (i32, i32, i32) {
    %c0_i32 = arith.constant 0 : i32
    %c0_i32_0 = arith.constant 0 : i32
    %c0_i32_1 = arith.constant 0 : i32
    return %arg0, %c0_i32, %c0_i32_0 : i32, i32, i32
  }
  func.func @transform_9(%arg0: i32) -> (i32, i32, i32) {
    %c0_i32 = arith.constant 0 : i32
    %c0_i32_0 = arith.constant 0 : i32
    %c0_i32_1 = arith.constant 0 : i32
    return %arg0, %c0_i32, %c0_i32_0 : i32, i32, i32
  }
  func.func @transform_10(%arg0: i32) -> (i32, i32, i32) {
    %c0_i32 = arith.constant 0 : i32
    %c0_i32_0 = arith.constant 0 : i32
    %c0_i32_1 = arith.constant 0 : i32
    return %arg0, %c0_i32, %c0_i32_0 : i32, i32, i32
  }
  func.func @transform_11(%arg0: i32) -> (i32, i32, i32) {
    %c0_i32 = arith.constant 0 : i32
    %c0_i32_0 = arith.constant 0 : i32
    %c0_i32_1 = arith.constant 0 : i32
    return %arg0, %c0_i32, %c0_i32_0 : i32, i32, i32
  }
  func.func @transform_12(%arg0: i32) -> (i32, i32, i32) {
    %c0_i32 = arith.constant 0 : i32
    %c0_i32_0 = arith.constant 0 : i32
    %c0_i32_1 = arith.constant 0 : i32
    return %arg0, %c0_i32, %c0_i32_0 : i32, i32, i32
  }
  func.func @transform_13(%arg0: i32) -> (i32, i32, i32) {
    %c0_i32 = arith.constant 0 : i32
    %c0_i32_0 = arith.constant 0 : i32
    %c0_i32_1 = arith.constant 0 : i32
    return %arg0, %c0_i32, %c0_i32_0 : i32, i32, i32
  }
  func.func @transform_14(%arg0: i32) -> (i32, i32) {
    %c0_i32 = arith.constant 0 : i32
    %c0_i32_0 = arith.constant 0 : i32
    %c0_i32_1 = arith.constant 0 : i32
    return %c0_i32, %c0_i32_0 : i32, i32
  }
  func.func @transform_15(%arg0: i32) -> (i32, i32) {
    %c0_i32 = arith.constant 0 : i32
    %c0_i32_0 = arith.constant 0 : i32
    %c0_i32_1 = arith.constant 0 : i32
    return %c0_i32, %c0_i32_0 : i32, i32
  }
  func.func @transform_16(%arg0: i32) -> (i32, i32) {
    %c0_i32 = arith.constant 0 : i32
    %c0_i32_0 = arith.constant 0 : i32
    %c0_i32_1 = arith.constant 0 : i32
    return %c0_i32, %c0_i32_0 : i32, i32
  }
  func.func @transform_17(%arg0: i32) -> (i32, i32) {
    %c0_i32 = arith.constant 0 : i32
    %c0_i32_0 = arith.constant 0 : i32
    %c0_i32_1 = arith.constant 0 : i32
    return %c0_i32, %c0_i32_0 : i32, i32
  }
  func.func @transform_18(%arg0: i32) -> (i32, i32) {
    %c0_i32 = arith.constant 0 : i32
    %c0_i32_0 = arith.constant 0 : i32
    %c0_i32_1 = arith.constant 0 : i32
    return %c0_i32, %c0_i32_0 : i32, i32
  }
}

</mosaic_0001>

<llo_original>
// kernel: hubert_forward.1
$region0: #{hubert_forward.1}
  #allocation0 [shape = 'u32[]', space=smem, size = 0x4, offset = 0x4, fixed_abs, tag = 'smem constant byte address 0x4 - core index']
  #allocation1 [shape = 'u32[144,128]{1,0:T(1,128)}', space=vmem, size = 0x12000, scoped, tag = 'internal scratch']
  #allocation2 [shape = 'f32[32,128]{1,0:T(8,128)}', space=vmem, size = 0x4000, scoped, tag = 'scratch operand']
  %s0 = inlined_call_operand.vmem [shape: f32[32,128], index: 0, kind: input, shape index: {}]
  %s1 = inlined_call_operand.vmem [shape: f32[32,1], index: 1, kind: input, shape index: {}]
  %s2 = inlined_call_operand.vmem [shape: f32[32,32], index: 2, kind: input, shape index: {}]
  %s3 = inlined_call_operand.vmem [shape: bf16[128,128], index: 3, kind: input, shape index: {}]
  %s4 = inlined_call_operand.vmem [shape: f32[1,128], index: 4, kind: input, shape index: {}]
  %s5 = inlined_call_operand.hbm [shape: bf16[2,128,384], index: 5, kind: input, shape index: {}]
  %s6 = inlined_call_operand.vmem [shape: f32[2,1,384], index: 6, kind: input, shape index: {}]
  %s7 = inlined_call_operand.vmem [shape: bf16[2,128,128], index: 7, kind: input, shape index: {}]
  %s8 = inlined_call_operand.vmem [shape: f32[2,1,128], index: 8, kind: input, shape index: {}]
  %s9 = inlined_call_operand.vmem [shape: bf16[2,128,128], index: 9, kind: input, shape index: {}]
  %s10 = inlined_call_operand.vmem [shape: f32[2,1,128], index: 10, kind: input, shape index: {}]
  %s11 = inlined_call_operand.hbm [shape: bf16[2,128,128], index: 11, kind: input, shape index: {}]
  %s12 = inlined_call_operand.vmem [shape: f32[2,1,128], index: 12, kind: input, shape index: {}]
  %s13 = inlined_call_operand.vmem [shape: f32[2,4,128], index: 13, kind: input, shape index: {}]
  %s14 = inlined_call_operand.hbm [shape: bf16[128,128], index: 14, kind: input, shape index: {}]
  %s15 = inlined_call_operand.hbm [shape: f32[1,128], index: 15, kind: input, shape index: {}]
  %s16 = inlined_call_operand.vmem [shape: s32[32,1], index: 16, kind: input, shape index: {}]
  %s17 = inlined_call_operand.vmem [shape: f32[32,1], index: 17, kind: input, shape index: {}]
  %s18 = inlined_call_operand.hbm [shape: f32[1,1], index: 18, kind: output, shape index: {}]
  %s19 = sld [smem:[#allocation0]]
  $region129: #{hubert_forward.1} parent=0
    _
  %s21 = ssub.s32 1, %s19
  %s22 = scalar_select 0, %s21, %s19
  $region1: #{hubert_forward.1} parent=0
    #allocation3 [shape = 'u8[196608]{0}', space=vmem, size = 0x30000, scoped, tag = 'input window, operand 5']
    #allocation4 [shape = 's32[2]{0}', space=sflag, size = 0x8, scoped, tag = 'scoped memory for hubert_forward.1']
    #allocation5 [shape = 's32[2]{0}', space=sflag, size = 0x8, scoped, tag = 'scoped memory for hubert_forward.1']
    #allocation6 [shape = 'u8[65536]{0}', space=vmem, size = 0x10000, scoped, tag = 'input window, operand 11']
    #allocation7 [shape = 's32[2]{0}', space=sflag, size = 0x8, scoped, tag = 'scoped memory for hubert_forward.1']
    #allocation8 [shape = 'u8[32768]{0}', space=vmem, size = 0x8000, scoped, tag = 'input window, operand 14, single buffered']
    #allocation9 [shape = 'u8[512]{0}', space=vmem, size = 0x400, scoped, tag = 'input window, operand 15, single buffered']
    #allocation10 [shape = 's32[1]{0}', space=sflag, size = 0x4, scoped, tag = 'scoped memory for hubert_forward.1']
    #allocation11 [shape = 'u8[512]{0}', space=smem, size = 0x200, scoped, tag = 'output window, operand 0, single buffered']
    %23 = vsyncpa [#allocation4], 0
    %s24 = scalar_lea.sflag [#allocation4], 1
    %25 = vsyncpa %s24, 0
    %26 = vsyncpa [#allocation7], 0
    %s27 = scalar_lea.sflag [#allocation7], 1
    %28 = vsyncpa %s27, 0
    %29 = vsyncpa [#allocation10], 0
    %30 = vsyncpa [#allocation5], 0
    loop: start=0, step=1, limit=4
    $region2: #{hubert_forward.1} parent=1 // loop_pre_header
      _
    $region3: #{hubert_forward.1} parent=1 // loop_header
      %s32 = sphi 0, %s36
      %p33 = scmp.ge.s32.totalorder %s32, 4
      %s40 = sphi 0, %s40
      %s42 = sphi 0, %s40
      %s43 = sphi 0, %s42
      %s57 = sphi 0, %s43
      %s61 = sphi 0, %s61
      %s63 = sphi 0, %s61
      %s64 = sphi 0, %s63
      %s78 = sphi 0, %s64
      %s82 = sphi 0, %s82
      %s84 = sphi 0, %s82
      %s85 = sphi 0, %s84
      %s99 = sphi 0, %s85
      %s103 = sphi 0, %s103
      %s105 = sphi 0, %s103
      %s106 = sphi 0, %s105
      %s120 = sphi 0, %s106
      %s124 = sphi 0, %s124
      %s126 = sphi 0, %s124
      %s127 = sphi 0, %s126
      %s141 = sphi 0, %s127
      %s147 = sphi 0, %s149
      %s150 = sphi 0, %s147
      %s151 = sphi 0, %s150
      %s167 = sphi 0, %s151
      %s173 = sphi 0, %s175
      %s176 = sphi 0, %s173
      %s177 = sphi 0, %s176
      %s193 = sphi 0, %s177
      %s199 = sphi 0, %s201
      %s202 = sphi 0, %s199
      %s203 = sphi 0, %s202
      %s219 = sphi 0, %s203
      %s225 = sphi 0, %s227
      %s228 = sphi 0, %s225
      %s229 = sphi 0, %s228
      %s245 = sphi 0, %s229
      %s251 = sphi 0, %s253
      %s254 = sphi 0, %s251
      %s255 = sphi 0, %s254
      %s271 = sphi 0, %s255
      %s277 = sphi 0, %s279
      %s280 = sphi 0, %s277
      %s281 = sphi 0, %s280
      %s297 = sphi 0, %s281
      %s303 = sphi 0, %s305
      %s306 = sphi 0, %s303
      %s307 = sphi 0, %s306
      %s323 = sphi 0, %s307
      %s329 = sphi 0, %s331
      %s332 = sphi 0, %s329
      %s333 = sphi 0, %s332
      %s349 = sphi 0, %s333
      %s355 = sphi 0, %s357
      %s358 = sphi 0, %s355
      %s359 = sphi 0, %s358
      %s375 = sphi 0, %s359
      %s379 = sphi 0, %s379
      %s381 = sphi 0, %s379
      %s382 = sphi 0, %s381
      %s396 = sphi 0, %s382
      %s400 = sphi 0, %s400
      %s402 = sphi 0, %s400
      %s403 = sphi 0, %s402
      %s417 = sphi 0, %s403
      %s421 = sphi 0, %s421
      %s423 = sphi 0, %s421
      %s424 = sphi 0, %s423
      %s438 = sphi 0, %s424
      %s442 = sphi 0, %s442
      %s444 = sphi 0, %s442
      %s445 = sphi 0, %s444
      %s459 = sphi 0, %s445
      %s463 = sphi 0, %s463
      %s465 = sphi 0, %s463
      %s466 = sphi 0, %s465
      %s480 = sphi 0, %s466
    $region4: #{hubert_forward.1} parent=1 // loop_header_branch
      %35 = sbr.rel (%p33) target = $region8
    $region5: #{hubert_forward.1} parent=1 // loop_body
      %s37 = ssub.s32 %s32, 1
      %s38 = ssub.s32 %s32, 2
      %s39 = sadd.s32 %s32, 1
      %s41 = sadd.s32 %s40, 1
      %p44 = scmp.eq.s32.totalorder %s32, 1
      %p45 = scmp.ne.s32.totalorder %s40, %s42
      %p46 = scmp.eq.s32.totalorder %s32, 0
      %p47 = por %p45, %p46
      %p48 = scmp.ne.s32.totalorder %s40, %s42
      %p49 = scmp.eq.s32.totalorder %s37, 1
      %p50 = por %p48, %p49
      %p51 = scmp.ne.s32.totalorder %s42, %s43
      %p52 = scmp.eq.s32.totalorder %s37, 0
      %p53 = por %p51, %p52
      %p54 = scmp.ne.s32.totalorder %s42, %s43
      %p55 = scmp.eq.s32.totalorder %s38, 1
      %p56 = por %p54, %p55
      %p58 = scmp.ne.s32.totalorder %s43, %s57
      %p59 = scmp.eq.s32.totalorder %s38, 0
      %p60 = por %p58, %p59
      %s62 = sadd.s32 %s61, 1
      %p65 = scmp.eq.s32.totalorder %s32, 1
      %p66 = scmp.ne.s32.totalorder %s61, %s63
      %p67 = scmp.eq.s32.totalorder %s32, 0
      %p68 = por %p66, %p67
      %p69 = scmp.ne.s32.totalorder %s61, %s63
      %p70 = scmp.eq.s32.totalorder %s37, 1
      %p71 = por %p69, %p70
      %p72 = scmp.ne.s32.totalorder %s63, %s64
      %p73 = scmp.eq.s32.totalorder %s37, 0
      %p74 = por %p72, %p73
      %p75 = scmp.ne.s32.totalorder %s63, %s64
      %p76 = scmp.eq.s32.totalorder %s38, 1
      %p77 = por %p75, %p76
      %p79 = scmp.ne.s32.totalorder %s64, %s78
      %p80 = scmp.eq.s32.totalorder %s38, 0
      %p81 = por %p79, %p80
      %s83 = sadd.s32 %s82, 1
      %p86 = scmp.eq.s32.totalorder %s32, 1
      %p87 = scmp.ne.s32.totalorder %s82, %s84
      %p88 = scmp.eq.s32.totalorder %s32, 0
      %p89 = por %p87, %p88
      %p90 = scmp.ne.s32.totalorder %s82, %s84
      %p91 = scmp.eq.s32.totalorder %s37, 1
      %p92 = por %p90, %p91
      %p93 = scmp.ne.s32.totalorder %s84, %s85
      %p94 = scmp.eq.s32.totalorder %s37, 0
      %p95 = por %p93, %p94
      %p96 = scmp.ne.s32.totalorder %s84, %s85
      %p97 = scmp.eq.s32.totalorder %s38, 1
      %p98 = por %p96, %p97
      %p100 = scmp.ne.s32.totalorder %s85, %s99
      %p101 = scmp.eq.s32.totalorder %s38, 0
      %p102 = por %p100, %p101
      %s104 = sadd.s32 %s103, 1
      %p107 = scmp.eq.s32.totalorder %s32, 1
      %p108 = scmp.ne.s32.totalorder %s103, %s105
      %p109 = scmp.eq.s32.totalorder %s32, 0
      %p110 = por %p108, %p109
      %p111 = scmp.ne.s32.totalorder %s103, %s105
      %p112 = scmp.eq.s32.totalorder %s37, 1
      %p113 = por %p111, %p112
      %p114 = scmp.ne.s32.totalorder %s105, %s106
      %p115 = scmp.eq.s32.totalorder %s37, 0
      %p116 = por %p114, %p115
      %p117 = scmp.ne.s32.totalorder %s105, %s106
      %p118 = scmp.eq.s32.totalorder %s38, 1
      %p119 = por %p117, %p118
      %p121 = scmp.ne.s32.totalorder %s106, %s120
      %p122 = scmp.eq.s32.totalorder %s38, 0
      %p123 = por %p121, %p122
      %s125 = sadd.s32 %s124, 1
      %p128 = scmp.eq.s32.totalorder %s32, 1
      %p129 = scmp.ne.s32.totalorder %s124, %s126
      %p130 = scmp.eq.s32.totalorder %s32, 0
      %p131 = por %p129, %p130
      %p132 = scmp.ne.s32.totalorder %s124, %s126
      %p133 = scmp.eq.s32.totalorder %s37, 1
      %p134 = por %p132, %p133
      %p135 = scmp.ne.s32.totalorder %s126, %s127
      %p136 = scmp.eq.s32.totalorder %s37, 0
      %p137 = por %p135, %p136
      %p138 = scmp.ne.s32.totalorder %s126, %s127
      %p139 = scmp.eq.s32.totalorder %s38, 1
      %p140 = por %p138, %p139
      %p142 = scmp.ne.s32.totalorder %s127, %s141
      %p143 = scmp.eq.s32.totalorder %s38, 0
      %p144 = por %p142, %p143
      %s145 = ssub.s32 %s32, %s39
      %p146 = scmp.eq.s32.totalorder %s145, 0
      %s148 = sadd.s32 %s147, 1
      %s149 = scalar_select %p146, %s147, %s148
      %p152 = pneg %p146
      %p153 = scmp.eq.s32.totalorder %s32, 1
      %p154 = por %p152, %p153
      %p155 = scmp.ne.s32.totalorder %s147, %s150
      %p156 = scmp.eq.s32.totalorder %s32, 0
      %p157 = por %p155, %p156
      %p158 = scmp.ne.s32.totalorder %s147, %s150
      %p159 = scmp.eq.s32.totalorder %s37, 1
      %p160 = por %p158, %p159
      %p161 = scmp.ne.s32.totalorder %s150, %s151
      %p162 = scmp.eq.s32.totalorder %s37, 0
      %p163 = por %p161, %p162
      %p164 = scmp.ne.s32.totalorder %s150, %s151
      %p165 = scmp.eq.s32.totalorder %s38, 1
      %p166 = por %p164, %p165
      %p168 = scmp.ne.s32.totalorder %s151, %s167
      %p169 = scmp.eq.s32.totalorder %s38, 0
      %p170 = por %p168, %p169
      %s171 = ssub.s32 %s32, %s39
      %p172 = scmp.eq.s32.totalorder %s171, 0
      %s174 = sadd.s32 %s173, 1
      %s175 = scalar_select %p172, %s173, %s174
      %p178 = pneg %p172
      %p179 = scmp.eq.s32.totalorder %s32, 1
      %p180 = por %p178, %p179
      %p181 = scmp.ne.s32.totalorder %s173, %s176
      %p182 = scmp.eq.s32.totalorder %s32, 0
      %p183 = por %p181, %p182
      %p184 = scmp.ne.s32.totalorder %s173, %s176
      %p185 = scmp.eq.s32.totalorder %s37, 1
      %p186 = por %p184, %p185
      %p187 = scmp.ne.s32.totalorder %s176, %s177
      %p188 = scmp.eq.s32.totalorder %s37, 0
      %p189 = por %p187, %p188
      %p190 = scmp.ne.s32.totalorder %s176, %s177
      %p191 = scmp.eq.s32.totalorder %s38, 1
      %p192 = por %p190, %p191
      %p194 = scmp.ne.s32.totalorder %s177, %s193
      %p195 = scmp.eq.s32.totalorder %s38, 0
      %p196 = por %p194, %p195
      %s197 = ssub.s32 %s32, %s39
      %p198 = scmp.eq.s32.totalorder %s197, 0
      %s200 = sadd.s32 %s199, 1
      %s201 = scalar_select %p198, %s199, %s200
      %p204 = pneg %p198
      %p205 = scmp.eq.s32.totalorder %s32, 1
      %p206 = por %p204, %p205
      %p207 = scmp.ne.s32.totalorder %s199, %s202
      %p208 = scmp.eq.s32.totalorder %s32, 0
      %p209 = por %p207, %p208
      %p210 = scmp.ne.s32.totalorder %s199, %s202
      %p211 = scmp.eq.s32.totalorder %s37, 1
      %p212 = por %p210, %p211
      %p213 = scmp.ne.s32.totalorder %s202, %s203
      %p214 = scmp.eq.s32.totalorder %s37, 0
      %p215 = por %p213, %p214
      %p216 = scmp.ne.s32.totalorder %s202, %s203
      %p217 = scmp.eq.s32.totalorder %s38, 1
      %p218 = por %p216, %p217
      %p220 = scmp.ne.s32.totalorder %s203, %s219
      %p221 = scmp.eq.s32.totalorder %s38, 0
      %p222 = por %p220, %p221
      %s223 = ssub.s32 %s32, %s39
      %p224 = scmp.eq.s32.totalorder %s223, 0
      %s226 = sadd.s32 %s225, 1
      %s227 = scalar_select %p224, %s225, %s226
      %p230 = pneg %p224
      %p231 = scmp.eq.s32.totalorder %s32, 1
      %p232 = por %p230, %p231
      %p233 = scmp.ne.s32.totalorder %s225, %s228
      %p234 = scmp.eq.s32.totalorder %s32, 0
      %p235 = por %p233, %p234
      %p236 = scmp.ne.s32.totalorder %s225, %s228
      %p237 = scmp.eq.s32.totalorder %s37, 1
      %p238 = por %p236, %p237
      %p239 = scmp.ne.s32.totalorder %s228, %s229
      %p240 = scmp.eq.s32.totalorder %s37, 0
      %p241 = por %p239, %p240
      %p242 = scmp.ne.s32.totalorder %s228, %s229
      %p243 = scmp.eq.s32.totalorder %s38, 1
      %p244 = por %p242, %p243
      %p246 = scmp.ne.s32.totalorder %s229, %s245
      %p247 = scmp.eq.s32.totalorder %s38, 0
      %p248 = por %p246, %p247
      %s249 = ssub.s32 %s32, %s39
      %p250 = scmp.eq.s32.totalorder %s249, 0
      %s252 = sadd.s32 %s251, 1
      %s253 = scalar_select %p250, %s251, %s252
      %p256 = pneg %p250
      %p257 = scmp.eq.s32.totalorder %s32, 1
      %p258 = por %p256, %p257
      %p259 = scmp.ne.s32.totalorder %s251, %s254
      %p260 = scmp.eq.s32.totalorder %s32, 0
      %p261 = por %p259, %p260
      %p262 = scmp.ne.s32.totalorder %s251, %s254
      %p263 = scmp.eq.s32.totalorder %s37, 1
      %p264 = por %p262, %p263
      %p265 = scmp.ne.s32.totalorder %s254, %s255
      %p266 = scmp.eq.s32.totalorder %s37, 0
      %p267 = por %p265, %p266
      %p268 = scmp.ne.s32.totalorder %s254, %s255
      %p269 = scmp.eq.s32.totalorder %s38, 1
      %p270 = por %p268, %p269
      %p272 = scmp.ne.s32.totalorder %s255, %s271
      %p273 = scmp.eq.s32.totalorder %s38, 0
      %p274 = por %p272, %p273
      %s275 = ssub.s32 %s32, %s39
      %p276 = scmp.eq.s32.totalorder %s275, 0
      %s278 = sadd.s32 %s277, 1
      %s279 = scalar_select %p276, %s277, %s278
      %p282 = pneg %p276
      %p283 = scmp.eq.s32.totalorder %s32, 1
      %p284 = por %p282, %p283
      %p285 = scmp.ne.s32.totalorder %s277, %s280
      %p286 = scmp.eq.s32.totalorder %s32, 0
      %p287 = por %p285, %p286
      %p288 = scmp.ne.s32.totalorder %s277, %s280
      %p289 = scmp.eq.s32.totalorder %s37, 1
      %p290 = por %p288, %p289
      %p291 = scmp.ne.s32.totalorder %s280, %s281
      %p292 = scmp.eq.s32.totalorder %s37, 0
      %p293 = por %p291, %p292
      %p294 = scmp.ne.s32.totalorder %s280, %s281
      %p295 = scmp.eq.s32.totalorder %s38, 1
      %p296 = por %p294, %p295
      %p298 = scmp.ne.s32.totalorder %s281, %s297
      %p299 = scmp.eq.s32.totalorder %s38, 0
      %p300 = por %p298, %p299
      %s301 = ssub.s32 %s32, %s39
      %p302 = scmp.eq.s32.totalorder %s301, 0
      %s304 = sadd.s32 %s303, 1
      %s305 = scalar_select %p302, %s303, %s304
      %p308 = pneg %p302
      %p309 = scmp.eq.s32.totalorder %s32, 1
      %p310 = por %p308, %p309
      %p311 = scmp.ne.s32.totalorder %s303, %s306
      %p312 = scmp.eq.s32.totalorder %s32, 0
      %p313 = por %p311, %p312
      %p314 = scmp.ne.s32.totalorder %s303, %s306
      %p315 = scmp.eq.s32.totalorder %s37, 1
      %p316 = por %p314, %p315
      %p317 = scmp.ne.s32.totalorder %s306, %s307
      %p318 = scmp.eq.s32.totalorder %s37, 0
      %p319 = por %p317, %p318
      %p320 = scmp.ne.s32.totalorder %s306, %s307
      %p321 = scmp.eq.s32.totalorder %s38, 1
      %p322 = por %p320, %p321
      %p324 = scmp.ne.s32.totalorder %s307, %s323
      %p325 = scmp.eq.s32.totalorder %s38, 0
      %p326 = por %p324, %p325
      %s327 = ssub.s32 %s32, %s39
      %p328 = scmp.eq.s32.totalorder %s327, 0
      %s330 = sadd.s32 %s329, 1
      %s331 = scalar_select %p328, %s329, %s330
      %p334 = pneg %p328
      %p335 = scmp.eq.s32.totalorder %s32, 1
      %p336 = por %p334, %p335
      %p337 = scmp.ne.s32.totalorder %s329, %s332
      %p338 = scmp.eq.s32.totalorder %s32, 0
      %p339 = por %p337, %p338
      %p340 = scmp.ne.s32.totalorder %s329, %s332
      %p341 = scmp.eq.s32.totalorder %s37, 1
      %p342 = por %p340, %p341
      %p343 = scmp.ne.s32.totalorder %s332, %s333
      %p344 = scmp.eq.s32.totalorder %s37, 0
      %p345 = por %p343, %p344
      %p346 = scmp.ne.s32.totalorder %s332, %s333
      %p347 = scmp.eq.s32.totalorder %s38, 1
      %p348 = por %p346, %p347
      %p350 = scmp.ne.s32.totalorder %s333, %s349
      %p351 = scmp.eq.s32.totalorder %s38, 0
      %p352 = por %p350, %p351
      %s353 = ssub.s32 %s32, %s39
      %p354 = scmp.eq.s32.totalorder %s353, 0
      %s356 = sadd.s32 %s355, 1
      %s357 = scalar_select %p354, %s355, %s356
      %p360 = pneg %p354
      %p361 = scmp.eq.s32.totalorder %s32, 1
      %p362 = por %p360, %p361
      %p363 = scmp.ne.s32.totalorder %s355, %s358
      %p364 = scmp.eq.s32.totalorder %s32, 0
      %p365 = por %p363, %p364
      %p366 = scmp.ne.s32.totalorder %s355, %s358
      %p367 = scmp.eq.s32.totalorder %s37, 1
      %p368 = por %p366, %p367
      %p369 = scmp.ne.s32.totalorder %s358, %s359
      %p370 = scmp.eq.s32.totalorder %s37, 0
      %p371 = por %p369, %p370
      %p372 = scmp.ne.s32.totalorder %s358, %s359
      %p373 = scmp.eq.s32.totalorder %s38, 1
      %p374 = por %p372, %p373
      %p376 = scmp.ne.s32.totalorder %s359, %s375
      %p377 = scmp.eq.s32.totalorder %s38, 0
      %p378 = por %p376, %p377
      %s380 = sadd.s32 %s379, 1
      %p383 = scmp.eq.s32.totalorder %s32, 1
      %p384 = scmp.ne.s32.totalorder %s379, %s381
      %p385 = scmp.eq.s32.totalorder %s32, 0
      %p386 = por %p384, %p385
      %p387 = scmp.ne.s32.totalorder %s379, %s381
      %p388 = scmp.eq.s32.totalorder %s37, 1
      %p389 = por %p387, %p388
      %p390 = scmp.ne.s32.totalorder %s381, %s382
      %p391 = scmp.eq.s32.totalorder %s37, 0
      %p392 = por %p390, %p391
      %p393 = scmp.ne.s32.totalorder %s381, %s382
      %p394 = scmp.eq.s32.totalorder %s38, 1
      %p395 = por %p393, %p394
      %p397 = scmp.ne.s32.totalorder %s382, %s396
      %p398 = scmp.eq.s32.totalorder %s38, 0
      %p399 = por %p397, %p398
      %s401 = sadd.s32 %s400, 1
      %p404 = scmp.eq.s32.totalorder %s32, 1
      %p405 = scmp.ne.s32.totalorder %s400, %s402
      %p406 = scmp.eq.s32.totalorder %s32, 0
      %p407 = por %p405, %p406
      %p408 = scmp.ne.s32.totalorder %s400, %s402
      %p409 = scmp.eq.s32.totalorder %s37, 1
      %p410 = por %p408, %p409
      %p411 = scmp.ne.s32.totalorder %s402, %s403
      %p412 = scmp.eq.s32.totalorder %s37, 0
      %p413 = por %p411, %p412
      %p414 = scmp.ne.s32.totalorder %s402, %s403
      %p415 = scmp.eq.s32.totalorder %s38, 1
      %p416 = por %p414, %p415
      %p418 = scmp.ne.s32.totalorder %s403, %s417
      %p419 = scmp.eq.s32.totalorder %s38, 0
      %p420 = por %p418, %p419
      %s422 = sadd.s32 %s421, 1
      %p425 = scmp.eq.s32.totalorder %s32, 1
      %p426 = scmp.ne.s32.totalorder %s421, %s423
      %p427 = scmp.eq.s32.totalorder %s32, 0
      %p428 = por %p426, %p427
      %p429 = scmp.ne.s32.totalorder %s421, %s423
      %p430 = scmp.eq.s32.totalorder %s37, 1
      %p431 = por %p429, %p430
      %p432 = scmp.ne.s32.totalorder %s423, %s424
      %p433 = scmp.eq.s32.totalorder %s37, 0
      %p434 = por %p432, %p433
      %p435 = scmp.ne.s32.totalorder %s423, %s424
      %p436 = scmp.eq.s32.totalorder %s38, 1
      %p437 = por %p435, %p436
      %p439 = scmp.ne.s32.totalorder %s424, %s438
      %p440 = scmp.eq.s32.totalorder %s38, 0
      %p441 = por %p439, %p440
      %s443 = sadd.s32 %s442, 1
      %p446 = scmp.eq.s32.totalorder %s32, 1
      %p447 = scmp.ne.s32.totalorder %s442, %s444
      %p448 = scmp.eq.s32.totalorder %s32, 0
      %p449 = por %p447, %p448
      %p450 = scmp.ne.s32.totalorder %s442, %s444
      %p451 = scmp.eq.s32.totalorder %s37, 1
      %p452 = por %p450, %p451
      %p453 = scmp.ne.s32.totalorder %s444, %s445
      %p454 = scmp.eq.s32.totalorder %s37, 0
      %p455 = por %p453, %p454
      %p456 = scmp.ne.s32.totalorder %s444, %s445
      %p457 = scmp.eq.s32.totalorder %s38, 1
      %p458 = por %p456, %p457
      %p460 = scmp.ne.s32.totalorder %s445, %s459
      %p461 = scmp.eq.s32.totalorder %s38, 0
      %p462 = por %p460, %p461
      %s464 = sadd.s32 %s463, 1
      %p467 = scmp.eq.s32.totalorder %s32, 1
      %p468 = scmp.ne.s32.totalorder %s463, %s465
      %p469 = scmp.eq.s32.totalorder %s32, 0
      %p470 = por %p468, %p469
      %p471 = scmp.ne.s32.totalorder %s463, %s465
      %p472 = scmp.eq.s32.totalorder %s37, 1
      %p473 = por %p471, %p472
      %p474 = scmp.ne.s32.totalorder %s465, %s466
      %p475 = scmp.eq.s32.totalorder %s37, 0
      %p476 = por %p474, %p475
      %p477 = scmp.ne.s32.totalorder %s465, %s466
      %p478 = scmp.eq.s32.totalorder %s38, 1
      %p479 = por %p477, %p478
      %p481 = scmp.ne.s32.totalorder %s466, %s480
      %p482 = scmp.eq.s32.totalorder %s38, 0
      %p483 = por %p481, %p482
      %p484 = scmp.le.s32.totalorder 1, %s32
      %p485 = scmp.lt.s32.totalorder %s32, 3
      %p486 = pnand %p484, %p485
      %p487 = pneg %p486
      // Predicated region
      $region9: #{hubert_forward.1} parent=5 // pred_check
        _
      $region10: #{hubert_forward.1} parent=5 // pred_check_branch
        %489 = sbr.rel (%p486) target = $region12
      $region11: #{hubert_forward.1} parent=5 // pred_region
        %s490 = ssub.s32 %s32, 1
        // Predicated region
        $region13: #{hubert_forward.1} parent=11 // pred_check
          %p491 = pneg %p53
        $region14: #{hubert_forward.1} parent=11 // pred_check_branch
          %493 = sbr.rel (%p491) target = $region16
        $region15: #{hubert_forward.1} parent=11 // pred_region
          _
        $region16: #{hubert_forward.1} parent=11 // pred_fallthru
          _
        // Predicated region
        $region17: #{hubert_forward.1} parent=11 // pred_check
          %p494 = pneg %p74
        $region18: #{hubert_forward.1} parent=11 // pred_check_branch
          %496 = sbr.rel (%p494) target = $region20
        $region19: #{hubert_forward.1} parent=11 // pred_region
          _
        $region20: #{hubert_forward.1} parent=11 // pred_fallthru
          _
        // Predicated region
        $region21: #{hubert_forward.1} parent=11 // pred_check
          %p497 = pneg %p95
        $region22: #{hubert_forward.1} parent=11 // pred_check_branch
          %499 = sbr.rel (%p497) target = $region24
        $region23: #{hubert_forward.1} parent=11 // pred_region
          _
        $region24: #{hubert_forward.1} parent=11 // pred_fallthru
          _
        // Predicated region
        $region25: #{hubert_forward.1} parent=11 // pred_check
          %p500 = pneg %p116
        $region26: #{hubert_forward.1} parent=11 // pred_check_branch
          %502 = sbr.rel (%p500) target = $region28
        $region27: #{hubert_forward.1} parent=11 // pred_region
          _
        $region28: #{hubert_forward.1} parent=11 // pred_fallthru
          _
        // Predicated region
        $region29: #{hubert_forward.1} parent=11 // pred_check
          %p503 = pneg %p137
        $region30: #{hubert_forward.1} parent=11 // pred_check_branch
          %505 = sbr.rel (%p503) target = $region32
        $region31: #{hubert_forward.1} parent=11 // pred_region
          _
        $region32: #{hubert_forward.1} parent=11 // pred_fallthru
          _
        // Predicated region
        $region33: #{hubert_forward.1} parent=11 // pred_check
          %p506 = pneg %p392
        $region34: #{hubert_forward.1} parent=11 // pred_check_branch
          %508 = sbr.rel (%p506) target = $region36
        $region35: #{hubert_forward.1} parent=11 // pred_region
          %s510 = ssub.s32 1024, 1024
          %511 = vsyncadd [#allocation7], %s510
          %s512 = sshll.u32 [#allocation8], 4
          %s513 = int_to_ptr.vmem [resolvable:$true] %s512
          %518 = dma.hbm_to_vmem [thread:$0]  %s14, 1024, %s513, [#allocation7], 64, 64, 4
        $region36: #{hubert_forward.1} parent=11 // pred_fallthru
          _
        // Predicated region
        $region37: #{hubert_forward.1} parent=11 // pred_check
          %p519 = pneg %p413
        $region38: #{hubert_forward.1} parent=11 // pred_check_branch
          %521 = sbr.rel (%p519) target = $region40
        $region39: #{hubert_forward.1} parent=11 // pred_region
          %s523 = ssub.s32 16, 16
          %524 = vsyncadd [#allocation10], %s523
          %s526 = sshll.u32 [#allocation9], 4
          %s527 = int_to_ptr.vmem [resolvable:$true] %s526
          %529 = dma.hbm_to_vmem [thread:$0]  %s15, 16, %s527, [#allocation10]
        $region40: #{hubert_forward.1} parent=11 // pred_fallthru
          _
        // Predicated region
        $region41: #{hubert_forward.1} parent=11 // pred_check
          %p530 = pneg %p434
        $region42: #{hubert_forward.1} parent=11 // pred_check_branch
          %532 = sbr.rel (%p530) target = $region44
        $region43: #{hubert_forward.1} parent=11 // pred_region
          _
        $region44: #{hubert_forward.1} parent=11 // pred_fallthru
          _
        // Predicated region
        $region45: #{hubert_forward.1} parent=11 // pred_check
          %p533 = pneg %p455
        $region46: #{hubert_forward.1} parent=11 // pred_check_branch
          %535 = sbr.rel (%p533) target = $region48
        $region47: #{hubert_forward.1} parent=11 // pred_region
          _
        $region48: #{hubert_forward.1} parent=11 // pred_fallthru
          _
      $region12: #{hubert_forward.1} parent=5 // pred_fallthru
        _
      %p536 = scmp.lt.s32.totalorder %s32, 2
      // Predicated region
      $region49: #{hubert_forward.1} parent=5 // pred_check
        %p537 = pneg %p536
      $region50: #{hubert_forward.1} parent=5 // pred_check_branch
        %539 = sbr.rel (%p537) target = $region52
      $region51: #{hubert_forward.1} parent=5 // pred_region
        // Predicated region
        $region53: #{hubert_forward.1} parent=51 // pred_check
          %p540 = pneg %p157
        $region54: #{hubert_forward.1} parent=51 // pred_check_branch
          %542 = sbr.rel (%p540) target = $region56
        $region55: #{hubert_forward.1} parent=51 // pred_region
          %s543 = sand.u32 %s147, 1
          %s544 = scalar_lea.sflag [#allocation4], %s543
          %s545 = sand.u32 %s147, 1
          %s546 = smul.addr %s545, 192
          %s547 = scalar_lea.vmem [#allocation3], %s546
          %s549 = ssub.s32 3072, 3072
          %550 = vsyncadd %s544, %s549
          %s551 = smul.addr %s32, 48
          %s552 = smul.addr %s551, 64
          %s553 = scalar_lea.hbm %s5, %s552
          %s554 = sshll.u32 %s547, 4
          %s555 = int_to_ptr.vmem [resolvable:$true] %s554
          %560 = dma.hbm_to_vmem [thread:$0]  %s553, 3072, %s555, %s544, 192, 192, 12
        $region56: #{hubert_forward.1} parent=51 // pred_fallthru
          _
        // Predicated region
        $region57: #{hubert_forward.1} parent=51 // pred_check
          %p561 = pneg %p183
        $region58: #{hubert_forward.1} parent=51 // pred_check_branch
          %563 = sbr.rel (%p561) target = $region60
        $region59: #{hubert_forward.1} parent=51 // pred_region
          %p564 = scmp.lt.s32.totalorder %s32, 1
          %s565 = scalar_select %p564, %s32, 1
          %s566 = smul.addr %s565, 3
          %s567 = scalar_lea.vmem %s6, %s566
        $region60: #{hubert_forward.1} parent=51 // pred_fallthru
          _
        // Predicated region
        $region61: #{hubert_forward.1} parent=51 // pred_check
          %p568 = pneg %p209
        $region62: #{hubert_forward.1} parent=51 // pred_check_branch
          %570 = sbr.rel (%p568) target = $region64
        $region63: #{hubert_forward.1} parent=51 // pred_region
          %p571 = scmp.lt.s32.totalorder %s32, 1
          %s572 = scalar_select %p571, %s32, 1
          %s573 = smul.addr %s572, 16
          %s574 = smul.addr %s573, 4
          %s575 = scalar_lea.vmem %s7, %s574
        $region64: #{hubert_forward.1} parent=51 // pred_fallthru
          _
        // Predicated region
        $region65: #{hubert_forward.1} parent=51 // pred_check
          %p576 = pneg %p235
        $region66: #{hubert_forward.1} parent=51 // pred_check_branch
          %578 = sbr.rel (%p576) target = $region68
        $region67: #{hubert_forward.1} parent=51 // pred_region
          %p579 = scmp.lt.s32.totalorder %s32, 1
          %s580 = scalar_select %p579, %s32, 1
          %s581 = scalar_lea.vmem %s8, %s580
        $region68: #{hubert_forward.1} parent=51 // pred_fallthru
          _
        // Predicated region
        $region69: #{hubert_forward.1} parent=51 // pred_check
          %p582 = pneg %p261
        $region70: #{hubert_forward.1} parent=51 // pred_check_branch
          %584 = sbr.rel (%p582) target = $region72
        $region71: #{hubert_forward.1} parent=51 // pred_region
          %p585 = scmp.lt.s32.totalorder %s32, 1
          %s586 = scalar_select %p585, %s32, 1
          %s587 = smul.addr %s586, 16
          %s588 = smul.addr %s587, 4
          %s589 = scalar_lea.vmem %s9, %s588
        $region72: #{hubert_forward.1} parent=51 // pred_fallthru
          _
        // Predicated region
        $region73: #{hubert_forward.1} parent=51 // pred_check
          %p590 = pneg %p287
        $region74: #{hubert_forward.1} parent=51 // pred_check_branch
          %592 = sbr.rel (%p590) target = $region76
        $region75: #{hubert_forward.1} parent=51 // pred_region
          %p593 = scmp.lt.s32.totalorder %s32, 1
          %s594 = scalar_select %p593, %s32, 1
          %s595 = scalar_lea.vmem %s10, %s594
        $region76: #{hubert_forward.1} parent=51 // pred_fallthru
          _
        // Predicated region
        $region77: #{hubert_forward.1} parent=51 // pred_check
          %p596 = pneg %p313
        $region78: #{hubert_forward.1} parent=51 // pred_check_branch
          %598 = sbr.rel (%p596) target = $region80
        $region79: #{hubert_forward.1} parent=51 // pred_region
          %s599 = sand.u32 %s32, 1
          %s600 = scalar_lea.sflag [#allocation7], %s599
          %s601 = sand.u32 %s303, 1
          %s602 = smul.addr %s601, 64
          %s603 = scalar_lea.vmem [#allocation6], %s602
          %s605 = ssub.s32 1024, 1024
          %606 = vsyncadd %s600, %s605
          %s607 = smul.addr %s32, 16
          %s608 = smul.addr %s607, 64
          %s609 = scalar_lea.hbm %s11, %s608
          %s610 = sshll.u32 %s603, 4
          %s611 = int_to_ptr.vmem [resolvable:$true] %s610
          %616 = dma.hbm_to_vmem [thread:$0]  %s609, 1024, %s611, %s600, 64, 64, 4
        $region80: #{hubert_forward.1} parent=51 // pred_fallthru
          _
        // Predicated region
        $region81: #{hubert_forward.1} parent=51 // pred_check
          %p617 = pneg %p339
        $region82: #{hubert_forward.1} parent=51 // pred_check_branch
          %619 = sbr.rel (%p617) target = $region84
        $region83: #{hubert_forward.1} parent=51 // pred_region
          %p620 = scmp.lt.s32.totalorder %s32, 1
          %s621 = scalar_select %p620, %s32, 1
          %s622 = scalar_lea.vmem %s12, %s621
        $region84: #{hubert_forward.1} parent=51 // pred_fallthru
          _
        // Predicated region
        $region85: #{hubert_forward.1} parent=51 // pred_check
          %p623 = pneg %p365
        $region86: #{hubert_forward.1} parent=51 // pred_check_branch
          %625 = sbr.rel (%p623) target = $region88
        $region87: #{hubert_forward.1} parent=51 // pred_region
          %p626 = scmp.lt.s32.totalorder %s32, 1
          %s627 = scalar_select %p626, %s32, 1
          %s628 = smul.addr %s627, 4
          %s629 = scalar_lea.vmem %s13, %s628
        $region88: #{hubert_forward.1} parent=51 // pred_fallthru
          _
      $region52: #{hubert_forward.1} parent=5 // pred_fallthru
        _
      %p630 = scmp.le.s32.totalorder 1, %s32
      %p631 = scmp.lt.s32.totalorder %s32, 3
      %p632 = pnand %p630, %p631
      %p633 = pneg %p632
      // Predicated region
      $region89: #{hubert_forward.1} parent=5 // pred_check
        _
      $region90: #{hubert_forward.1} parent=5 // pred_check_branch
        %635 = sbr.rel (%p632) target = $region92
      $region91: #{hubert_forward.1} parent=5 // pred_region
        %s636 = ssub.s32 %s32, 1
        %s637 = sand.u32 %s150, 1
        %s638 = scalar_lea.sflag [#allocation4], %s637
        %s639 = sand.u32 %s150, 1
        %s640 = smul.addr %s639, 192
        %s641 = scalar_lea.vmem [#allocation3], %s640
        // Predicated region
        $region93: #{hubert_forward.1} parent=91 // pred_check
          %p642 = pneg %p163
        $region94: #{hubert_forward.1} parent=91 // pred_check_branch
          %644 = sbr.rel (%p642) target = $region96
        $region95: #{hubert_forward.1} parent=91 // pred_region
          %645 = dma.done %s638, 3072
        $region96: #{hubert_forward.1} parent=91 // pred_fallthru
          _
        %s646 = sand.u32 %s37, 1
        %s647 = scalar_lea.sflag [#allocation7], %s646
        %s648 = sand.u32 %s306, 1
        %s649 = smul.addr %s648, 64
        %s650 = scalar_lea.vmem [#allocation6], %s649
        // Predicated region
        $region97: #{hubert_forward.1} parent=91 // pred_check
          %p651 = pneg %p319
        $region98: #{hubert_forward.1} parent=91 // pred_check_branch
          %653 = sbr.rel (%p651) target = $region100
        $region99: #{hubert_forward.1} parent=91 // pred_region
          %654 = dma.done %s647, 1024
        $region100: #{hubert_forward.1} parent=91 // pred_fallthru
          _
        // Predicated region
        $region101: #{hubert_forward.1} parent=91 // pred_check
          %p655 = pneg %p392
        $region102: #{hubert_forward.1} parent=91 // pred_check_branch
          %657 = sbr.rel (%p655) target = $region104
        $region103: #{hubert_forward.1} parent=91 // pred_region
          %658 = dma.done [#allocation7], 1024
        $region104: #{hubert_forward.1} parent=91 // pred_fallthru
          _
        // Predicated region
        $region105: #{hubert_forward.1} parent=91 // pred_check
          %p659 = pneg %p413
        $region106: #{hubert_forward.1} parent=91 // pred_check_branch
          %661 = sbr.rel (%p659) target = $region108
        $region107: #{hubert_forward.1} parent=91 // pred_region
          %662 = dma.done [#allocation10], 16
        $region108: #{hubert_forward.1} parent=91 // pred_fallthru
          _
        %p663 = pneg %p53
        %p664 = pneg %p50
        %p665 = pneg %p74
        %p666 = pneg %p71
        %p667 = pneg %p95
        %p668 = pneg %p92
        %p669 = pneg %p116
        %p670 = pneg %p113
        %p671 = pneg %p137
        %p672 = pneg %p134
        %s673 = sand.u32 %s150, 1
        %s674 = scalar_lea.sflag [#allocation4], %s673
        %s675 = sand.u32 %s150, 1
        %s676 = smul.addr %s675, 192
        %s677 = scalar_lea.vmem [#allocation3], %s676
        %p678 = pneg %p163
        %p679 = pneg %p160
        %p680 = scmp.lt.s32.totalorder %s37, 1
        %s681 = scalar_select %p680, %s37, 1
        %s682 = smul.addr %s681, 3
        %s683 = scalar_lea.vmem %s6, %s682
        %p684 = pneg %p189
        %p685 = pneg %p186
        %p686 = scmp.lt.s32.totalorder %s37, 1
        %s687 = scalar_select %p686, %s37, 1
        %s688 = smul.addr %s687, 16
        %s689 = smul.addr %s688, 4
        %s690 = scalar_lea.vmem %s7, %s689
        %p691 = pneg %p215
        %p692 = pneg %p212
        %p693 = scmp.lt.s32.totalorder %s37, 1
        %s694 = scalar_select %p693, %s37, 1
        %s695 = scalar_lea.vmem %s8, %s694
        %p696 = pneg %p241
        %p697 = pneg %p238
        %p698 = scmp.lt.s32.totalorder %s37, 1
        %s699 = scalar_select %p698, %s37, 1
        %s700 = smul.addr %s699, 16
        %s701 = smul.addr %s700, 4
        %s702 = scalar_lea.vmem %s9, %s701
        %p703 = pneg %p267
        %p704 = pneg %p264
        %p705 = scmp.lt.s32.totalorder %s37, 1
        %s706 = scalar_select %p705, %s37, 1
        %s707 = scalar_lea.vmem %s10, %s706
        %p708 = pneg %p293
        %p709 = pneg %p290
        %s710 = sand.u32 %s37, 1
        %s711 = scalar_lea.sflag [#allocation7], %s710
        %s712 = sand.u32 %s306, 1
        %s713 = smul.addr %s712, 64
        %s714 = scalar_lea.vmem [#allocation6], %s713
        %p715 = pneg %p319
        %p716 = pneg %p316
        %p717 = scmp.lt.s32.totalorder %s37, 1
        %s718 = scalar_select %p717, %s37, 1
        %s719 = scalar_lea.vmem %s12, %s718
        %p720 = pneg %p345
        %p721 = pneg %p342
        %p722 = scmp.lt.s32.totalorder %s37, 1
        %s723 = scalar_select %p722, %s37, 1
        %s724 = smul.addr %s723, 4
        %s725 = scalar_lea.vmem %s13, %s724
        %p726 = pneg %p371
        %p727 = pneg %p368
        %p728 = pneg %p392
        %p729 = pneg %p389
        %p730 = pneg %p413
        %p731 = pneg %p410
        %p732 = pneg %p434
        %p733 = pneg %p431
        %p734 = pneg %p455
        %p735 = pneg %p452
        %p736 = pneg %p476
        %p737 = pneg %p473
        %p738 = scmp.lt.s32.totalorder %s37, 1
        %s739 = scalar_select %p738, %s37, 1
        %s740 = smul.addr %s739, 3
        %s741 = scalar_lea.vmem %s6, %s740
        %p742 = scmp.lt.s32.totalorder %s37, 1
        %s743 = scalar_select %p742, %s37, 1
        %s744 = smul.addr %s743, 16
        %s745 = smul.addr %s744, 4
        %s746 = scalar_lea.vmem %s7, %s745
        %p747 = scmp.lt.s32.totalorder %s37, 1
        %s748 = scalar_select %p747, %s37, 1
        %s749 = scalar_lea.vmem %s8, %s748
        %p750 = scmp.lt.s32.totalorder %s37, 1
        %s751 = scalar_select %p750, %s37, 1
        %s752 = smul.addr %s751, 16
        %s753 = smul.addr %s752, 4
        %s754 = scalar_lea.vmem %s9, %s753
        %p755 = scmp.lt.s32.totalorder %s37, 1
        %s756 = scalar_select %p755, %s37, 1
        %s757 = scalar_lea.vmem %s10, %s756
        %p758 = scmp.lt.s32.totalorder %s37, 1
        %s759 = scalar_select %p758, %s37, 1
        %s760 = scalar_lea.vmem %s12, %s759
        %p761 = scmp.lt.s32.totalorder %s37, 1
        %s762 = scalar_select %p761, %s37, 1
        %s763 = smul.addr %s762, 4
        %s764 = scalar_lea.vmem %s13, %s763
        %v766 = vlaneseq
        %v767 = vand.u32 %v766, 127
        %vm768 = vcmp.lt.s32.totalorder %v767, 32
        %v769 = vsel %vm768, 1, 0
        %v770 = vcvt.s32.f32 %v769
        %p771 = scmp.eq.s32.totalorder %s37, 0
        // Predicated region
        $region109: #{hubert_forward.1} parent=91 // pred_check
          %p772 = pneg %p771
        $region110: #{hubert_forward.1} parent=91 // pred_check_branch
          %774 = sbr.rel (%p772) target = $region112
        $region111: #{hubert_forward.1} parent=91 // pred_region
          %v775 = vld [vmem:[%s0] sm:$0xff]
          %v776 = vld [vmem:[%s0 + $0x8] sm:$0xff]
          %v777 = vld [vmem:[%s0 + $0x10] sm:$0xff]
          %v778 = vld [vmem:[%s0 + $0x18] sm:$0xff]
          %v779 = vld [vmem:[%s1] sm:$0xff]
          %v780 = vld [vmem:[%s1 + $0x8] sm:$0xff]
          %v781 = vld [vmem:[%s1 + $0x10] sm:$0xff]
          %v782 = vld [vmem:[%s1 + $0x18] sm:$0xff]
          %v783 = vsub.f32 1.0, %v779
          %v784 = vsub.f32 1.0, %v780
          %v785 = vsub.f32 1.0, %v781
          %v786 = vsub.f32 1.0, %v782
          %788 = vset.pattern.permute.xlu0 0
          %789 = vperm.xlu0 %788, %v783
          %v790 = vpop.permute.xlu0 %789
          %793 = vset.pattern.permute.xlu0 0
          %794 = vperm.xlu0 %793, %v784
          %v795 = vpop.permute.xlu0 %794
          %798 = vset.pattern.permute.xlu0 0
          %799 = vperm.xlu0 %798, %v785
          %v800 = vpop.permute.xlu0 %799
          %803 = vset.pattern.permute.xlu0 0
          %804 = vperm.xlu0 %803, %v786
          %v805 = vpop.permute.xlu0 %804
          %v807 = vmul.f32 %v775, %v790
          %v808 = vmul.f32 %v776, %v795
          %v809 = vmul.f32 %v777, %v800
          %v810 = vmul.f32 %v778, %v805
          %v811 = vpack.c.bf16 %v808, %v807
          %v812 = vpack.c.bf16 %v810, %v809
          %v813 = vld [vmem:[%s3] sm:$0xf]
          %v814 = vld [vmem:[%s3 + $0x4] sm:$0xf]
          %v815 = vld [vmem:[%s3 + $0x8] sm:$0xf]
          %v816 = vld [vmem:[%s3 + $0xc] sm:$0xf]
          %v817 = vld [vmem:[%s3 + $0x10] sm:$0xf]
          %v818 = vld [vmem:[%s3 + $0x14] sm:$0xf]
          %v819 = vld [vmem:[%s3 + $0x18] sm:$0xf]
          %v820 = vld [vmem:[%s3 + $0x1c] sm:$0xf]
          %v821 = vld [vmem:[%s3 + $0x20] sm:$0xf]
          %v822 = vld [vmem:[%s3 + $0x24] sm:$0xf]
          %v823 = vld [vmem:[%s3 + $0x28] sm:$0xf]
          %v824 = vld [vmem:[%s3 + $0x2c] sm:$0xf]
          %v825 = vld [vmem:[%s3 + $0x30] sm:$0xf]
          %v826 = vld [vmem:[%s3 + $0x34] sm:$0xf]
          %v827 = vld [vmem:[%s3 + $0x38] sm:$0xf]
          %v828 = vld [vmem:[%s3 + $0x3c] sm:$0xf]
          %v829 = vld [vmem:[%s4] sm:$0x1]
          %v831 = vlaneseq
          %v832 = vshrl.u32 %v831, 7
          %v833 = vsub.s32 0, %v832
          %v834 = vrot.slane %v829, %v833
          %v852 = vunpack.c.l.b16 %v813
          %v853 = vunpack.c.l.b16 %v814
          %v854 = vunpack.c.l.b16 %v815
          %v855 = vunpack.c.l.b16 %v816
          %v856 = vunpack.c.l.b16 %v817
          %v857 = vunpack.c.l.b16 %v818
          %v858 = vunpack.c.l.b16 %v819
          %v859 = vunpack.c.l.b16 %v820
          %v860 = vunpack.c.l.b16 %v821
          %v861 = vunpack.c.l.b16 %v822
          %v862 = vunpack.c.l.b16 %v823
          %v863 = vunpack.c.l.b16 %v824
          %v864 = vunpack.c.l.b16 %v825
          %v865 = vunpack.c.l.b16 %v826
          %v866 = vunpack.c.l.b16 %v827
          %v867 = vunpack.c.l.b16 %v828
          %v868 = vpack.c.b16 %v853, %v852
          %v869 = vpack.c.b16 %v855, %v854
          %v870 = vpack.c.b16 %v857, %v856
          %v871 = vpack.c.b16 %v859, %v858
          %v872 = vpack.c.b16 %v861, %v860
          %v873 = vpack.c.b16 %v863, %v862
          %v874 = vpack.c.b16 %v865, %v864
          %v875 = vpack.c.b16 %v867, %v866
          %884 = vmatprep.subr.bf16.mxu0 0
          %885 = vmatpush1.bf16.msra.mxu0 %v868
          %886 = vmatprep.subr.bf16.mxu0 0
          %887 = vmatpush1.bf16.msra.mxu0 %v869
          %888 = vmatprep.subr.bf16.mxu0 0
          %889 = vmatpush1.bf16.msra.mxu0 %v870
          %890 = vmatprep.subr.bf16.mxu0 0
          %891 = vmatpush1.bf16.msra.mxu0 %v871
          %892 = vmatprep.subr.bf16.mxu0 0
          %893 = vmatpush1.bf16.msra.mxu0 %v872
          %894 = vmatprep.subr.bf16.mxu0 0
          %895 = vmatpush1.bf16.msra.mxu0 %v873
          %896 = vmatprep.subr.bf16.mxu0 0
          %897 = vmatpush1.bf16.msra.mxu0 %v874
          %898 = vmatprep.subr.bf16.mxu0 0
          %899 = vmatpush1.bf16.msra.mxu0 %v875
          %900 = vmatprep.subr.bf16.mxu0 0
          %901 = vmatpush1.bf16.msra.mxu0 0
          %902 = vmatprep.subr.bf16.mxu0 0
          %903 = vmatpush1.bf16.msra.mxu0 0
          %904 = vmatprep.subr.bf16.mxu0 0
          %905 = vmatpush1.bf16.msra.mxu0 0
          %906 = vmatprep.subr.bf16.mxu0 0
          %907 = vmatpush1.bf16.msra.mxu0 0
          %908 = vmatprep.subr.bf16.mxu0 0
          %909 = vmatpush1.bf16.msra.mxu0 0
          %910 = vmatprep.subr.bf16.mxu0 0
          %911 = vmatpush1.bf16.msra.mxu0 0
          %912 = vmatprep.subr.bf16.mxu0 0
          %913 = vmatpush1.bf16.msra.mxu0 0
          %914 = vmatprep.subr.bf16.mxu0 0
          %915 = vmatpush1.bf16.msra.mxu0 0
          %916 = vmatprep.mubr.bf16.mxu0 0
          %917 = vmatmul.mubr.bf16.gmra.mrb[0].mxu0 %v811
          %v918 = vpop.f32.mrb[0].mxu0
          %v919 = vadd.f32 %v834, %v918
          %v920 = vpop.f32.mrb[0].mxu0
          %v921 = vpop.f32.mrb[0].mxu0
          %v922 = vadd.f32 %v834, %v921
          %v923 = vpop.f32.mrb[0].mxu0
          %924 = vmatprep.mubr.bf16.mxu0 0
          %925 = vmatmul.mubr.bf16.gmra.mrb[0].mxu0 %v812
          %v926 = vpop.f32.mrb[0].mxu0
          %v927 = vadd.f32 %v834, %v926
          %v928 = vpop.f32.mrb[0].mxu0
          %v929 = vpop.f32.mrb[0].mxu0
          %v930 = vadd.f32 %v834, %v929
          %v931 = vpop.f32.mrb[0].mxu0
          %932 = vdwg.mxu0
          %933 = vst [vmem:[#allocation2] sm:$0xff] %v919
          %934 = vst [vmem:[#allocation2 + $0x8] sm:$0xff] %v922
          %935 = vst [vmem:[#allocation2 + $0x10] sm:$0xff] %v927
          %936 = vst [vmem:[#allocation2 + $0x18] sm:$0xff] %v930
          %s937 = scalar_lea.smem [#allocation11], 0
          %938 = sst [smem:[%s937]] 0.0
        $region112: #{hubert_forward.1} parent=91 // pred_fallthru
          _
        %v939 = vld [vmem:[#allocation2] sm:$0xff]
        %v940 = vld [vmem:[#allocation2 + $0x8] sm:$0xff]
        %v941 = vld [vmem:[#allocation2 + $0x10] sm:$0xff]
        %v942 = vld [vmem:[#allocation2 + $0x18] sm:$0xff]
        %v943 = vld [vmem:[%s764] sm:$0xf]
        %v944 = vpack.c.bf16 %v940, %v939
        %v945 = vpack.c.bf16 %v942, %v941
        %v946 = vld [vmem:[%s641] sm:$0xff]
        %v947 = vld [vmem:[%s641 + $0x8] sm:$0xf]
        %v948 = vld [vmem:[%s641 + $0xc] sm:$0xff]
        %v949 = vld [vmem:[%s641 + $0x14] sm:$0xf]
        %v950 = vld [vmem:[%s641 + $0x18] sm:$0xff]
        %v951 = vld [vmem:[%s641 + $0x20] sm:$0xf]
        %v952 = vld [vmem:[%s641 + $0x24] sm:$0xff]
        %v953 = vld [vmem:[%s641 + $0x2c] sm:$0xf]
        %v954 = vld [vmem:[%s641 + $0x30] sm:$0xff]
        %v955 = vld [vmem:[%s641 + $0x38] sm:$0xf]
        %v956 = vld [vmem:[%s641 + $0x3c] sm:$0xff]
        %v957 = vld [vmem:[%s641 + $0x44] sm:$0xf]
        %v958 = vld [vmem:[%s641 + $0x48] sm:$0xff]
        %v959 = vld [vmem:[%s641 + $0x50] sm:$0xf]
        %v960 = vld [vmem:[%s641 + $0x54] sm:$0xff]
        %v961 = vld [vmem:[%s641 + $0x5c] sm:$0xf]
        %v962 = vld [vmem:[%s641 + $0x60] sm:$0xff]
        %v963 = vld [vmem:[%s641 + $0x68] sm:$0xf]
        %v964 = vld [vmem:[%s641 + $0x6c] sm:$0xff]
        %v965 = vld [vmem:[%s641 + $0x74] sm:$0xf]
        %v966 = vld [vmem:[%s641 + $0x78] sm:$0xff]
        %v967 = vld [vmem:[%s641 + $0x80] sm:$0xf]
        %v968 = vld [vmem:[%s641 + $0x84] sm:$0xff]
        %v969 = vld [vmem:[%s641 + $0x8c] sm:$0xf]
        %v970 = vld [vmem:[%s641 + $0x90] sm:$0xff]
        %v971 = vld [vmem:[%s641 + $0x98] sm:$0xf]
        %v972 = vld [vmem:[%s641 + $0x9c] sm:$0xff]
        %v973 = vld [vmem:[%s641 + $0xa4] sm:$0xf]
        %v974 = vld [vmem:[%s641 + $0xa8] sm:$0xff]
        %v975 = vld [vmem:[%s641 + $0xb0] sm:$0xf]
        %v976 = vld [vmem:[%s641 + $0xb4] sm:$0xff]
        %v977 = vld [vmem:[%s641 + $0xbc] sm:$0xf]
        %v978 = vld [vmem:[%s741] sm:$0x7]
        %v980 = vlaneseq
        %v981 = vshrl.u32 %v980, 7
        %v982 = vsub.s32 0, %v981
        %v983 = vrot.slane %v978, %v982
        %v984 = vlaneseq
        %v985 = vshrl.u32 %v984, 7
        %v986 = vsub.s32 1, %v985
        %v987 = vrot.slane %v978, %v986
        %v988 = vlaneseq
        %v989 = vshrl.u32 %v988, 7
        %v990 = vsub.s32 2, %v989
        %v991 = vrot.slane %v978, %v990
        %v1027 = vunpack.c.l.b16 %v946
        %v1028 = vunpack.c.h.b16 %v946
        %v1029 = vunpack.c.l.b16 %v947
        %v1030 = vunpack.c.l.b16 %v948
        %v1031 = vunpack.c.h.b16 %v948
        %v1032 = vunpack.c.l.b16 %v949
        %v1033 = vunpack.c.l.b16 %v950
        %v1034 = vunpack.c.h.b16 %v950
        %v1035 = vunpack.c.l.b16 %v951
        %v1036 = vunpack.c.l.b16 %v952
        %v1037 = vunpack.c.h.b16 %v952
        %v1038 = vunpack.c.l.b16 %v953
        %v1039 = vunpack.c.l.b16 %v954
        %v1040 = vunpack.c.h.b16 %v954
        %v1041 = vunpack.c.l.b16 %v955
        %v1042 = vunpack.c.l.b16 %v956
        %v1043 = vunpack.c.h.b16 %v956
        %v1044 = vunpack.c.l.b16 %v957
        %v1045 = vunpack.c.l.b16 %v958
        %v1046 = vunpack.c.h.b16 %v958
        %v1047 = vunpack.c.l.b16 %v959
        %v1048 = vunpack.c.l.b16 %v960
        %v1049 = vunpack.c.h.b16 %v960
        %v1050 = vunpack.c.l.b16 %v961
        %v1051 = vunpack.c.l.b16 %v962
        %v1052 = vunpack.c.h.b16 %v962
        %v1053 = vunpack.c.l.b16 %v963
        %v1054 = vunpack.c.l.b16 %v964
        %v1055 = vunpack.c.h.b16 %v964
        %v1056 = vunpack.c.l.b16 %v965
        %v1057 = vunpack.c.l.b16 %v966
        %v1058 = vunpack.c.h.b16 %v966
        %v1059 = vunpack.c.l.b16 %v967
        %v1060 = vunpack.c.l.b16 %v968
        %v1061 = vunpack.c.h.b16 %v968
        %v1062 = vunpack.c.l.b16 %v969
        %v1063 = vunpack.c.l.b16 %v970
        %v1064 = vunpack.c.h.b16 %v970
        %v1065 = vunpack.c.l.b16 %v971
        %v1066 = vunpack.c.l.b16 %v972
        %v1067 = vunpack.c.h.b16 %v972
        %v1068 = vunpack.c.l.b16 %v973
        %v1069 = vunpack.c.l.b16 %v974
        %v1070 = vunpack.c.h.b16 %v974
        %v1071 = vunpack.c.l.b16 %v975
        %v1072 = vunpack.c.l.b16 %v976
        %v1073 = vunpack.c.h.b16 %v976
        %v1074 = vunpack.c.l.b16 %v977
        %v1075 = vpack.c.b16 %v1030, %v1027
        %v1076 = vpack.c.b16 %v1031, %v1028
        %v1077 = vpack.c.b16 %v1032, %v1029
        %v1078 = vpack.c.b16 %v1036, %v1033
        %v1079 = vpack.c.b16 %v1037, %v1034
        %v1080 = vpack.c.b16 %v1038, %v1035
        %v1081 = vpack.c.b16 %v1042, %v1039
        %v1082 = vpack.c.b16 %v1043, %v1040
        %v1083 = vpack.c.b16 %v1044, %v1041
        %v1084 = vpack.c.b16 %v1048, %v1045
        %v1085 = vpack.c.b16 %v1049, %v1046
        %v1086 = vpack.c.b16 %v1050, %v1047
        %v1087 = vpack.c.b16 %v1054, %v1051
        %v1088 = vpack.c.b16 %v1055, %v1052
        %v1089 = vpack.c.b16 %v1056, %v1053
        %v1090 = vpack.c.b16 %v1060, %v1057
        %v1091 = vpack.c.b16 %v1061, %v1058
        %v1092 = vpack.c.b16 %v1062, %v1059
        %v1093 = vpack.c.b16 %v1066, %v1063
        %v1094 = vpack.c.b16 %v1067, %v1064
        %v1095 = vpack.c.b16 %v1068, %v1065
        %v1096 = vpack.c.b16 %v1072, %v1069
        %v1097 = vpack.c.b16 %v1073, %v1070
        %v1098 = vpack.c.b16 %v1074, %v1071
        %1123 = vmatprep.subr.bf16.mxu0 %v1076
        %1124 = vmatpush1.bf16.msra.mxu0 %v1075
        %1125 = vmatprep.subr.bf16.mxu0 %v1079
        %1126 = vmatpush1.bf16.msra.mxu0 %v1078
        %1127 = vmatprep.subr.bf16.mxu0 %v1082
        %1128 = vmatpush1.bf16.msra.mxu0 %v1081
        %1129 = vmatprep.subr.bf16.mxu0 %v1085
        %1130 = vmatpush1.bf16.msra.mxu0 %v1084
        %1131 = vmatprep.subr.bf16.mxu0 %v1088
        %1132 = vmatpush1.bf16.msra.mxu0 %v1087
        %1133 = vmatprep.subr.bf16.mxu0 %v1091
        %1134 = vmatpush1.bf16.msra.mxu0 %v1090
        %1135 = vmatprep.subr.bf16.mxu0 %v1094
        %1136 = vmatpush1.bf16.msra.mxu0 %v1093
        %1137 = vmatprep.subr.bf16.mxu0 %v1097
        %1138 = vmatpush1.bf16.msra.mxu0 %v1096
        %1139 = vmatprep.subr.bf16.mxu0 0
        %1140 = vmatpush1.bf16.msra.mxu0 0
        %1141 = vmatprep.subr.bf16.mxu0 0
        %1142 = vmatpush1.bf16.msra.mxu0 0
        %1143 = vmatprep.subr.bf16.mxu0 0
        %1144 = vmatpush1.bf16.msra.mxu0 0
        %1145 = vmatprep.subr.bf16.mxu0 0
        %1146 = vmatpush1.bf16.msra.mxu0 0
        %1147 = vmatprep.subr.bf16.mxu0 0
        %1148 = vmatpush1.bf16.msra.mxu0 0
        %1149 = vmatprep.subr.bf16.mxu0 0
        %1150 = vmatpush1.bf16.msra.mxu0 0
        %1151 = vmatprep.subr.bf16.mxu0 0
        %1152 = vmatpush1.bf16.msra.mxu0 0
        %1153 = vmatprep.subr.bf16.mxu0 0
        %1154 = vmatpush1.bf16.msra.mxu0 0
        %1155 = vmatprep.mubr.bf16.mxu0 0
        %1156 = vmatmul.mubr.bf16.gmra.mrb[0].mxu0 %v944
        %v1157 = vpop.f32.mrb[0].mxu0
        %v1158 = vadd.f32 %v983, %v1157
        %v1159 = vpop.f32.mrb[0].mxu0
        %v1160 = vadd.f32 %v987, %v1159
        %v1161 = vpop.f32.mrb[0].mxu0
        %v1162 = vadd.f32 %v983, %v1161
        %v1163 = vpop.f32.mrb[0].mxu0
        %v1164 = vadd.f32 %v987, %v1163
        %1165 = vmatprep.mubr.bf16.mxu0 0
        %1166 = vmatmul.mubr.bf16.gmra.mrb[0].mxu0 %v945
        %v1167 = vpop.f32.mrb[0].mxu0
        %v1168 = vadd.f32 %v983, %v1167
        %v1169 = vpop.f32.mrb[0].mxu0
        %v1170 = vadd.f32 %v987, %v1169
        %v1171 = vpop.f32.mrb[0].mxu0
        %v1172 = vadd.f32 %v983, %v1171
        %v1173 = vpop.f32.mrb[0].mxu0
        %v1174 = vadd.f32 %v987, %v1173
        %1175 = vdwg.mxu0
        %1176 = vmatprep.subr.bf16.mxu0 0
        %1177 = vmatpush1.bf16.msra.mxu0 %v1077
        %1178 = vmatprep.subr.bf16.mxu0 0
        %1179 = vmatpush1.bf16.msra.mxu0 %v1080
        %1180 = vmatprep.subr.bf16.mxu0 0
        %1181 = vmatpush1.bf16.msra.mxu0 %v1083
        %1182 = vmatprep.subr.bf16.mxu0 0
        %1183 = vmatpush1.bf16.msra.mxu0 %v1086
        %1184 = vmatprep.subr.bf16.mxu0 0
        %1185 = vmatpush1.bf16.msra.mxu0 %v1089
        %1186 = vmatprep.subr.bf16.mxu0 0
        %1187 = vmatpush1.bf16.msra.mxu0 %v1092
        %1188 = vmatprep.subr.bf16.mxu0 0
        %1189 = vmatpush1.bf16.msra.mxu0 %v1095
        %1190 = vmatprep.subr.bf16.mxu0 0
        %1191 = vmatpush1.bf16.msra.mxu0 %v1098
        %1192 = vmatprep.subr.bf16.mxu0 0
        %1193 = vmatpush1.bf16.msra.mxu0 0
        %1194 = vmatprep.subr.bf16.mxu0 0
        %1195 = vmatpush1.bf16.msra.mxu0 0
        %1196 = vmatprep.subr.bf16.mxu0 0
        %1197 = vmatpush1.bf16.msra.mxu0 0
        %1198 = vmatprep.subr.bf16.mxu0 0
        %1199 = vmatpush1.bf16.msra.mxu0 0
        %1200 = vmatprep.subr.bf16.mxu0 0
        %1201 = vmatpush1.bf16.msra.mxu0 0
        %1202 = vmatprep.subr.bf16.mxu0 0
        %1203 = vmatpush1.bf16.msra.mxu0 0
        %1204 = vmatprep.subr.bf16.mxu0 0
        %1205 = vmatpush1.bf16.msra.mxu0 0
        %1206 = vmatprep.subr.bf16.mxu0 0
        %1207 = vmatpush1.bf16.msra.mxu0 0
        %1208 = vmatprep.mubr.bf16.mxu0 0
        %1209 = vmatmul.mubr.bf16.gmra.mrb[0].mxu0 %v944
        %v1210 = vpop.f32.mrb[0].mxu0
        %v1211 = vadd.f32 %v991, %v1210
        %v1212 = vpop.f32.mrb[0].mxu0
        %v1213 = vpop.f32.mrb[0].mxu0
        %v1214 = vadd.f32 %v991, %v1213
        %v1215 = vpop.f32.mrb[0].mxu0
        %1216 = vmatprep.mubr.bf16.mxu0 0
        %1217 = vmatmul.mubr.bf16.gmra.mrb[0].mxu0 %v945
        %v1218 = vpop.f32.mrb[0].mxu0
        %v1219 = vadd.f32 %v991, %v1218
        %v1220 = vpop.f32.mrb[0].mxu0
        %v1221 = vpop.f32.mrb[0].mxu0
        %v1222 = vadd.f32 %v991, %v1221
        %v1223 = vpop.f32.mrb[0].mxu0
        %1224 = vdwg.mxu0
        %v1225 = vld [vmem:[%s2] sm:$0xff]
        %v1226 = vld [vmem:[%s2 + $0x8] sm:$0xff]
        %v1227 = vld [vmem:[%s2 + $0x10] sm:$0xff]
        %v1228 = vld [vmem:[%s2 + $0x18] sm:$0xff]
        %v1229 = vpack.c.bf16 %v1162, %v1158
        %v1230 = vpack.c.bf16 %v1172, %v1168
        %v1231 = vpack.c.bf16 %v1164, %v1160
        %v1232 = vpack.c.bf16 %v1174, %v1170
        %v1233 = vpack.c.bf16 %v1214, %v1211
        %v1234 = vpack.c.bf16 %v1222, %v1219
        %vm1235 = vcmp.ge.s32.totalorder %v767, 0
        %vm1236 = vcmp.lt.s32.totalorder %v767, 8
        %vm1237 = vmand %vm1235, %vm1236
        %v1238 = vsel %vm1237, 1, 0
        %v1239 = vcvt.s32.f32 %v1238
        %v1240 = vpack.c.bf16 %v1239, %v1239
        %v1241 = vmul.bf16 %v1229, %v1240
        %v1242 = vmul.bf16 %v1230, %v1240
        %v1243 = vmul.bf16 %v1233, %v1240
        %v1244 = vmul.bf16 %v1234, %v1240
        %1245 = vmatprep.subr.bf16.mxu0 0
        %1246 = vmatpush1.bf16.xpose.msra.mxu0 %v1231
        %1247 = vmatprep.subr.bf16.mxu0 0
        %1248 = vmatpush1.bf16.xpose.msra.mxu0 %v1232
        %1249 = vmatprep.subr.bf16.mxu0 0
        %1250 = vmatpush1.bf16.xpose.msra.mxu0 0
        %1251 = vmatprep.subr.bf16.mxu0 0
        %1252 = vmatpush1.bf16.xpose.msra.mxu0 0
        %1253 = vmatprep.subr.bf16.mxu0 0
        %1254 = vmatpush1.bf16.xpose.msra.mxu0 0
        %1255 = vmatprep.subr.bf16.mxu0 0
        %1256 = vmatpush1.bf16.xpose.msra.mxu0 0
        %1257 = vmatprep.subr.bf16.mxu0 0
        %1258 = vmatpush1.bf16.xpose.msra.mxu0 0
        %1259 = vmatprep.subr.bf16.mxu0 0
        %1260 = vmatpush1.bf16.xpose.msra.mxu0 0
        %1261 = vmatprep.subr.bf16.mxu0 0
        %1262 = vmatpush1.bf16.xpose.msra.mxu0 0
        %1263 = vmatprep.subr.bf16.mxu0 0
        %1264 = vmatpush1.bf16.xpose.msra.mxu0 0
        %1265 = vmatprep.subr.bf16.mxu0 0
        %1266 = vmatpush1.bf16.xpose.msra.mxu0 0
        %1267 = vmatprep.subr.bf16.mxu0 0
        %1268 = vmatpush1.bf16.xpose.msra.mxu0 0
        %1269 = vmatprep.subr.bf16.mxu0 0
        %1270 = vmatpush1.bf16.xpose.msra.mxu0 0
        %1271 = vmatprep.subr.bf16.mxu0 0
        %1272 = vmatpush1.bf16.xpose.msra.mxu0 0
        %1273 = vmatprep.subr.bf16.mxu0 0
        %1274 = vmatpush1.bf16.xpose.msra.mxu0 0
        %1275 = vmatprep.subr.bf16.mxu0 0
        %1276 = vmatpush1.bf16.xpose.msra.mxu0 0
        %1277 = vmatprep.mubr.bf16.mxu0 0
        %1278 = vmatmul.mubr.bf16.gmra.mrb[0].mxu0 %v1241
        %v1279 = vpop.f32.mrb[0].mxu0
        %v1280 = vadd.f32 0.0, %v1279
        %v1281 = vpop.f32.mrb[0].mxu0
        %v1282 = vpop.f32.mrb[0].mxu0
        %v1283 = vadd.f32 0.0, %v1282
        %v1284 = vpop.f32.mrb[0].mxu0
        %1285 = vmatprep.mubr.bf16.mxu0 0
        %1286 = vmatmul.mubr.bf16.gmra.mrb[0].mxu0 %v1242
        %v1287 = vpop.f32.mrb[0].mxu0
        %v1288 = vadd.f32 0.0, %v1287
        %v1289 = vpop.f32.mrb[0].mxu0
        %v1290 = vpop.f32.mrb[0].mxu0
        %v1291 = vadd.f32 0.0, %v1290
        %v1292 = vpop.f32.mrb[0].mxu0
        %1293 = vdwg.mxu0
        %v1294 = vmul.f32 %v1280, 0.35355338
        %v1295 = vmul.f32 %v1283, 0.35355338
        %v1296 = vmul.f32 %v1288, 0.35355338
        %v1297 = vmul.f32 %v1291, 0.35355338
        %v1298 = vadd.f32 %v1294, %v1225
        %v1299 = vadd.f32 %v1295, %v1226
        %v1300 = vadd.f32 %v1296, %v1227
        %v1301 = vadd.f32 %v1297, %v1228
        %vm1302 = vcmask 261120
        %v1303 = vsel %vm1302, %v1298, -inf
        %1304 = vmax.xlane.f32.xlu0 %v1303
        %v1305 = vpop.xlane.xlu0 %1304
        %v1306 = vsel %vm1302, %v1299, -inf
        %1307 = vmax.xlane.f32.xlu0 %v1306
        %v1308 = vpop.xlane.xlu0 %1307
        %v1309 = vsel %vm1302, %v1300, -inf
        %1310 = vmax.xlane.f32.xlu0 %v1309
        %v1311 = vpop.xlane.xlu0 %1310
        %v1312 = vsel %vm1302, %v1301, -inf
        %1313 = vmax.xlane.f32.xlu0 %v1312
        %v1314 = vpop.xlane.xlu0 %1313
        %v1315 = vsub.f32 %v1298, %v1305
        %v1316 = vsub.f32 %v1299, %v1308
        %v1317 = vsub.f32 %v1300, %v1311
        %v1318 = vsub.f32 %v1301, %v1314
        %v1319 = vmul.f32 %v1315, 1.442695
        %v1320 = vpow.pop %v1319
        %v1321 = vmul.f32 %v1316, 1.442695
        %v1322 = vpow.pop %v1321
        %v1323 = vmul.f32 %v1317, 1.442695
        %v1324 = vpow.pop %v1323
        %v1325 = vmul.f32 %v1318, 1.442695
        %v1326 = vpow.pop %v1325
        %v1327 = vsel %vm1302, %v1320, 0.0
        %1328 = vadd.xlane.f32.xlu0 %v1327
        %v1329 = vpop.xlane.xlu0 %1328
        %v1330 = vsel %vm1302, %v1322, 0.0
        %1331 = vadd.xlane.f32.xlu0 %v1330
        %v1332 = vpop.xlane.xlu0 %1331
        %v1333 = vsel %vm1302, %v1324, 0.0
        %1334 = vadd.xlane.f32.xlu0 %v1333
        %v1335 = vpop.xlane.xlu0 %1334
        %v1336 = vsel %vm1302, %v1326, 0.0
        %1337 = vadd.xlane.f32.xlu0 %v1336
        %v1338 = vpop.xlane.xlu0 %1337
        %v1339 = vrcp.pop %v1329
        %v1340 = vrcp.pop %v1332
        %v1341 = vrcp.pop %v1335
        %v1342 = vrcp.pop %v1338
        %v1343 = vmul.f32 %v1320, %v1339
        %v1344 = vmul.f32 %v1322, %v1340
        %v1345 = vmul.f32 %v1324, %v1341
        %v1346 = vmul.f32 %v1326, %v1342
        %v1347 = vpack.c.bf16 %v1344, %v1343
        %v1348 = vpack.c.bf16 %v1346, %v1345
        %vm1349 = vcmp.ge.s32.totalorder %v767, 8
        %vm1350 = vcmp.lt.s32.totalorder %v767, 16
        %vm1351 = vmand %vm1349, %vm1350
        %v1352 = vsel %vm1351, 1, 0
        %v1353 = vcvt.s32.f32 %v1352
        %v1354 = vpack.c.bf16 %v1353, %v1353
        %v1355 = vmul.bf16 %v1229, %v1354
        %v1356 = vmul.bf16 %v1230, %v1354
        %v1357 = vmul.bf16 %v1233, %v1354
        %v1358 = vmul.bf16 %v1234, %v1354
        %1359 = vmatprep.subr.bf16.mxu0 0
        %1360 = vmatpush1.bf16.xpose.msra.mxu0 %v1231
        %1361 = vmatprep.subr.bf16.mxu0 0
        %1362 = vmatpush1.bf16.xpose.msra.mxu0 %v1232
        %1363 = vmatprep.subr.bf16.mxu0 0
        %1364 = vmatpush1.bf16.xpose.msra.mxu0 0
        %1365 = vmatprep.subr.bf16.mxu0 0
        %1366 = vmatpush1.bf16.xpose.msra.mxu0 0
        %1367 = vmatprep.subr.bf16.mxu0 0
        %1368 = vmatpush1.bf16.xpose.msra.mxu0 0
        %1369 = vmatprep.subr.bf16.mxu0 0
        %1370 = vmatpush1.bf16.xpose.msra.mxu0 0
        %1371 = vmatprep.subr.bf16.mxu0 0
        %1372 = vmatpush1.bf16.xpose.msra.mxu0 0
        %1373 = vmatprep.subr.bf16.mxu0 0
        %1374 = vmatpush1.bf16.xpose.msra.mxu0 0
        %1375 = vmatprep.subr.bf16.mxu0 0
        %1376 = vmatpush1.bf16.xpose.msra.mxu0 0
        %1377 = vmatprep.subr.bf16.mxu0 0
        %1378 = vmatpush1.bf16.xpose.msra.mxu0 0
        %1379 = vmatprep.subr.bf16.mxu0 0
        %1380 = vmatpush1.bf16.xpose.msra.mxu0 0
        %1381 = vmatprep.subr.bf16.mxu0 0
        %1382 = vmatpush1.bf16.xpose.msra.mxu0 0
        %1383 = vmatprep.subr.bf16.mxu0 0
        %1384 = vmatpush1.bf16.xpose.msra.mxu0 0
        %1385 = vmatprep.subr.bf16.mxu0 0
        %1386 = vmatpush1.bf16.xpose.msra.mxu0 0
        %1387 = vmatprep.subr.bf16.mxu0 0
        %1388 = vmatpush1.bf16.xpose.msra.mxu0 0
        %1389 = vmatprep.subr.bf16.mxu0 0
        %1390 = vmatpush1.bf16.xpose.msra.mxu0 0
        %1391 = vmatprep.mubr.bf16.mxu0 0
        %1392 = vmatmul.mubr.bf16.gmra.mrb[0].mxu0 %v1355
        %v1393 = vpop.f32.mrb[0].mxu0
        %v1394 = vadd.f32 0.0, %v1393
        %v1395 = vpop.f32.mrb[0].mxu0
        %v1396 = vpop.f32.mrb[0].mxu0
        %v1397 = vadd.f32 0.0, %v1396
        %v1398 = vpop.f32.mrb[0].mxu0
        %1399 = vmatprep.mubr.bf16.mxu0 0
        %1400 = vmatmul.mubr.bf16.gmra.mrb[0].mxu0 %v1356
        %v1401 = vpop.f32.mrb[0].mxu0
        %v1402 = vadd.f32 0.0, %v1401
        %v1403 = vpop.f32.mrb[0].mxu0
        %v1404 = vpop.f32.mrb[0].mxu0
        %v1405 = vadd.f32 0.0, %v1404
        %v1406 = vpop.f32.mrb[0].mxu0
        %1407 = vdwg.mxu0
        %v1408 = vmul.f32 %v1394, 0.35355338
        %v1409 = vmul.f32 %v1397, 0.35355338
        %v1410 = vmul.f32 %v1402, 0.35355338
        %v1411 = vmul.f32 %v1405, 0.35355338
        %v1412 = vadd.f32 %v1408, %v1225
        %v1413 = vadd.f32 %v1409, %v1226
        %v1414 = vadd.f32 %v1410, %v1227
        %v1415 = vadd.f32 %v1411, %v1228
        %v1416 = vsel %vm1302, %v1412, -inf
        %1417 = vmax.xlane.f32.xlu0 %v1416
        %v1418 = vpop.xlane.xlu0 %1417
        %v1419 = vsel %vm1302, %v1413, -inf
        %1420 = vmax.xlane.f32.xlu0 %v1419
        %v1421 = vpop.xlane.xlu0 %1420
        %v1422 = vsel %vm1302, %v1414, -inf
        %1423 = vmax.xlane.f32.xlu0 %v1422
        %v1424 = vpop.xlane.xlu0 %1423
        %v1425 = vsel %vm1302, %v1415, -inf
        %1426 = vmax.xlane.f32.xlu0 %v1425
        %v1427 = vpop.xlane.xlu0 %1426
        %v1428 = vsub.f32 %v1412, %v1418
        %v1429 = vsub.f32 %v1413, %v1421
        %v1430 = vsub.f32 %v1414, %v1424
        %v1431 = vsub.f32 %v1415, %v1427
        %v1432 = vmul.f32 %v1428, 1.442695
        %v1433 = vpow.pop %v1432
        %v1434 = vmul.f32 %v1429, 1.442695
        %v1435 = vpow.pop %v1434
        %v1436 = vmul.f32 %v1430, 1.442695
        %v1437 = vpow.pop %v1436
        %v1438 = vmul.f32 %v1431, 1.442695
        %v1439 = vpow.pop %v1438
        %v1440 = vsel %vm1302, %v1433, 0.0
        %1441 = vadd.xlane.f32.xlu0 %v1440
        %v1442 = vpop.xlane.xlu0 %1441
        %v1443 = vsel %vm1302, %v1435, 0.0
        %1444 = vadd.xlane.f32.xlu0 %v1443
        %v1445 = vpop.xlane.xlu0 %1444
        %v1446 = vsel %vm1302, %v1437, 0.0
        %1447 = vadd.xlane.f32.xlu0 %v1446
        %v1448 = vpop.xlane.xlu0 %1447
        %v1449 = vsel %vm1302, %v1439, 0.0
        %1450 = vadd.xlane.f32.xlu0 %v1449
        %v1451 = vpop.xlane.xlu0 %1450
        %v1452 = vrcp.pop %v1442
        %v1453 = vrcp.pop %v1445
        %v1454 = vrcp.pop %v1448
        %v1455 = vrcp.pop %v1451
        %v1456 = vmul.f32 %v1433, %v1452
        %v1457 = vmul.f32 %v1435, %v1453
        %v1458 = vmul.f32 %v1437, %v1454
        %v1459 = vmul.f32 %v1439, %v1455
        %v1460 = vpack.c.bf16 %v1457, %v1456
        %v1461 = vpack.c.bf16 %v1459, %v1458
        %v1463 = vsel %vm1302, %v1460, 0
        %v1466 = vsel %vm1302, %v1461, 0
        %1468 = vmatprep.subr.bf16.mxu0 0
        %1469 = vmatpush1.bf16.msra.mxu0 %v1357
        %1470 = vmatprep.subr.bf16.mxu0 0
        %1471 = vmatpush1.bf16.msra.mxu0 %v1358
        %1472 = vmatprep.subr.bf16.mxu0 0
        %1473 = vmatpush1.bf16.msra.mxu0 0
        %1474 = vmatprep.subr.bf16.mxu0 0
        %1475 = vmatpush1.bf16.msra.mxu0 0
        %1476 = vmatprep.subr.bf16.mxu0 0
        %1477 = vmatpush1.bf16.msra.mxu0 0
        %1478 = vmatprep.subr.bf16.mxu0 0
        %1479 = vmatpush1.bf16.msra.mxu0 0
        %1480 = vmatprep.subr.bf16.mxu0 0
        %1481 = vmatpush1.bf16.msra.mxu0 0
        %1482 = vmatprep.subr.bf16.mxu0 0
        %1483 = vmatpush1.bf16.msra.mxu0 0
        %1484 = vmatprep.subr.bf16.mxu0 0
        %1485 = vmatpush1.bf16.msra.mxu0 0
        %1486 = vmatprep.subr.bf16.mxu0 0
        %1487 = vmatpush1.bf16.msra.mxu0 0
        %1488 = vmatprep.subr.bf16.mxu0 0
        %1489 = vmatpush1.bf16.msra.mxu0 0
        %1490 = vmatprep.subr.bf16.mxu0 0
        %1491 = vmatpush1.bf16.msra.mxu0 0
        %1492 = vmatprep.subr.bf16.mxu0 0
        %1493 = vmatpush1.bf16.msra.mxu0 0
        %1494 = vmatprep.subr.bf16.mxu0 0
        %1495 = vmatpush1.bf16.msra.mxu0 0
        %1496 = vmatprep.subr.bf16.mxu0 0
        %1497 = vmatpush1.bf16.msra.mxu0 0
        %1498 = vmatprep.subr.bf16.mxu0 0
        %1499 = vmatpush1.bf16.msra.mxu0 0
        %1500 = vmatprep.mubr.bf16.mxu0 0
        %1501 = vmatmul.mubr.bf16.gmra.mrb[0].mxu0 %v1463
        %v1502 = vpop.f32.mrb[0].mxu0
        %v1503 = vadd.f32 0.0, %v1502
        %v1504 = vpop.f32.mrb[0].mxu0
        %v1505 = vpop.f32.mrb[0].mxu0
        %v1506 = vadd.f32 0.0, %v1505
        %v1507 = vpop.f32.mrb[0].mxu0
        %1508 = vmatprep.mubr.bf16.mxu0 0
        %1509 = vmatmul.mubr.bf16.gmra.mrb[0].mxu0 %v1466
        %v1510 = vpop.f32.mrb[0].mxu0
        %v1511 = vadd.f32 0.0, %v1510
        %v1512 = vpop.f32.mrb[0].mxu0
        %v1513 = vpop.f32.mrb[0].mxu0
        %v1514 = vadd.f32 0.0, %v1513
        %v1515 = vpop.f32.mrb[0].mxu0
        %1516 = vdwg.mxu0
        %v1518 = vsel %vm1302, %v1347, 0
        %v1521 = vsel %vm1302, %v1348, 0
        %1523 = vmatprep.subr.bf16.mxu0 0
        %1524 = vmatpush1.bf16.msra.mxu0 %v1243
        %1525 = vmatprep.subr.bf16.mxu0 0
        %1526 = vmatpush1.bf16.msra.mxu0 %v1244
        %1527 = vmatprep.subr.bf16.mxu0 0
        %1528 = vmatpush1.bf16.msra.mxu0 0
        %1529 = vmatprep.subr.bf16.mxu0 0
        %1530 = vmatpush1.bf16.msra.mxu0 0
        %1531 = vmatprep.subr.bf16.mxu0 0
        %1532 = vmatpush1.bf16.msra.mxu0 0
        %1533 = vmatprep.subr.bf16.mxu0 0
        %1534 = vmatpush1.bf16.msra.mxu0 0
        %1535 = vmatprep.subr.bf16.mxu0 0
        %1536 = vmatpush1.bf16.msra.mxu0 0
        %1537 = vmatprep.subr.bf16.mxu0 0
        %1538 = vmatpush1.bf16.msra.mxu0 0
        %1539 = vmatprep.subr.bf16.mxu0 0
        %1540 = vmatpush1.bf16.msra.mxu0 0
        %1541 = vmatprep.subr.bf16.mxu0 0
        %1542 = vmatpush1.bf16.msra.mxu0 0
        %1543 = vmatprep.subr.bf16.mxu0 0
        %1544 = vmatpush1.bf16.msra.mxu0 0
        %1545 = vmatprep.subr.bf16.mxu0 0
        %1546 = vmatpush1.bf16.msra.mxu0 0
        %1547 = vmatprep.subr.bf16.mxu0 0
        %1548 = vmatpush1.bf16.msra.mxu0 0
        %1549 = vmatprep.subr.bf16.mxu0 0
        %1550 = vmatpush1.bf16.msra.mxu0 0
        %1551 = vmatprep.subr.bf16.mxu0 0
        %1552 = vmatpush1.bf16.msra.mxu0 0
        %1553 = vmatprep.subr.bf16.mxu0 0
        %1554 = vmatpush1.bf16.msra.mxu0 0
        %1555 = vmatprep.mubr.bf16.mxu0 0
        %1556 = vmatmul.mubr.bf16.gmra.mrb[0].mxu0 %v1518
        %v1557 = vpop.f32.mrb[0].mxu0
        %v1558 = vadd.f32 %v1503, %v1557
        %v1559 = vpop.f32.mrb[0].mxu0
        %v1560 = vpop.f32.mrb[0].mxu0
        %v1561 = vadd.f32 %v1506, %v1560
        %v1562 = vpop.f32.mrb[0].mxu0
        %1563 = vmatprep.mubr.bf16.mxu0 0
        %1564 = vmatmul.mubr.bf16.gmra.mrb[0].mxu0 %v1521
        %v1565 = vpop.f32.mrb[0].mxu0
        %v1566 = vadd.f32 %v1511, %v1565
        %v1567 = vpop.f32.mrb[0].mxu0
        %v1568 = vpop.f32.mrb[0].mxu0
        %v1569 = vadd.f32 %v1514, %v1568
        %v1570 = vpop.f32.mrb[0].mxu0
        %1571 = vdwg.mxu0
        %vm1572 = vcmp.ge.s32.totalorder %v767, 16
        %vm1573 = vcmp.lt.s32.totalorder %v767, 24
        %vm1574 = vmand %vm1572, %vm1573
        %v1575 = vsel %vm1574, 1, 0
        %v1576 = vcvt.s32.f32 %v1575
        %v1577 = vpack.c.bf16 %v1576, %v1576
        %v1578 = vmul.bf16 %v1229, %v1577
        %v1579 = vmul.bf16 %v1230, %v1577
        %v1580 = vmul.bf16 %v1233, %v1577
        %v1581 = vmul.bf16 %v1234, %v1577
        %1582 = vmatprep.subr.bf16.mxu0 0
        %1583 = vmatpush1.bf16.xpose.msra.mxu0 %v1231
        %1584 = vmatprep.subr.bf16.mxu0 0
        %1585 = vmatpush1.bf16.xpose.msra.mxu0 %v1232
        %1586 = vmatprep.subr.bf16.mxu0 0
        %1587 = vmatpush1.bf16.xpose.msra.mxu0 0
        %1588 = vmatprep.subr.bf16.mxu0 0
        %1589 = vmatpush1.bf16.xpose.msra.mxu0 0
        %1590 = vmatprep.subr.bf16.mxu0 0
        %1591 = vmatpush1.bf16.xpose.msra.mxu0 0
        %1592 = vmatprep.subr.bf16.mxu0 0
        %1593 = vmatpush1.bf16.xpose.msra.mxu0 0
        %1594 = vmatprep.subr.bf16.mxu0 0
        %1595 = vmatpush1.bf16.xpose.msra.mxu0 0
        %1596 = vmatprep.subr.bf16.mxu0 0
        %1597 = vmatpush1.bf16.xpose.msra.mxu0 0
        %1598 = vmatprep.subr.bf16.mxu0 0
        %1599 = vmatpush1.bf16.xpose.msra.mxu0 0
        %1600 = vmatprep.subr.bf16.mxu0 0
        %1601 = vmatpush1.bf16.xpose.msra.mxu0 0
        %1602 = vmatprep.subr.bf16.mxu0 0
        %1603 = vmatpush1.bf16.xpose.msra.mxu0 0
        %1604 = vmatprep.subr.bf16.mxu0 0
        %1605 = vmatpush1.bf16.xpose.msra.mxu0 0
        %1606 = vmatprep.subr.bf16.mxu0 0
        %1607 = vmatpush1.bf16.xpose.msra.mxu0 0
        %1608 = vmatprep.subr.bf16.mxu0 0
        %1609 = vmatpush1.bf16.xpose.msra.mxu0 0
        %1610 = vmatprep.subr.bf16.mxu0 0
        %1611 = vmatpush1.bf16.xpose.msra.mxu0 0
        %1612 = vmatprep.subr.bf16.mxu0 0
        %1613 = vmatpush1.bf16.xpose.msra.mxu0 0
        %1614 = vmatprep.mubr.bf16.mxu0 0
        %1615 = vmatmul.mubr.bf16.gmra.mrb[0].mxu0 %v1578
        %v1616 = vpop.f32.mrb[0].mxu0
        %v1617 = vadd.f32 0.0, %v1616
        %v1618 = vpop.f32.mrb[0].mxu0
        %v1619 = vpop.f32.mrb[0].mxu0
        %v1620 = vadd.f32 0.0, %v1619
        %v1621 = vpop.f32.mrb[0].mxu0
        %1622 = vmatprep.mubr.bf16.mxu0 0
        %1623 = vmatmul.mubr.bf16.gmra.mrb[0].mxu0 %v1579
        %v1624 = vpop.f32.mrb[0].mxu0
        %v1625 = vadd.f32 0.0, %v1624
        %v1626 = vpop.f32.mrb[0].mxu0
        %v1627 = vpop.f32.mrb[0].mxu0
        %v1628 = vadd.f32 0.0, %v1627
        %v1629 = vpop.f32.mrb[0].mxu0
        %1630 = vdwg.mxu0
        %v1631 = vmul.f32 %v1617, 0.35355338
        %v1632 = vmul.f32 %v1620, 0.35355338
        %v1633 = vmul.f32 %v1625, 0.35355338
        %v1634 = vmul.f32 %v1628, 0.35355338
        %v1635 = vadd.f32 %v1631, %v1225
        %v1636 = vadd.f32 %v1632, %v1226
        %v1637 = vadd.f32 %v1633, %v1227
        %v1638 = vadd.f32 %v1634, %v1228
        %v1639 = vsel %vm1302, %v1635, -inf
        %1640 = vmax.xlane.f32.xlu0 %v1639
        %v1641 = vpop.xlane.xlu0 %1640
        %v1642 = vsel %vm1302, %v1636, -inf
        %1643 = vmax.xlane.f32.xlu0 %v1642
        %v1644 = vpop.xlane.xlu0 %1643
        %v1645 = vsel %vm1302, %v1637, -inf
        %1646 = vmax.xlane.f32.xlu0 %v1645
        %v1647 = vpop.xlane.xlu0 %1646
        %v1648 = vsel %vm1302, %v1638, -inf
        %1649 = vmax.xlane.f32.xlu0 %v1648
        %v1650 = vpop.xlane.xlu0 %1649
        %v1651 = vsub.f32 %v1635, %v1641
        %v1652 = vsub.f32 %v1636, %v1644
        %v1653 = vsub.f32 %v1637, %v1647
        %v1654 = vsub.f32 %v1638, %v1650
        %v1655 = vmul.f32 %v1651, 1.442695
        %v1656 = vpow.pop %v1655
        %v1657 = vmul.f32 %v1652, 1.442695
        %v1658 = vpow.pop %v1657
        %v1659 = vmul.f32 %v1653, 1.442695
        %v1660 = vpow.pop %v1659
        %v1661 = vmul.f32 %v1654, 1.442695
        %v1662 = vpow.pop %v1661
        %v1663 = vsel %vm1302, %v1656, 0.0
        %1664 = vadd.xlane.f32.xlu0 %v1663
        %v1665 = vpop.xlane.xlu0 %1664
        %v1666 = vsel %vm1302, %v1658, 0.0
        %1667 = vadd.xlane.f32.xlu0 %v1666
        %v1668 = vpop.xlane.xlu0 %1667
        %v1669 = vsel %vm1302, %v1660, 0.0
        %1670 = vadd.xlane.f32.xlu0 %v1669
        %v1671 = vpop.xlane.xlu0 %1670
        %v1672 = vsel %vm1302, %v1662, 0.0
        %1673 = vadd.xlane.f32.xlu0 %v1672
        %v1674 = vpop.xlane.xlu0 %1673
        %v1675 = vrcp.pop %v1665
        %v1676 = vrcp.pop %v1668
        %v1677 = vrcp.pop %v1671
        %v1678 = vrcp.pop %v1674
        %v1679 = vmul.f32 %v1656, %v1675
        %v1680 = vmul.f32 %v1658, %v1676
        %v1681 = vmul.f32 %v1660, %v1677
        %v1682 = vmul.f32 %v1662, %v1678
        %v1683 = vpack.c.bf16 %v1680, %v1679
        %v1684 = vpack.c.bf16 %v1682, %v1681
        %v1686 = vsel %vm1302, %v1683, 0
        %v1689 = vsel %vm1302, %v1684, 0
        %1691 = vmatprep.subr.bf16.mxu0 0
        %1692 = vmatpush1.bf16.msra.mxu0 %v1580
        %1693 = vmatprep.subr.bf16.mxu0 0
        %1694 = vmatpush1.bf16.msra.mxu0 %v1581
        %1695 = vmatprep.subr.bf16.mxu0 0
        %1696 = vmatpush1.bf16.msra.mxu0 0
        %1697 = vmatprep.subr.bf16.mxu0 0
        %1698 = vmatpush1.bf16.msra.mxu0 0
        %1699 = vmatprep.subr.bf16.mxu0 0
        %1700 = vmatpush1.bf16.msra.mxu0 0
        %1701 = vmatprep.subr.bf16.mxu0 0
        %1702 = vmatpush1.bf16.msra.mxu0 0
        %1703 = vmatprep.subr.bf16.mxu0 0
        %1704 = vmatpush1.bf16.msra.mxu0 0
        %1705 = vmatprep.subr.bf16.mxu0 0
        %1706 = vmatpush1.bf16.msra.mxu0 0
        %1707 = vmatprep.subr.bf16.mxu0 0
        %1708 = vmatpush1.bf16.msra.mxu0 0
        %1709 = vmatprep.subr.bf16.mxu0 0
        %1710 = vmatpush1.bf16.msra.mxu0 0
        %1711 = vmatprep.subr.bf16.mxu0 0
        %1712 = vmatpush1.bf16.msra.mxu0 0
        %1713 = vmatprep.subr.bf16.mxu0 0
        %1714 = vmatpush1.bf16.msra.mxu0 0
        %1715 = vmatprep.subr.bf16.mxu0 0
        %1716 = vmatpush1.bf16.msra.mxu0 0
        %1717 = vmatprep.subr.bf16.mxu0 0
        %1718 = vmatpush1.bf16.msra.mxu0 0
        %1719 = vmatprep.subr.bf16.mxu0 0
        %1720 = vmatpush1.bf16.msra.mxu0 0
        %1721 = vmatprep.subr.bf16.mxu0 0
        %1722 = vmatpush1.bf16.msra.mxu0 0
        %1723 = vmatprep.mubr.bf16.mxu0 0
        %1724 = vmatmul.mubr.bf16.gmra.mrb[0].mxu0 %v1686
        %v1725 = vpop.f32.mrb[0].mxu0
        %v1726 = vadd.f32 0.0, %v1725
        %v1727 = vpop.f32.mrb[0].mxu0
        %v1728 = vpop.f32.mrb[0].mxu0
        %v1729 = vadd.f32 0.0, %v1728
        %v1730 = vpop.f32.mrb[0].mxu0
        %1731 = vmatprep.mubr.bf16.mxu0 0
        %1732 = vmatmul.mubr.bf16.gmra.mrb[0].mxu0 %v1689
        %v1733 = vpop.f32.mrb[0].mxu0
        %v1734 = vadd.f32 0.0, %v1733
        %v1735 = vpop.f32.mrb[0].mxu0
        %v1736 = vpop.f32.mrb[0].mxu0
        %v1737 = vadd.f32 0.0, %v1736
        %v1738 = vpop.f32.mrb[0].mxu0
        %1739 = vdwg.mxu0
        %v1740 = vadd.f32 %v1558, %v1726
        %v1741 = vadd.f32 %v1561, %v1729
        %v1742 = vadd.f32 %v1566, %v1734
        %v1743 = vadd.f32 %v1569, %v1737
        %vm1744 = vcmp.ge.s32.totalorder %v767, 24
        %vm1745 = vmand %vm1744, %vm768
        %v1746 = vsel %vm1745, 1, 0
        %v1747 = vcvt.s32.f32 %v1746
        %v1748 = vpack.c.bf16 %v1747, %v1747
        %v1749 = vmul.bf16 %v1229, %v1748
        %v1750 = vmul.bf16 %v1230, %v1748
        %v1751 = vmul.bf16 %v1233, %v1748
        %v1752 = vmul.bf16 %v1234, %v1748
        %1753 = vmatprep.subr.bf16.mxu0 0
        %1754 = vmatpush1.bf16.xpose.msra.mxu0 %v1231
        %1755 = vmatprep.subr.bf16.mxu0 0
        %1756 = vmatpush1.bf16.xpose.msra.mxu0 %v1232
        %1757 = vmatprep.subr.bf16.mxu0 0
        %1758 = vmatpush1.bf16.xpose.msra.mxu0 0
        %1759 = vmatprep.subr.bf16.mxu0 0
        %1760 = vmatpush1.bf16.xpose.msra.mxu0 0
        %1761 = vmatprep.subr.bf16.mxu0 0
        %1762 = vmatpush1.bf16.xpose.msra.mxu0 0
        %1763 = vmatprep.subr.bf16.mxu0 0
        %1764 = vmatpush1.bf16.xpose.msra.mxu0 0
        %1765 = vmatprep.subr.bf16.mxu0 0
        %1766 = vmatpush1.bf16.xpose.msra.mxu0 0
        %1767 = vmatprep.subr.bf16.mxu0 0
        %1768 = vmatpush1.bf16.xpose.msra.mxu0 0
        %1769 = vmatprep.subr.bf16.mxu0 0
        %1770 = vmatpush1.bf16.xpose.msra.mxu0 0
        %1771 = vmatprep.subr.bf16.mxu0 0
        %1772 = vmatpush1.bf16.xpose.msra.mxu0 0
        %1773 = vmatprep.subr.bf16.mxu0 0
        %1774 = vmatpush1.bf16.xpose.msra.mxu0 0
        %1775 = vmatprep.subr.bf16.mxu0 0
        %1776 = vmatpush1.bf16.xpose.msra.mxu0 0
        %1777 = vmatprep.subr.bf16.mxu0 0
        %1778 = vmatpush1.bf16.xpose.msra.mxu0 0
        %1779 = vmatprep.subr.bf16.mxu0 0
        %1780 = vmatpush1.bf16.xpose.msra.mxu0 0
        %1781 = vmatprep.subr.bf16.mxu0 0
        %1782 = vmatpush1.bf16.xpose.msra.mxu0 0
        %1783 = vmatprep.subr.bf16.mxu0 0
        %1784 = vmatpush1.bf16.xpose.msra.mxu0 0
        %1785 = vmatprep.mubr.bf16.mxu0 0
        %1786 = vmatmul.mubr.bf16.gmra.mrb[0].mxu0 %v1749
        %v1787 = vpop.f32.mrb[0].mxu0
        %v1788 = vadd.f32 0.0, %v1787
        %v1789 = vpop.f32.mrb[0].mxu0
        %v1790 = vpop.f32.mrb[0].mxu0
        %v1791 = vadd.f32 0.0, %v1790
        %v1792 = vpop.f32.mrb[0].mxu0
        %1793 = vmatprep.mubr.bf16.mxu0 0
        %1794 = vmatmul.mubr.bf16.gmra.mrb[0].mxu0 %v1750
        %v1795 = vpop.f32.mrb[0].mxu0
        %v1796 = vadd.f32 0.0, %v1795
        %v1797 = vpop.f32.mrb[0].mxu0
        %v1798 = vpop.f32.mrb[0].mxu0
        %v1799 = vadd.f32 0.0, %v1798
        %v1800 = vpop.f32.mrb[0].mxu0
        %1801 = vdwg.mxu0
        %v1802 = vmul.f32 %v1788, 0.35355338
        %v1803 = vmul.f32 %v1791, 0.35355338
        %v1804 = vmul.f32 %v1796, 0.35355338
        %v1805 = vmul.f32 %v1799, 0.35355338
        %v1806 = vadd.f32 %v1802, %v1225
        %v1807 = vadd.f32 %v1803, %v1226
        %v1808 = vadd.f32 %v1804, %v1227
        %v1809 = vadd.f32 %v1805, %v1228
        %v1810 = vsel %vm1302, %v1806, -inf
        %1811 = vmax.xlane.f32.xlu0 %v1810
        %v1812 = vpop.xlane.xlu0 %1811
        %v1813 = vsel %vm1302, %v1807, -inf
        %1814 = vmax.xlane.f32.xlu0 %v1813
        %v1815 = vpop.xlane.xlu0 %1814
        %v1816 = vsel %vm1302, %v1808, -inf
        %1817 = vmax.xlane.f32.xlu0 %v1816
        %v1818 = vpop.xlane.xlu0 %1817
        %v1819 = vsel %vm1302, %v1809, -inf
        %1820 = vmax.xlane.f32.xlu0 %v1819
        %v1821 = vpop.xlane.xlu0 %1820
        %v1822 = vsub.f32 %v1806, %v1812
        %v1823 = vsub.f32 %v1807, %v1815
        %v1824 = vsub.f32 %v1808, %v1818
        %v1825 = vsub.f32 %v1809, %v1821
        %v1826 = vmul.f32 %v1822, 1.442695
        %v1827 = vpow.pop %v1826
        %v1828 = vmul.f32 %v1823, 1.442695
        %v1829 = vpow.pop %v1828
        %v1830 = vmul.f32 %v1824, 1.442695
        %v1831 = vpow.pop %v1830
        %v1832 = vmul.f32 %v1825, 1.442695
        %v1833 = vpow.pop %v1832
        %v1834 = vsel %vm1302, %v1827, 0.0
        %1835 = vadd.xlane.f32.xlu0 %v1834
        %v1836 = vpop.xlane.xlu0 %1835
        %v1837 = vsel %vm1302, %v1829, 0.0
        %1838 = vadd.xlane.f32.xlu0 %v1837
        %v1839 = vpop.xlane.xlu0 %1838
        %v1840 = vsel %vm1302, %v1831, 0.0
        %1841 = vadd.xlane.f32.xlu0 %v1840
        %v1842 = vpop.xlane.xlu0 %1841
        %v1843 = vsel %vm1302, %v1833, 0.0
        %1844 = vadd.xlane.f32.xlu0 %v1843
        %v1845 = vpop.xlane.xlu0 %1844
        %v1846 = vrcp.pop %v1836
        %v1847 = vrcp.pop %v1839
        %v1848 = vrcp.pop %v1842
        %v1849 = vrcp.pop %v1845
        %v1850 = vmul.f32 %v1827, %v1846
        %v1851 = vmul.f32 %v1829, %v1847
        %v1852 = vmul.f32 %v1831, %v1848
        %v1853 = vmul.f32 %v1833, %v1849
        %v1854 = vpack.c.bf16 %v1851, %v1850
        %v1855 = vpack.c.bf16 %v1853, %v1852
        %v1857 = vsel %vm1302, %v1854, 0
        %v1860 = vsel %vm1302, %v1855, 0
        %1862 = vmatprep.subr.bf16.mxu0 0
        %1863 = vmatpush1.bf16.msra.mxu0 %v1751
        %1864 = vmatprep.subr.bf16.mxu0 0
        %1865 = vmatpush1.bf16.msra.mxu0 %v1752
        %1866 = vmatprep.subr.bf16.mxu0 0
        %1867 = vmatpush1.bf16.msra.mxu0 0
        %1868 = vmatprep.subr.bf16.mxu0 0
        %1869 = vmatpush1.bf16.msra.mxu0 0
        %1870 = vmatprep.subr.bf16.mxu0 0
        %1871 = vmatpush1.bf16.msra.mxu0 0
        %1872 = vmatprep.subr.bf16.mxu0 0
        %1873 = vmatpush1.bf16.msra.mxu0 0
        %1874 = vmatprep.subr.bf16.mxu0 0
        %1875 = vmatpush1.bf16.msra.mxu0 0
        %1876 = vmatprep.subr.bf16.mxu0 0
        %1877 = vmatpush1.bf16.msra.mxu0 0
        %1878 = vmatprep.subr.bf16.mxu0 0
        %1879 = vmatpush1.bf16.msra.mxu0 0
        %1880 = vmatprep.subr.bf16.mxu0 0
        %1881 = vmatpush1.bf16.msra.mxu0 0
        %1882 = vmatprep.subr.bf16.mxu0 0
        %1883 = vmatpush1.bf16.msra.mxu0 0
        %1884 = vmatprep.subr.bf16.mxu0 0
        %1885 = vmatpush1.bf16.msra.mxu0 0
        %1886 = vmatprep.subr.bf16.mxu0 0
        %1887 = vmatpush1.bf16.msra.mxu0 0
        %1888 = vmatprep.subr.bf16.mxu0 0
        %1889 = vmatpush1.bf16.msra.mxu0 0
        %1890 = vmatprep.subr.bf16.mxu0 0
        %1891 = vmatpush1.bf16.msra.mxu0 0
        %1892 = vmatprep.subr.bf16.mxu0 0
        %1893 = vmatpush1.bf16.msra.mxu0 0
        %1894 = vmatprep.mubr.bf16.mxu0 0
        %1895 = vmatmul.mubr.bf16.gmra.mrb[0].mxu0 %v1857
        %v1896 = vpop.f32.mrb[0].mxu0
        %v1897 = vadd.f32 0.0, %v1896
        %v1898 = vpop.f32.mrb[0].mxu0
        %v1899 = vpop.f32.mrb[0].mxu0
        %v1900 = vadd.f32 0.0, %v1899
        %v1901 = vpop.f32.mrb[0].mxu0
        %1902 = vmatprep.mubr.bf16.mxu0 0
        %1903 = vmatmul.mubr.bf16.gmra.mrb[0].mxu0 %v1860
        %v1904 = vpop.f32.mrb[0].mxu0
        %v1905 = vadd.f32 0.0, %v1904
        %v1906 = vpop.f32.mrb[0].mxu0
        %v1907 = vpop.f32.mrb[0].mxu0
        %v1908 = vadd.f32 0.0, %v1907
        %v1909 = vpop.f32.mrb[0].mxu0
        %1910 = vdwg.mxu0
        %v1911 = vadd.f32 %v1740, %v1897
        %v1912 = vadd.f32 %v1741, %v1900
        %v1913 = vadd.f32 %v1742, %v1905
        %v1914 = vadd.f32 %v1743, %v1908
        %v1915 = vpack.c.bf16 %v1912, %v1911
        %v1916 = vpack.c.bf16 %v1914, %v1913
        %v1917 = vld [vmem:[%s746] sm:$0xf]
        %v1918 = vld [vmem:[%s746 + $0x4] sm:$0xf]
        %v1919 = vld [vmem:[%s746 + $0x8] sm:$0xf]
        %v1920 = vld [vmem:[%s746 + $0xc] sm:$0xf]
        %v1921 = vld [vmem:[%s746 + $0x10] sm:$0xf]
        %v1922 = vld [vmem:[%s746 + $0x14] sm:$0xf]
        %v1923 = vld [vmem:[%s746 + $0x18] sm:$0xf]
        %v1924 = vld [vmem:[%s746 + $0x1c] sm:$0xf]
        %v1925 = vld [vmem:[%s746 + $0x20] sm:$0xf]
        %v1926 = vld [vmem:[%s746 + $0x24] sm:$0xf]
        %v1927 = vld [vmem:[%s746 + $0x28] sm:$0xf]
        %v1928 = vld [vmem:[%s746 + $0x2c] sm:$0xf]
        %v1929 = vld [vmem:[%s746 + $0x30] sm:$0xf]
        %v1930 = vld [vmem:[%s746 + $0x34] sm:$0xf]
        %v1931 = vld [vmem:[%s746 + $0x38] sm:$0xf]
        %v1932 = vld [vmem:[%s746 + $0x3c] sm:$0xf]
        %v1933 = vld [vmem:[%s749] sm:$0x1]
        %v1935 = vlaneseq
        %v1936 = vshrl.u32 %v1935, 7
        %v1937 = vsub.s32 0, %v1936
        %v1938 = vrot.slane %v1933, %v1937
        %v1956 = vunpack.c.l.b16 %v1917
        %v1957 = vunpack.c.l.b16 %v1918
        %v1958 = vunpack.c.l.b16 %v1919
        %v1959 = vunpack.c.l.b16 %v1920
        %v1960 = vunpack.c.l.b16 %v1921
        %v1961 = vunpack.c.l.b16 %v1922
        %v1962 = vunpack.c.l.b16 %v1923
        %v1963 = vunpack.c.l.b16 %v1924
        %v1964 = vunpack.c.l.b16 %v1925
        %v1965 = vunpack.c.l.b16 %v1926
        %v1966 = vunpack.c.l.b16 %v1927
        %v1967 = vunpack.c.l.b16 %v1928
        %v1968 = vunpack.c.l.b16 %v1929
        %v1969 = vunpack.c.l.b16 %v1930
        %v1970 = vunpack.c.l.b16 %v1931
        %v1971 = vunpack.c.l.b16 %v1932
        %v1972 = vpack.c.b16 %v1957, %v1956
        %v1973 = vpack.c.b16 %v1959, %v1958
        %v1974 = vpack.c.b16 %v1961, %v1960
        %v1975 = vpack.c.b16 %v1963, %v1962
        %v1976 = vpack.c.b16 %v1965, %v1964
        %v1977 = vpack.c.b16 %v1967, %v1966
        %v1978 = vpack.c.b16 %v1969, %v1968
        %v1979 = vpack.c.b16 %v1971, %v1970
        %1988 = vmatprep.subr.bf16.mxu0 0
        %1989 = vmatpush1.bf16.msra.mxu0 %v1972
        %1990 = vmatprep.subr.bf16.mxu0 0
        %1991 = vmatpush1.bf16.msra.mxu0 %v1973
        %1992 = vmatprep.subr.bf16.mxu0 0
        %1993 = vmatpush1.bf16.msra.mxu0 %v1974
        %1994 = vmatprep.subr.bf16.mxu0 0
        %1995 = vmatpush1.bf16.msra.mxu0 %v1975
        %1996 = vmatprep.subr.bf16.mxu0 0
        %1997 = vmatpush1.bf16.msra.mxu0 %v1976
        %1998 = vmatprep.subr.bf16.mxu0 0
        %1999 = vmatpush1.bf16.msra.mxu0 %v1977
        %2000 = vmatprep.subr.bf16.mxu0 0
        %2001 = vmatpush1.bf16.msra.mxu0 %v1978
        %2002 = vmatprep.subr.bf16.mxu0 0
        %2003 = vmatpush1.bf16.msra.mxu0 %v1979
        %2004 = vmatprep.subr.bf16.mxu0 0
        %2005 = vmatpush1.bf16.msra.mxu0 0
        %2006 = vmatprep.subr.bf16.mxu0 0
        %2007 = vmatpush1.bf16.msra.mxu0 0
        %2008 = vmatprep.subr.bf16.mxu0 0
        %2009 = vmatpush1.bf16.msra.mxu0 0
        %2010 = vmatprep.subr.bf16.mxu0 0
        %2011 = vmatpush1.bf16.msra.mxu0 0
        %2012 = vmatprep.subr.bf16.mxu0 0
        %2013 = vmatpush1.bf16.msra.mxu0 0
        %2014 = vmatprep.subr.bf16.mxu0 0
        %2015 = vmatpush1.bf16.msra.mxu0 0
        %2016 = vmatprep.subr.bf16.mxu0 0
        %2017 = vmatpush1.bf16.msra.mxu0 0
        %2018 = vmatprep.subr.bf16.mxu0 0
        %2019 = vmatpush1.bf16.msra.mxu0 0
        %2020 = vmatprep.mubr.bf16.mxu0 0
        %2021 = vmatmul.mubr.bf16.gmra.mrb[0].mxu0 %v1915
        %v2022 = vpop.f32.mrb[0].mxu0
        %v2023 = vadd.f32 %v1938, %v2022
        %v2024 = vpop.f32.mrb[0].mxu0
        %v2025 = vpop.f32.mrb[0].mxu0
        %v2026 = vadd.f32 %v1938, %v2025
        %v2027 = vpop.f32.mrb[0].mxu0
        %2028 = vmatprep.mubr.bf16.mxu0 0
        %2029 = vmatmul.mubr.bf16.gmra.mrb[0].mxu0 %v1916
        %v2030 = vpop.f32.mrb[0].mxu0
        %v2031 = vadd.f32 %v1938, %v2030
        %v2032 = vpop.f32.mrb[0].mxu0
        %v2033 = vpop.f32.mrb[0].mxu0
        %v2034 = vadd.f32 %v1938, %v2033
        %v2035 = vpop.f32.mrb[0].mxu0
        %2036 = vdwg.mxu0
        %v2037 = vadd.f32 %v939, %v2023
        %v2038 = vadd.f32 %v940, %v2026
        %v2039 = vadd.f32 %v941, %v2031
        %v2040 = vadd.f32 %v942, %v2034
        %v2041 = vmul.f32 %v2037, %v770
        %v2042 = vmul.f32 %v2038, %v770
        %v2043 = vmul.f32 %v2039, %v770
        %v2044 = vmul.f32 %v2040, %v770
        %2045 = vadd.xlane.f32.xlu0 %v2041
        %v2046 = vpop.xlane.xlu0 %2045
        %2047 = vadd.xlane.f32.xlu0 %v2042
        %v2048 = vpop.xlane.xlu0 %2047
        %2049 = vadd.xlane.f32.xlu0 %v2043
        %v2050 = vpop.xlane.xlu0 %2049
        %2051 = vadd.xlane.f32.xlu0 %v2044
        %v2052 = vpop.xlane.xlu0 %2051
        %v2053 = vmul.f32 %v2046, 0.03125
        %v2054 = vmul.f32 %v2048, 0.03125
        %v2055 = vmul.f32 %v2050, 0.03125
        %v2056 = vmul.f32 %v2052, 0.03125
        %v2057 = vsub.f32 %v2037, %v2053
        %v2058 = vsub.f32 %v2038, %v2054
        %v2059 = vsub.f32 %v2039, %v2055
        %v2060 = vsub.f32 %v2040, %v2056
        %v2061 = vmul.f32 %v2057, %v770
        %v2062 = vmul.f32 %v2058, %v770
        %v2063 = vmul.f32 %v2059, %v770
        %v2064 = vmul.f32 %v2060, %v770
        %v2065 = vmul.f32 %v2061, %v2061
        %v2066 = vmul.f32 %v2062, %v2062
        %v2067 = vmul.f32 %v2063, %v2063
        %v2068 = vmul.f32 %v2064, %v2064
        %2069 = vadd.xlane.f32.xlu0 %v2065
        %v2070 = vpop.xlane.xlu0 %2069
        %2071 = vadd.xlane.f32.xlu0 %v2066
        %v2072 = vpop.xlane.xlu0 %2071
        %2073 = vadd.xlane.f32.xlu0 %v2067
        %v2074 = vpop.xlane.xlu0 %2073
        %2075 = vadd.xlane.f32.xlu0 %v2068
        %v2076 = vpop.xlane.xlu0 %2075
        %v2077 = vmul.f32 %v2070, 0.03125
        %v2078 = vmul.f32 %v2072, 0.03125
        %v2079 = vmul.f32 %v2074, 0.03125
        %v2080 = vmul.f32 %v2076, 0.03125
        %v2081 = vadd.f32 %v2077, 1e-05
        %v2082 = vadd.f32 %v2078, 1e-05
        %v2083 = vadd.f32 %v2079, 1e-05
        %v2084 = vadd.f32 %v2080, 1e-05
        %v2085 = vrsqrt.pop %v2081
        %v2086 = vrsqrt.pop %v2082
        %v2087 = vrsqrt.pop %v2083
        %v2088 = vrsqrt.pop %v2084
        %v2089 = vmul.f32 %v2061, %v2085
        %v2090 = vmul.f32 %v2062, %v2086
        %v2091 = vmul.f32 %v2063, %v2087
        %v2092 = vmul.f32 %v2064, %v2088
        %v2093 = vlaneseq
        %v2094 = vshrl.u32 %v2093, 7
        %v2095 = vsub.s32 0, %v2094
        %v2096 = vrot.slane %v943, %v2095
        %v2097 = vmul.f32 %v2089, %v2096
        %v2098 = vmul.f32 %v2090, %v2096
        %v2099 = vmul.f32 %v2091, %v2096
        %v2100 = vmul.f32 %v2092, %v2096
        %v2101 = vlaneseq
        %v2102 = vshrl.u32 %v2101, 7
        %v2103 = vsub.s32 1, %v2102
        %v2104 = vrot.slane %v943, %v2103
        %v2105 = vadd.f32 %v2097, %v2104
        %v2106 = vadd.f32 %v2098, %v2104
        %v2107 = vadd.f32 %v2099, %v2104
        %v2108 = vadd.f32 %v2100, %v2104
        %v2109 = vpack.c.bf16 %v2106, %v2105
        %v2110 = vpack.c.bf16 %v2108, %v2107
        %v2111 = vld [vmem:[%s754] sm:$0xf]
        %v2112 = vld [vmem:[%s754 + $0x4] sm:$0xf]
        %v2113 = vld [vmem:[%s754 + $0x8] sm:$0xf]
        %v2114 = vld [vmem:[%s754 + $0xc] sm:$0xf]
        %v2115 = vld [vmem:[%s754 + $0x10] sm:$0xf]
        %v2116 = vld [vmem:[%s754 + $0x14] sm:$0xf]
        %v2117 = vld [vmem:[%s754 + $0x18] sm:$0xf]
        %v2118 = vld [vmem:[%s754 + $0x1c] sm:$0xf]
        %v2119 = vld [vmem:[%s754 + $0x20] sm:$0xf]
        %v2120 = vld [vmem:[%s754 + $0x24] sm:$0xf]
        %v2121 = vld [vmem:[%s754 + $0x28] sm:$0xf]
        %v2122 = vld [vmem:[%s754 + $0x2c] sm:$0xf]
        %v2123 = vld [vmem:[%s754 + $0x30] sm:$0xf]
        %v2124 = vld [vmem:[%s754 + $0x34] sm:$0xf]
        %v2125 = vld [vmem:[%s754 + $0x38] sm:$0xf]
        %v2126 = vld [vmem:[%s754 + $0x3c] sm:$0xf]
        %v2127 = vld [vmem:[%s757] sm:$0x1]
        %v2129 = vlaneseq
        %v2130 = vshrl.u32 %v2129, 7
        %v2131 = vsub.s32 0, %v2130
        %v2132 = vrot.slane %v2127, %v2131
        %v2150 = vunpack.c.l.b16 %v2111
        %v2151 = vunpack.c.l.b16 %v2112
        %v2152 = vunpack.c.l.b16 %v2113
        %v2153 = vunpack.c.l.b16 %v2114
        %v2154 = vunpack.c.l.b16 %v2115
        %v2155 = vunpack.c.l.b16 %v2116
        %v2156 = vunpack.c.l.b16 %v2117
        %v2157 = vunpack.c.l.b16 %v2118
        %v2158 = vunpack.c.l.b16 %v2119
        %v2159 = vunpack.c.l.b16 %v2120
        %v2160 = vunpack.c.l.b16 %v2121
        %v2161 = vunpack.c.l.b16 %v2122
        %v2162 = vunpack.c.l.b16 %v2123
        %v2163 = vunpack.c.l.b16 %v2124
        %v2164 = vunpack.c.l.b16 %v2125
        %v2165 = vunpack.c.l.b16 %v2126
        %v2166 = vpack.c.b16 %v2151, %v2150
        %v2167 = vpack.c.b16 %v2153, %v2152
        %v2168 = vpack.c.b16 %v2155, %v2154
        %v2169 = vpack.c.b16 %v2157, %v2156
        %v2170 = vpack.c.b16 %v2159, %v2158
        %v2171 = vpack.c.b16 %v2161, %v2160
        %v2172 = vpack.c.b16 %v2163, %v2162
        %v2173 = vpack.c.b16 %v2165, %v2164
        %2182 = vmatprep.subr.bf16.mxu0 0
        %2183 = vmatpush1.bf16.msra.mxu0 %v2166
        %2184 = vmatprep.subr.bf16.mxu0 0
        %2185 = vmatpush1.bf16.msra.mxu0 %v2167
        %2186 = vmatprep.subr.bf16.mxu0 0
        %2187 = vmatpush1.bf16.msra.mxu0 %v2168
        %2188 = vmatprep.subr.bf16.mxu0 0
        %2189 = vmatpush1.bf16.msra.mxu0 %v2169
        %2190 = vmatprep.subr.bf16.mxu0 0
        %2191 = vmatpush1.bf16.msra.mxu0 %v2170
        %2192 = vmatprep.subr.bf16.mxu0 0
        %2193 = vmatpush1.bf16.msra.mxu0 %v2171
        %2194 = vmatprep.subr.bf16.mxu0 0
        %2195 = vmatpush1.bf16.msra.mxu0 %v2172
        %2196 = vmatprep.subr.bf16.mxu0 0
        %2197 = vmatpush1.bf16.msra.mxu0 %v2173
        %2198 = vmatprep.subr.bf16.mxu0 0
        %2199 = vmatpush1.bf16.msra.mxu0 0
        %2200 = vmatprep.subr.bf16.mxu0 0
        %2201 = vmatpush1.bf16.msra.mxu0 0
        %2202 = vmatprep.subr.bf16.mxu0 0
        %2203 = vmatpush1.bf16.msra.mxu0 0
        %2204 = vmatprep.subr.bf16.mxu0 0
        %2205 = vmatpush1.bf16.msra.mxu0 0
        %2206 = vmatprep.subr.bf16.mxu0 0
        %2207 = vmatpush1.bf16.msra.mxu0 0
        %2208 = vmatprep.subr.bf16.mxu0 0
        %2209 = vmatpush1.bf16.msra.mxu0 0
        %2210 = vmatprep.subr.bf16.mxu0 0
        %2211 = vmatpush1.bf16.msra.mxu0 0
        %2212 = vmatprep.subr.bf16.mxu0 0
        %2213 = vmatpush1.bf16.msra.mxu0 0
        %2214 = vmatprep.mubr.bf16.mxu0 0
        %2215 = vmatmul.mubr.bf16.gmra.mrb[0].mxu0 %v2109
        %v2216 = vpop.f32.mrb[0].mxu0
        %v2217 = vadd.f32 %v2132, %v2216
        %v2218 = vpop.f32.mrb[0].mxu0
        %v2219 = vpop.f32.mrb[0].mxu0
        %v2220 = vadd.f32 %v2132, %v2219
        %v2221 = vpop.f32.mrb[0].mxu0
        %2222 = vmatprep.mubr.bf16.mxu0 0
        %2223 = vmatmul.mubr.bf16.gmra.mrb[0].mxu0 %v2110
        %v2224 = vpop.f32.mrb[0].mxu0
        %v2225 = vadd.f32 %v2132, %v2224
        %v2226 = vpop.f32.mrb[0].mxu0
        %v2227 = vpop.f32.mrb[0].mxu0
        %v2228 = vadd.f32 %v2132, %v2227
        %v2229 = vpop.f32.mrb[0].mxu0
        %2230 = vdwg.mxu0
        %v2231 = vmax.f32 %v2217, 0.0
        %v2232 = vmax.f32 %v2220, 0.0
        %v2233 = vmax.f32 %v2225, 0.0
        %v2234 = vmax.f32 %v2228, 0.0
        %v2235 = vpack.c.bf16 %v2232, %v2231
        %v2236 = vpack.c.bf16 %v2234, %v2233
        %v2237 = vld [vmem:[%s650] sm:$0xf]
        %v2238 = vld [vmem:[%s650 + $0x4] sm:$0xf]
        %v2239 = vld [vmem:[%s650 + $0x8] sm:$0xf]
        %v2240 = vld [vmem:[%s650 + $0xc] sm:$0xf]
        %v2241 = vld [vmem:[%s650 + $0x10] sm:$0xf]
        %v2242 = vld [vmem:[%s650 + $0x14] sm:$0xf]
        %v2243 = vld [vmem:[%s650 + $0x18] sm:$0xf]
        %v2244 = vld [vmem:[%s650 + $0x1c] sm:$0xf]
        %v2245 = vld [vmem:[%s650 + $0x20] sm:$0xf]
        %v2246 = vld [vmem:[%s650 + $0x24] sm:$0xf]
        %v2247 = vld [vmem:[%s650 + $0x28] sm:$0xf]
        %v2248 = vld [vmem:[%s650 + $0x2c] sm:$0xf]
        %v2249 = vld [vmem:[%s650 + $0x30] sm:$0xf]
        %v2250 = vld [vmem:[%s650 + $0x34] sm:$0xf]
        %v2251 = vld [vmem:[%s650 + $0x38] sm:$0xf]
        %v2252 = vld [vmem:[%s650 + $0x3c] sm:$0xf]
        %v2253 = vld [vmem:[%s760] sm:$0x1]
        %v2255 = vlaneseq
        %v2256 = vshrl.u32 %v2255, 7
        %v2257 = vsub.s32 0, %v2256
        %v2258 = vrot.slane %v2253, %v2257
        %v2276 = vunpack.c.l.b16 %v2237
        %v2277 = vunpack.c.l.b16 %v2238
        %v2278 = vunpack.c.l.b16 %v2239
        %v2279 = vunpack.c.l.b16 %v2240
        %v2280 = vunpack.c.l.b16 %v2241
        %v2281 = vunpack.c.l.b16 %v2242
        %v2282 = vunpack.c.l.b16 %v2243
        %v2283 = vunpack.c.l.b16 %v2244
        %v2284 = vunpack.c.l.b16 %v2245
        %v2285 = vunpack.c.l.b16 %v2246
        %v2286 = vunpack.c.l.b16 %v2247
        %v2287 = vunpack.c.l.b16 %v2248
        %v2288 = vunpack.c.l.b16 %v2249
        %v2289 = vunpack.c.l.b16 %v2250
        %v2290 = vunpack.c.l.b16 %v2251
        %v2291 = vunpack.c.l.b16 %v2252
        %v2292 = vpack.c.b16 %v2277, %v2276
        %v2293 = vpack.c.b16 %v2279, %v2278
        %v2294 = vpack.c.b16 %v2281, %v2280
        %v2295 = vpack.c.b16 %v2283, %v2282
        %v2296 = vpack.c.b16 %v2285, %v2284
        %v2297 = vpack.c.b16 %v2287, %v2286
        %v2298 = vpack.c.b16 %v2289, %v2288
        %v2299 = vpack.c.b16 %v2291, %v2290
        %2308 = vmatprep.subr.bf16.mxu0 0
        %2309 = vmatpush1.bf16.msra.mxu0 %v2292
        %2310 = vmatprep.subr.bf16.mxu0 0
        %2311 = vmatpush1.bf16.msra.mxu0 %v2293
        %2312 = vmatprep.subr.bf16.mxu0 0
        %2313 = vmatpush1.bf16.msra.mxu0 %v2294
        %2314 = vmatprep.subr.bf16.mxu0 0
        %2315 = vmatpush1.bf16.msra.mxu0 %v2295
        %2316 = vmatprep.subr.bf16.mxu0 0
        %2317 = vmatpush1.bf16.msra.mxu0 %v2296
        %2318 = vmatprep.subr.bf16.mxu0 0
        %2319 = vmatpush1.bf16.msra.mxu0 %v2297
        %2320 = vmatprep.subr.bf16.mxu0 0
        %2321 = vmatpush1.bf16.msra.mxu0 %v2298
        %2322 = vmatprep.subr.bf16.mxu0 0
        %2323 = vmatpush1.bf16.msra.mxu0 %v2299
        %2324 = vmatprep.subr.bf16.mxu0 0
        %2325 = vmatpush1.bf16.msra.mxu0 0
        %2326 = vmatprep.subr.bf16.mxu0 0
        %2327 = vmatpush1.bf16.msra.mxu0 0
        %2328 = vmatprep.subr.bf16.mxu0 0
        %2329 = vmatpush1.bf16.msra.mxu0 0
        %2330 = vmatprep.subr.bf16.mxu0 0
        %2331 = vmatpush1.bf16.msra.mxu0 0
        %2332 = vmatprep.subr.bf16.mxu0 0
        %2333 = vmatpush1.bf16.msra.mxu0 0
        %2334 = vmatprep.subr.bf16.mxu0 0
        %2335 = vmatpush1.bf16.msra.mxu0 0
        %2336 = vmatprep.subr.bf16.mxu0 0
        %2337 = vmatpush1.bf16.msra.mxu0 0
        %2338 = vmatprep.subr.bf16.mxu0 0
        %2339 = vmatpush1.bf16.msra.mxu0 0
        %2340 = vmatprep.mubr.bf16.mxu0 0
        %2341 = vmatmul.mubr.bf16.gmra.mrb[0].mxu0 %v2235
        %v2342 = vpop.f32.mrb[0].mxu0
        %v2343 = vadd.f32 %v2258, %v2342
        %v2344 = vpop.f32.mrb[0].mxu0
        %v2345 = vpop.f32.mrb[0].mxu0
        %v2346 = vadd.f32 %v2258, %v2345
        %v2347 = vpop.f32.mrb[0].mxu0
        %2348 = vmatprep.mubr.bf16.mxu0 0
        %2349 = vmatmul.mubr.bf16.gmra.mrb[0].mxu0 %v2236
        %v2350 = vpop.f32.mrb[0].mxu0
        %v2351 = vadd.f32 %v2258, %v2350
        %v2352 = vpop.f32.mrb[0].mxu0
        %v2353 = vpop.f32.mrb[0].mxu0
        %v2354 = vadd.f32 %v2258, %v2353
        %v2355 = vpop.f32.mrb[0].mxu0
        %2356 = vdwg.mxu0
        %v2357 = vadd.f32 %v2105, %v2343
        %v2358 = vadd.f32 %v2106, %v2346
        %v2359 = vadd.f32 %v2107, %v2351
        %v2360 = vadd.f32 %v2108, %v2354
        %v2361 = vmul.f32 %v2357, %v770
        %v2362 = vmul.f32 %v2358, %v770
        %v2363 = vmul.f32 %v2359, %v770
        %v2364 = vmul.f32 %v2360, %v770
        %2365 = vadd.xlane.f32.xlu0 %v2361
        %v2366 = vpop.xlane.xlu0 %2365
        %2367 = vadd.xlane.f32.xlu0 %v2362
        %v2368 = vpop.xlane.xlu0 %2367
        %2369 = vadd.xlane.f32.xlu0 %v2363
        %v2370 = vpop.xlane.xlu0 %2369
        %2371 = vadd.xlane.f32.xlu0 %v2364
        %v2372 = vpop.xlane.xlu0 %2371
        %v2373 = vmul.f32 %v2366, 0.03125
        %v2374 = vmul.f32 %v2368, 0.03125
        %v2375 = vmul.f32 %v2370, 0.03125
        %v2376 = vmul.f32 %v2372, 0.03125
        %v2377 = vsub.f32 %v2357, %v2373
        %v2378 = vsub.f32 %v2358, %v2374
        %v2379 = vsub.f32 %v2359, %v2375
        %v2380 = vsub.f32 %v2360, %v2376
        %v2381 = vmul.f32 %v2377, %v770
        %v2382 = vmul.f32 %v2378, %v770
        %v2383 = vmul.f32 %v2379, %v770
        %v2384 = vmul.f32 %v2380, %v770
        %v2385 = vmul.f32 %v2381, %v2381
        %v2386 = vmul.f32 %v2382, %v2382
        %v2387 = vmul.f32 %v2383, %v2383
        %v2388 = vmul.f32 %v2384, %v2384
        %2389 = vadd.xlane.f32.xlu0 %v2385
        %v2390 = vpop.xlane.xlu0 %2389
        %2391 = vadd.xlane.f32.xlu0 %v2386
        %v2392 = vpop.xlane.xlu0 %2391
        %2393 = vadd.xlane.f32.xlu0 %v2387
        %v2394 = vpop.xlane.xlu0 %2393
        %2395 = vadd.xlane.f32.xlu0 %v2388
        %v2396 = vpop.xlane.xlu0 %2395
        %v2397 = vmul.f32 %v2390, 0.03125
        %v2398 = vmul.f32 %v2392, 0.03125
        %v2399 = vmul.f32 %v2394, 0.03125
        %v2400 = vmul.f32 %v2396, 0.03125
        %v2401 = vadd.f32 %v2397, 1e-05
        %v2402 = vadd.f32 %v2398, 1e-05
        %v2403 = vadd.f32 %v2399, 1e-05
        %v2404 = vadd.f32 %v2400, 1e-05
        %v2405 = vrsqrt.pop %v2401
        %v2406 = vrsqrt.pop %v2402
        %v2407 = vrsqrt.pop %v2403
        %v2408 = vrsqrt.pop %v2404
        %v2409 = vmul.f32 %v2381, %v2405
        %v2410 = vmul.f32 %v2382, %v2406
        %v2411 = vmul.f32 %v2383, %v2407
        %v2412 = vmul.f32 %v2384, %v2408
        %v2413 = vlaneseq
        %v2414 = vshrl.u32 %v2413, 7
        %v2415 = vsub.s32 2, %v2414
        %v2416 = vrot.slane %v943, %v2415
        %v2417 = vmul.f32 %v2409, %v2416
        %v2418 = vmul.f32 %v2410, %v2416
        %v2419 = vmul.f32 %v2411, %v2416
        %v2420 = vmul.f32 %v2412, %v2416
        %v2421 = vlaneseq
        %v2422 = vshrl.u32 %v2421, 7
        %v2423 = vsub.s32 3, %v2422
        %v2424 = vrot.slane %v943, %v2423
        %v2425 = vadd.f32 %v2417, %v2424
        %v2426 = vadd.f32 %v2418, %v2424
        %v2427 = vadd.f32 %v2419, %v2424
        %v2428 = vadd.f32 %v2420, %v2424
        %2429 = vst [vmem:[#allocation2] sm:$0xff] %v2425
        %2430 = vst [vmem:[#allocation2 + $0x8] sm:$0xff] %v2426
        %2431 = vst [vmem:[#allocation2 + $0x10] sm:$0xff] %v2427
        %2432 = vst [vmem:[#allocation2 + $0x18] sm:$0xff] %v2428
        %p2433 = scmp.eq.s32.totalorder %s37, 1
        // Predicated region
        $region113: #{hubert_forward.1} parent=91 // pred_check
          %p2434 = pneg %p2433
        $region114: #{hubert_forward.1} parent=91 // pred_check_branch
          %2436 = sbr.rel (%p2434) target = $region116
        $region115: #{hubert_forward.1} parent=91 // pred_region
          %v2437 = vpack.c.bf16 %v2426, %v2425
          %v2438 = vpack.c.bf16 %v2428, %v2427
          %v2439 = vld [vmem:[#allocation8] sm:$0xf]
          %v2440 = vld [vmem:[#allocation8 + $0x4] sm:$0xf]
          %v2441 = vld [vmem:[#allocation8 + $0x8] sm:$0xf]
          %v2442 = vld [vmem:[#allocation8 + $0xc] sm:$0xf]
          %v2443 = vld [vmem:[#allocation8 + $0x10] sm:$0xf]
          %v2444 = vld [vmem:[#allocation8 + $0x14] sm:$0xf]
          %v2445 = vld [vmem:[#allocation8 + $0x18] sm:$0xf]
          %v2446 = vld [vmem:[#allocation8 + $0x1c] sm:$0xf]
          %v2447 = vld [vmem:[#allocation8 + $0x20] sm:$0xf]
          %v2448 = vld [vmem:[#allocation8 + $0x24] sm:$0xf]
          %v2449 = vld [vmem:[#allocation8 + $0x28] sm:$0xf]
          %v2450 = vld [vmem:[#allocation8 + $0x2c] sm:$0xf]
          %v2451 = vld [vmem:[#allocation8 + $0x30] sm:$0xf]
          %v2452 = vld [vmem:[#allocation8 + $0x34] sm:$0xf]
          %v2453 = vld [vmem:[#allocation8 + $0x38] sm:$0xf]
          %v2454 = vld [vmem:[#allocation8 + $0x3c] sm:$0xf]
          %v2455 = vld [vmem:[#allocation9] sm:$0x1]
          %v2457 = vlaneseq
          %v2458 = vshrl.u32 %v2457, 7
          %v2459 = vsub.s32 0, %v2458
          %v2460 = vrot.slane %v2455, %v2459
          %v2478 = vunpack.c.l.b16 %v2439
          %v2479 = vunpack.c.l.b16 %v2440
          %v2480 = vunpack.c.l.b16 %v2441
          %v2481 = vunpack.c.l.b16 %v2442
          %v2482 = vunpack.c.l.b16 %v2443
          %v2483 = vunpack.c.l.b16 %v2444
          %v2484 = vunpack.c.l.b16 %v2445
          %v2485 = vunpack.c.l.b16 %v2446
          %v2486 = vunpack.c.l.b16 %v2447
          %v2487 = vunpack.c.l.b16 %v2448
          %v2488 = vunpack.c.l.b16 %v2449
          %v2489 = vunpack.c.l.b16 %v2450
          %v2490 = vunpack.c.l.b16 %v2451
          %v2491 = vunpack.c.l.b16 %v2452
          %v2492 = vunpack.c.l.b16 %v2453
          %v2493 = vunpack.c.l.b16 %v2454
          %v2494 = vpack.c.b16 %v2479, %v2478
          %v2495 = vpack.c.b16 %v2481, %v2480
          %v2496 = vpack.c.b16 %v2483, %v2482
          %v2497 = vpack.c.b16 %v2485, %v2484
          %v2498 = vpack.c.b16 %v2487, %v2486
          %v2499 = vpack.c.b16 %v2489, %v2488
          %v2500 = vpack.c.b16 %v2491, %v2490
          %v2501 = vpack.c.b16 %v2493, %v2492
          %2510 = vmatprep.subr.bf16.mxu0 0
          %2511 = vmatpush1.bf16.msra.mxu0 %v2494
          %2512 = vmatprep.subr.bf16.mxu0 0
          %2513 = vmatpush1.bf16.msra.mxu0 %v2495
          %2514 = vmatprep.subr.bf16.mxu0 0
          %2515 = vmatpush1.bf16.msra.mxu0 %v2496
          %2516 = vmatprep.subr.bf16.mxu0 0
          %2517 = vmatpush1.bf16.msra.mxu0 %v2497
          %2518 = vmatprep.subr.bf16.mxu0 0
          %2519 = vmatpush1.bf16.msra.mxu0 %v2498
          %2520 = vmatprep.subr.bf16.mxu0 0
          %2521 = vmatpush1.bf16.msra.mxu0 %v2499
          %2522 = vmatprep.subr.bf16.mxu0 0
          %2523 = vmatpush1.bf16.msra.mxu0 %v2500
          %2524 = vmatprep.subr.bf16.mxu0 0
          %2525 = vmatpush1.bf16.msra.mxu0 %v2501
          %2526 = vmatprep.subr.bf16.mxu0 0
          %2527 = vmatpush1.bf16.msra.mxu0 0
          %2528 = vmatprep.subr.bf16.mxu0 0
          %2529 = vmatpush1.bf16.msra.mxu0 0
          %2530 = vmatprep.subr.bf16.mxu0 0
          %2531 = vmatpush1.bf16.msra.mxu0 0
          %2532 = vmatprep.subr.bf16.mxu0 0
          %2533 = vmatpush1.bf16.msra.mxu0 0
          %2534 = vmatprep.subr.bf16.mxu0 0
          %2535 = vmatpush1.bf16.msra.mxu0 0
          %2536 = vmatprep.subr.bf16.mxu0 0
          %2537 = vmatpush1.bf16.msra.mxu0 0
          %2538 = vmatprep.subr.bf16.mxu0 0
          %2539 = vmatpush1.bf16.msra.mxu0 0
          %2540 = vmatprep.subr.bf16.mxu0 0
          %2541 = vmatpush1.bf16.msra.mxu0 0
          %2542 = vmatprep.mubr.bf16.mxu0 0
          %2543 = vmatmul.mubr.bf16.gmra.mrb[0].mxu0 %v2437
          %v2544 = vpop.f32.mrb[0].mxu0
          %v2545 = vadd.f32 %v2460, %v2544
          %v2546 = vpop.f32.mrb[0].mxu0
          %v2547 = vpop.f32.mrb[0].mxu0
          %v2548 = vadd.f32 %v2460, %v2547
          %v2549 = vpop.f32.mrb[0].mxu0
          %2550 = vmatprep.mubr.bf16.mxu0 0
          %2551 = vmatmul.mubr.bf16.gmra.mrb[0].mxu0 %v2438
          %v2552 = vpop.f32.mrb[0].mxu0
          %v2553 = vadd.f32 %v2460, %v2552
          %v2554 = vpop.f32.mrb[0].mxu0
          %v2555 = vpop.f32.mrb[0].mxu0
          %v2556 = vadd.f32 %v2460, %v2555
          %v2557 = vpop.f32.mrb[0].mxu0
          %2558 = vdwg.mxu0
          %v2559 = vsel %vm768, %v2545, -1e+30
          %v2560 = vsel %vm768, %v2548, -1e+30
          %v2561 = vsel %vm768, %v2553, -1e+30
          %v2562 = vsel %vm768, %v2556, -1e+30
          %2563 = vmax.xlane.f32.xlu0 %v2559
          %v2564 = vpop.xlane.xlu0 %2563
          %2565 = vmax.xlane.f32.xlu0 %v2560
          %v2566 = vpop.xlane.xlu0 %2565
          %2567 = vmax.xlane.f32.xlu0 %v2561
          %v2568 = vpop.xlane.xlu0 %2567
          %2569 = vmax.xlane.f32.xlu0 %v2562
          %v2570 = vpop.xlane.xlu0 %2569
          %v2571 = vsub.f32 %v2559, %v2564
          %v2572 = vsub.f32 %v2560, %v2566
          %v2573 = vsub.f32 %v2561, %v2568
          %v2574 = vsub.f32 %v2562, %v2570
          %v2575 = vmul.f32 %v2571, 1.442695
          %v2576 = vpow.pop %v2575
          %v2577 = vmul.f32 %v2572, 1.442695
          %v2578 = vpow.pop %v2577
          %v2579 = vmul.f32 %v2573, 1.442695
          %v2580 = vpow.pop %v2579
          %v2581 = vmul.f32 %v2574, 1.442695
          %v2582 = vpow.pop %v2581
          %2583 = vadd.xlane.f32.xlu0 %v2576
          %v2584 = vpop.xlane.xlu0 %2583
          %2585 = vadd.xlane.f32.xlu0 %v2578
          %v2586 = vpop.xlane.xlu0 %2585
          %2587 = vadd.xlane.f32.xlu0 %v2580
          %v2588 = vpop.xlane.xlu0 %2587
          %2589 = vadd.xlane.f32.xlu0 %v2582
          %v2590 = vpop.xlane.xlu0 %2589
          %v2591 = vlog2.pop %v2584
          %v2592 = vmul.f32 %v2591, 0.6931472
          %v2593 = vlog2.pop %v2586
          %v2594 = vmul.f32 %v2593, 0.6931472
          %v2595 = vlog2.pop %v2588
          %v2596 = vmul.f32 %v2595, 0.6931472
          %v2597 = vlog2.pop %v2590
          %v2598 = vmul.f32 %v2597, 0.6931472
          %v2599 = vadd.f32 %v2592, %v2564
          %v2600 = vadd.f32 %v2594, %v2566
          %v2601 = vadd.f32 %v2596, %v2568
          %v2602 = vadd.f32 %v2598, %v2570
          %v2603 = vld [vmem:[%s16] sm:$0xff]
          %v2604 = vld [vmem:[%s16 + $0x8] sm:$0xff]
          %v2605 = vld [vmem:[%s16 + $0x10] sm:$0xff]
          %v2606 = vld [vmem:[%s16 + $0x18] sm:$0xff]
          %2607 = vset.pattern.permute.xlu0 0
          %2608 = vperm.xlu0 %2607, %v2603
          %v2609 = vpop.permute.xlu0 %2608
          %2610 = vset.pattern.permute.xlu0 0
          %2611 = vperm.xlu0 %2610, %v2604
          %v2612 = vpop.permute.xlu0 %2611
          %2613 = vset.pattern.permute.xlu0 0
          %2614 = vperm.xlu0 %2613, %v2605
          %v2615 = vpop.permute.xlu0 %2614
          %2616 = vset.pattern.permute.xlu0 0
          %2617 = vperm.xlu0 %2616, %v2606
          %v2618 = vpop.permute.xlu0 %2617
          %vm2619 = vcmp.eq.s32.totalorder %v767, %v2609
          %vm2620 = vcmp.eq.s32.totalorder %v767, %v2612
          %vm2621 = vcmp.eq.s32.totalorder %v767, %v2615
          %vm2622 = vcmp.eq.s32.totalorder %v767, %v2618
          %v2623 = vsel %vm2619, 1, 0
          %v2624 = vsel %vm2620, 1, 0
          %v2625 = vsel %vm2621, 1, 0
          %v2626 = vsel %vm2622, 1, 0
          %v2627 = vcvt.s32.f32 %v2623
          %v2628 = vcvt.s32.f32 %v2624
          %v2629 = vcvt.s32.f32 %v2625
          %v2630 = vcvt.s32.f32 %v2626
          %v2631 = vmul.f32 %v2559, %v2627
          %v2632 = vmul.f32 %v2560, %v2628
          %v2633 = vmul.f32 %v2561, %v2629
          %v2634 = vmul.f32 %v2562, %v2630
          %2635 = vadd.xlane.f32.xlu0 %v2631
          %v2636 = vpop.xlane.xlu0 %2635
          %2637 = vadd.xlane.f32.xlu0 %v2632
          %v2638 = vpop.xlane.xlu0 %2637
          %2639 = vadd.xlane.f32.xlu0 %v2633
          %v2640 = vpop.xlane.xlu0 %2639
          %2641 = vadd.xlane.f32.xlu0 %v2634
          %v2642 = vpop.xlane.xlu0 %2641
          %v2643 = vsub.f32 %v2599, %v2636
          %v2644 = vsub.f32 %v2600, %v2638
          %v2645 = vsub.f32 %v2601, %v2640
          %v2646 = vsub.f32 %v2602, %v2642
          %v2647 = vld [vmem:[%s17] sm:$0xff]
          %v2648 = vld [vmem:[%s17 + $0x8] sm:$0xff]
          %v2649 = vld [vmem:[%s17 + $0x10] sm:$0xff]
          %v2650 = vld [vmem:[%s17 + $0x18] sm:$0xff]
          %v2651 = vmul.f32 %v2643, %v2647
          %v2652 = vmul.f32 %v2644, %v2648
          %v2653 = vmul.f32 %v2645, %v2649
          %v2654 = vmul.f32 %v2646, %v2650
          %vm2655 = vcmask 7168
          %v2656 = vsel %vm2655, %v2651, 0.0
          %v2657 = vsel %vm2655, %v2652, 0.0
          %v2658 = vadd.f32 %v2656, %v2657
          %v2659 = vsel %vm2655, %v2653, 0.0
          %v2660 = vadd.f32 %v2658, %v2659
          %v2661 = vsel %vm2655, %v2654, 0.0
          %v2662 = vadd.f32 %v2660, %v2661
          %2663 = vadd.xlane.f32.xlu0 %v2662
          %v2664 = vpop.xlane.xlu0 %2663
          %v2665 = vrot.slane %v2664, 4
          %v2666 = vadd.f32 %v2664, %v2665
          %v2667 = vrot.slane %v2666, 2
          %v2668 = vadd.f32 %v2666, %v2667
          %v2669 = vrot.slane %v2668, 1
          %v2670 = vadd.f32 %v2668, %v2669
          %s2671 = vtos %v2670
          %v2672 = vsel %vm2655, %v2647, 0.0
          %v2673 = vsel %vm2655, %v2648, 0.0
          %v2674 = vadd.f32 %v2672, %v2673
          %v2675 = vsel %vm2655, %v2649, 0.0
          %v2676 = vadd.f32 %v2674, %v2675
          %v2677 = vsel %vm2655, %v2650, 0.0
          %v2678 = vadd.f32 %v2676, %v2677
          %2679 = vadd.xlane.f32.xlu0 %v2678
          %v2680 = vpop.xlane.xlu0 %2679
          %v2681 = vrot.slane %v2680, 4
          %v2682 = vadd.f32 %v2680, %v2681
          %v2683 = vrot.slane %v2682, 2
          %v2684 = vadd.f32 %v2682, %v2683
          %v2685 = vrot.slane %v2684, 1
          %v2686 = vadd.f32 %v2684, %v2685
          %s2687 = vtos %v2686
          %s2688 = smax.f32 %s2687, 1.0
          %v2689 = vstv %s2688
          %v2690 = vrcp.pop %v2689
          %s2691 = vtos %v2690
          %s2692 = smul.f32 %s2671, %s2691
          %s2693 = scalar_lea.smem [#allocation11], 0
          %2694 = sst [smem:[%s2693]] %s2692
        $region116: #{hubert_forward.1} parent=91 // pred_fallthru
          _
        // Predicated region
        $region117: #{hubert_forward.1} parent=91 // pred_check
          %p2695 = pneg %p473
        $region118: #{hubert_forward.1} parent=91 // pred_check_branch
          %2697 = sbr.rel (%p2695) target = $region120
        $region119: #{hubert_forward.1} parent=91 // pred_region
          %s2699 = ssub.s32 16, 16
          %2700 = vsyncadd [#allocation5], %s2699
          %2703 = dma.smem_to_hbm [#allocation11], 16, %s18, [#allocation5]
        $region120: #{hubert_forward.1} parent=91 // pred_fallthru
          _
        // Predicated region
        $region121: #{hubert_forward.1} parent=91 // pred_check
          %p2704 = pneg %p473
        $region122: #{hubert_forward.1} parent=91 // pred_check_branch
          %2706 = sbr.rel (%p2704) target = $region124
        $region123: #{hubert_forward.1} parent=91 // pred_region
          %2707 = dma.done [#allocation5], 16
        $region124: #{hubert_forward.1} parent=91 // pred_fallthru
          _
        %2708 = sfence
      $region92: #{hubert_forward.1} parent=5 // pred_fallthru
        _
      %p2709 = scmp.le.s32.totalorder 2, %s32
      // Predicated region
      $region125: #{hubert_forward.1} parent=5 // pred_check
        %p2710 = pneg %p2709
      $region126: #{hubert_forward.1} parent=5 // pred_check_branch
        %2712 = sbr.rel (%p2710) target = $region128
      $region127: #{hubert_forward.1} parent=5 // pred_region
        %s2713 = ssub.s32 %s32, 2
      $region128: #{hubert_forward.1} parent=5 // pred_fallthru
        _
    $region6: #{hubert_forward.1} parent=1 // loop_footer
      %s36 = sadd.s32 1, %s32
    $region7: #{hubert_forward.1} parent=1 // loop_footer_branch
      %31 = sbr.rel target = $region3
    $region8: #{hubert_forward.1} parent=1 // loop_exit
      _
    %2714 = vsyncpa [#allocation4], 1
    %s2715 = scalar_lea.sflag [#allocation4], 1
    %2716 = vsyncpa %s2715, 1
    %2717 = vsyncpa [#allocation7], 1
    %s2718 = scalar_lea.sflag [#allocation7], 1
    %2719 = vsyncpa %s2718, 1
    %2720 = vsyncpa [#allocation10], 1
    %2721 = vsyncpa [#allocation5], 1
    %s2722 = scalar_lea.sflag [#allocation5], 1
    %2723 = vsyncpa %s2722, 1

</llo_original>
